<compile_context>
chip_gen: v5e
topology: v5e:2x2
jax: 0.10.0
libtpu: 0.0.40
codegen_flags: <defaults>
</compile_context>

<pallas_src>
import functools

import jax
import jax.numpy as jnp
import numpy as np
from jax.experimental import pallas as pl
from jax.experimental.pallas import tpu as pltpu

EPS = 1e-5
_LANE = 128
_SUBLANE = 8

# Flip to jnp.bfloat16 on v6e/v7x for the fast MXU path and halved HBM/VMEM
# traffic (BN stats, scale/shift and the stored raw conv stay f32; loosen the
# comparison tolerance to ~2e-2 when doing so).  f32 keeps exact parity with
# the f32 PyTorch module for the correctness check below.
COMPUTE_DTYPE = jnp.float32

# 512-row tiles sit near the HBM roofline (~85% vs ~63% at 256 on v6e).
DEFAULT_BLOCK_M = 512


def _round_up(a, b):
    return (a + b - 1) // b * b


def _pad2d(a, rows, cols):
    return jnp.pad(a, ((0, rows - a.shape[0]), (0, cols - a.shape[1])))


def _pad_vec(v, cols):
    v = v.reshape(-1).astype(jnp.float32)
    return jnp.pad(v, (0, cols - v.shape[0]))


@functools.lru_cache(maxsize=None)
def _vmem_limit_bytes():
    """Per-generation VMEM budget: ~75% of physical, clamped to [48, 100] MiB
    (v5e/v6e 128 MiB -> 96 MiB; v7x 64 MiB -> 48 MiB).  Falls back to 48 MiB
    if the hardware query is unavailable."""
    try:
        cap = pltpu.get_tpu_info().vmem_capacity_bytes
        return int(min(max(cap * 3 // 4, 48 * 1024 * 1024), 100 * 1024 * 1024))
    except Exception:
        return 48 * 1024 * 1024


def _im2col(x_nhwc, K, stride, pad):
    """x: (N,H,W,C) -> patches (N*Ho*Wo, K*K*C), Ho, Wo.  (ky,kx,c) column
    order matches an HWIO weight reshaped to (K*K*C, Cout)."""
    N, H, W, C = x_nhwc.shape
    if pad:
        x_nhwc = jnp.pad(x_nhwc, ((0, 0), (pad, pad), (pad, pad), (0, 0)))
    Ho = (H + 2 * pad - K) // stride + 1
    Wo = (W + 2 * pad - K) // stride + 1
    cols = []
    for ky in range(K):
        for kx in range(K):
            cols.append(x_nhwc[:, ky:ky + stride * (Ho - 1) + 1:stride,
                                  kx:kx + stride * (Wo - 1) + 1:stride, :])
    patches = jnp.concatenate(cols, axis=-1) if len(cols) > 1 else cols[0]
    return patches.reshape(N * Ho * Wo, K * K * C), Ho, Wo


# ---------------- pass 1: conv + per-tile partial batch statistics ----------

def _make_stats_kernel(proj):
    """One lane-folded im2col matmul per tile; stores the raw f32 conv and
    per-tile (8, Cp) partial sum / sum-of-squares.  The (TM//8, 8, Cp)
    reshape keeps the per-tile accumulation on the VPU (vreg adds only); the
    final 8->1 reduce happens in the tiny JAX combine step."""

    def _partials(conv, sum_ref, sq_ref):
        tm, cp = conv.shape
        c3 = conv.reshape(tm // _SUBLANE, _SUBLANE, cp)
        sum_ref[...] = jnp.sum(c3, axis=0)
        sq_ref[...] = jnp.sum(c3 * c3, axis=0)

    if proj:
        def kernel(p_ref, w_ref, sp_ref, ws_ref,
                   o_ref, sum_ref, sq_ref, sums_ref, sqs_ref):
            conv = jnp.dot(p_ref[...], w_ref[...],
                           preferred_element_type=jnp.float32)
            o_ref[...] = conv.astype(o_ref.dtype)
            _partials(conv, sum_ref, sq_ref)
            conv_s = jnp.dot(sp_ref[...], ws_ref[...],
                             preferred_element_type=jnp.float32)
            _partials(conv_s, sums_ref, sqs_ref)
    else:
        def kernel(p_ref, w_ref, o_ref, sum_ref, sq_ref):
            conv = jnp.dot(p_ref[...], w_ref[...],
                           preferred_element_type=jnp.float32)
            o_ref[...] = conv.astype(o_ref.dtype)
            _partials(conv, sum_ref, sq_ref)
    return kernel


# ---------------- pass 2: affine (+shortcut) (+relu), elementwise -----------

def _make_apply_kernel(mode, relu):
    if mode == "proj":
        def kernel(c_ref, sc_ref, sh_ref, sp_ref, ws_ref, o_ref):
            y = c_ref[...].astype(jnp.float32) * sc_ref[...] + sh_ref[...]
            # shortcut BN scale is pre-folded into ws_eff, its shift into sh.
            y = y + jnp.dot(sp_ref[...], ws_ref[...],
                            preferred_element_type=jnp.float32)
            if relu:
                y = jnp.maximum(y, 0.0)
            o_ref[...] = y.astype(o_ref.dtype)
    elif mode == "identity":
        def kernel(c_ref, sc_ref, sh_ref, r_ref, o_ref):
            y = c_ref[...].astype(jnp.float32) * sc_ref[...] + sh_ref[...]
            y = y + r_ref[...].astype(jnp.float32)
            if relu:
                y = jnp.maximum(y, 0.0)
            o_ref[...] = y.astype(o_ref.dtype)
    else:
        def kernel(c_ref, sc_ref, sh_ref, o_ref):
            y = c_ref[...].astype(jnp.float32) * sc_ref[...] + sh_ref[...]
            if relu:
                y = jnp.maximum(y, 0.0)
            o_ref[...] = y.astype(o_ref.dtype)
    return kernel


def fused_conv_bn(patches, w2d, gamma, beta, *, relu, cout,
                  residual=None, shortcut=None,
                  block_m=DEFAULT_BLOCK_M, eps=EPS,
                  compute_dtype=COMPUTE_DTYPE):
    """conv (im2col matmul) -> train-mode BN -> [+shortcut] -> [relu].

    patches : (M, Kc) im2col rows of the conv input
    w2d     : (Kc, Cout) flattened HWIO weights
    residual: (M, Cout) identity residual, or
    shortcut: (sp (M, Cin), ws (Cin, Cout), gs, bs) 1x1-conv + BN branch.
    Returns (M, Cout) float32.
    """
    assert residual is None or shortcut is None
    M, Kc = patches.shape
    proj = shortcut is not None
    mode = "proj" if proj else ("identity" if residual is not None else "none")

    Cp = _round_up(max(cout, _LANE), _LANE)          # lane-dense out channels
    Kcp = _round_up(max(Kc, _LANE), _LANE)           # lane-dense contraction
    TM = _round_up(min(block_m, _round_up(M, _SUBLANE)), _SUBLANE)
    M_pad = _round_up(M, TM)
    nt = M_pad // TM
    inv_m = 1.0 / float(M)

    p = _pad2d(patches, M_pad, Kcp).astype(compute_dtype)
    w = _pad2d(w2d, Kcp, Cp).astype(compute_dtype)

    cparams = pltpu.CompilerParams(
        # M-tiles are fully independent in both passes -> megacore on v7x.
        dimension_semantics=("parallel",),
        vmem_limit_bytes=_vmem_limit_bytes())

    # ------------------------------ pass 1 ---------------------------------
    stats_inputs = [p, w]
    stats_in_specs = [
        pl.BlockSpec((TM, Kcp), lambda t: (t, 0)),
        # TODO(synk): grid-invariant block; single-buffer it
        # (pipeline_mode=pl.Buffered(1)) to halve its VMEM cost on v7x.
        pl.BlockSpec((Kcp, Cp), lambda t: (0, 0)),
    ]
    stats_out_shapes = [
        jax.ShapeDtypeStruct((M_pad, Cp), jnp.float32),          # raw conv
        jax.ShapeDtypeStruct((nt * _SUBLANE, Cp), jnp.float32),  # partial sum
        jax.ShapeDtypeStruct((nt * _SUBLANE, Cp), jnp.float32),  # partial sq
    ]
    stats_out_specs = [
        pl.BlockSpec((TM, Cp), lambda t: (t, 0)),
        pl.BlockSpec((_SUBLANE, Cp), lambda t: (t, 0)),
        pl.BlockSpec((_SUBLANE, Cp), lambda t: (t, 0)),
    ]
    if proj:
        sp, ws, gs, bs = shortcut
        Kcs = sp.shape[1]
        Kcsp = _round_up(max(Kcs, _LANE), _LANE)
        spp = _pad2d(sp, M_pad, Kcsp).astype(compute_dtype)
        wsp = _pad2d(ws, Kcsp, Cp).astype(jnp.float32)   # f32 master for fold
        stats_inputs += [spp, wsp.astype(compute_dtype)]
        stats_in_specs += [pl.BlockSpec((TM, Kcsp), lambda t: (t, 0)),
                           pl.BlockSpec((Kcsp, Cp), lambda t: (0, 0))]
        stats_out_shapes += [
            jax.ShapeDtypeStruct((nt * _SUBLANE, Cp), jnp.float32),
            jax.ShapeDtypeStruct((nt * _SUBLANE, Cp), jnp.float32),
        ]
        stats_out_specs += [pl.BlockSpec((_SUBLANE, Cp), lambda t: (t, 0)),
                            pl.BlockSpec((_SUBLANE, Cp), lambda t: (t, 0))]

    stats_out = pl.pallas_call(
        _make_stats_kernel(proj),
        out_shape=tuple(stats_out_shapes),
        grid=(nt,),
        in_specs=stats_in_specs,
        out_specs=tuple(stats_out_specs),
        compiler_params=cparams,
    )(*stats_inputs)

    if proj:
        conv_raw, psum, psq, psum_s, psq_s = stats_out
    else:
        conv_raw, psum, psq = stats_out

    # --------------------------- combine (tiny) ----------------------------
    # TODO(synk): one-pass E[x^2]-E[x]^2 (f32) can cancel for very large
    #             activation magnitudes; switch to shifted/Welford if needed.
    g = _pad_vec(gamma, Cp)
    b = _pad_vec(beta, Cp)
    mean = psum.sum(axis=0) * inv_m
    var = psq.sum(axis=0) * inv_m - mean * mean
    scale = g * jax.lax.rsqrt(var + eps)
    shift = b - mean * scale

    if proj:
        gs_p = _pad_vec(gs, Cp)
        bs_p = _pad_vec(bs, Cp)
        mean_s = psum_s.sum(axis=0) * inv_m
        var_s = psq_s.sum(axis=0) * inv_m - mean_s * mean_s
        scale_s = gs_p * jax.lax.rsqrt(var_s + eps)
        shift = shift + (bs_p - mean_s * scale_s)         # fold both shifts
        ws_eff = (wsp * scale_s[None, :]).astype(compute_dtype)

    # ------------------------------ pass 2 ---------------------------------
    apply_inputs = [conv_raw, scale.reshape(1, Cp), shift.reshape(1, Cp)]
    apply_in_specs = [pl.BlockSpec((TM, Cp), lambda t: (t, 0)),
                      pl.BlockSpec((1, Cp), lambda t: (0, 0)),
                      pl.BlockSpec((1, Cp), lambda t: (0, 0))]
    if proj:
        apply_inputs += [spp, ws_eff]
        apply_in_specs += [pl.BlockSpec((TM, Kcsp), lambda t: (t, 0)),
                           pl.BlockSpec((Kcsp, Cp), lambda t: (0, 0))]
    elif mode == "identity":
        apply_inputs.append(_pad2d(residual, M_pad, Cp).astype(compute_dtype))
        apply_in_specs.append(pl.BlockSpec((TM, Cp), lambda t: (t, 0)))

    out = pl.pallas_call(
        _make_apply_kernel(mode, relu),
        out_shape=jax.ShapeDtypeStruct((M_pad, Cp), jnp.float32),
        grid=(nt,),
        in_specs=apply_in_specs,
        out_specs=pl.BlockSpec((TM, Cp), lambda t: (t, 0)),
        input_output_aliases={0: 0},         # reuse conv_raw's HBM buffer
        compiler_params=cparams,
    )(*apply_inputs)

    return out[:M, :cout]


@functools.partial(jax.jit, static_argnames=("stride", "block_m"))
def basic_block_forward(x_nchw, params, stride=1, block_m=DEFAULT_BLOCK_M):
    """Matches BasicBlock.forward (train-mode BN); NCHW in / NCHW out."""
    x = jnp.transpose(x_nchw, (0, 2, 3, 1))                  # NCHW -> NHWC
    N, H, W, Cin = x.shape
    planes = params["w1"].shape[-1]

    # ---- stage 1: conv1 (3x3, stride) -> bn1 -> relu -----------------------
    p1, Ho, Wo = _im2col(x, 3, stride, 1)
    M = N * Ho * Wo
    w1 = params["w1"].reshape(9 * Cin, planes)
    y1 = fused_conv_bn(p1, w1, params["g1"], params["b1"],
                       relu=True, cout=planes, block_m=block_m)
    # TODO(synk): on v5e emit y1 (and the final output) in bf16 to halve the
    #             stage-1 store / stage-2 read traffic (tolerance trade-off).

    # ---- stage 2: conv2 (3x3, s=1) -> bn2, + shortcut, relu (fused) --------
    p2, _, _ = _im2col(y1.reshape(N, Ho, Wo, planes), 3, 1, 1)
    w2 = params["w2"].reshape(9 * planes, planes)

    if "ws" in params:
        sp, _, _ = _im2col(x, 1, stride, 0)                  # (M, Cin)
        ws = params["ws"].reshape(Cin, planes)
        out = fused_conv_bn(p2, w2, params["g2"], params["b2"],
                            relu=True, cout=planes, block_m=block_m,
                            shortcut=(sp, ws, params["gs"], params["bs"]))
    else:
        out = fused_conv_bn(p2, w2, params["g2"], params["b2"],
                            relu=True, cout=planes, block_m=block_m,
                            residual=x.reshape(M, planes))

    return jnp.transpose(out.reshape(N, Ho, Wo, planes), (0, 3, 1, 2))


# ---------------- pure-JAX reference (for correctness check) ----------------

def _conv_ref(x, w, stride, pad):
    return jax.lax.conv_general_dilated(
        x, w, (stride, stride), ((pad, pad), (pad, pad)),
        dimension_numbers=("NHWC", "HWIO", "NHWC"),
        precision=jax.lax.Precision.HIGHEST)


def _bn_ref(x, gamma, beta, eps=EPS):
    mean = jnp.mean(x, axis=(0, 1, 2), keepdims=True)
    var = jnp.mean(jnp.square(x - mean), axis=(0, 1, 2), keepdims=True)
    return (x - mean) * jax.lax.rsqrt(var + eps) * gamma + beta


def basic_block_ref(x_nchw, params, stride=1):
    x = jnp.transpose(x_nchw, (0, 2, 3, 1))
    out = jax.nn.relu(_bn_ref(_conv_ref(x, params["w1"], stride, 1),
                              params["g1"], params["b1"]))
    out = _bn_ref(_conv_ref(out, params["w2"], 1, 1),
                  params["g2"], params["b2"])
    if "ws" in params:
        sc = _bn_ref(_conv_ref(x, params["ws"], stride, 0),
                     params["gs"], params["bs"])
    else:
        sc = x
    return jnp.transpose(jax.nn.relu(out + sc), (0, 3, 1, 2))


# --------------------------------- main --------------------------------------

def _make_params(key, in_planes, planes, stride):
    ks = jax.random.split(key, 9)
    p = {
        "w1": 0.1 * jax.random.normal(ks[0], (3, 3, in_planes, planes), jnp.float32),
        "g1": 1.0 + 0.1 * jax.random.normal(ks[1], (planes,), jnp.float32),
        "b1": 0.1 * jax.random.normal(ks[2], (planes,), jnp.float32),
        "w2": 0.1 * jax.random.normal(ks[3], (3, 3, planes, planes), jnp.float32),
        "g2": 1.0 + 0.1 * jax.random.normal(ks[4], (planes,), jnp.float32),
        "b2": 0.1 * jax.random.normal(ks[5], (planes,), jnp.float32),
    }
    if stride != 1 or in_planes != planes:
        p["ws"] = 0.1 * jax.random.normal(ks[6], (1, 1, in_planes, planes), jnp.float32)
        p["gs"] = 1.0 + 0.1 * jax.random.normal(ks[7], (planes,), jnp.float32)
        p["bs"] = 0.1 * jax.random.normal(ks[8], (planes,), jnp.float32)
    return p


if __name__ == "__main__":
    key = jax.random.PRNGKey(0)

    configs = [
        # (N, in_planes, planes, H, W, stride)
        (2, 4, 8, 16, 16, 1),   # projection shortcut (channel change)
        (2, 8, 8, 16, 16, 1),   # identity shortcut
        (2, 4, 8, 16, 16, 2),   # projection shortcut + stride 2
    ]

    for (N, in_planes, planes, H, W, stride) in configs:
        kp, kx, key = jax.random.split(key, 3)
        params = _make_params(kp, in_planes, planes, stride)
        x = jax.random.normal(kx, (N, in_planes, H, W), jnp.float32)   # NCHW

        out = jax.block_until_ready(basic_block_forward(x, params, stride=stride))
        ref = jax.block_until_ready(basic_block_ref(x, params, stride=stride))

        assert out.shape == (N, planes, H // stride, W // stride), out.shape
        np.testing.assert_allclose(np.asarray(out), np.asarray(ref),
                                   rtol=2e-3, atol=2e-3)

    print("KERNEL_OK")
</pallas_src>

<mosaic_0001>
module attributes {stable_mosaic.version = 11 : i64} {
  func.func @kernel(%arg0: i32, %arg1: memref<512x128xf32, #tpu.memory_space<vmem>>, %arg2: memref<128x128xf32, #tpu.memory_space<vmem>>, %arg3: memref<512x128xf32, #tpu.memory_space<vmem>>, %arg4: memref<8x128xf32, #tpu.memory_space<vmem>>, %arg5: memref<8x128xf32, #tpu.memory_space<vmem>>) attributes {dimension_semantics = [#tpu.dimension_semantics<parallel>], iteration_bounds = array<i64: 1>, scalar_prefetch = 0 : i64, scratch_operands = 0 : i64, tpu.core_type = #tpu.core_type<tc>, window_params = [{transform_indices = @transform_0, window_bounds = array<i64: 512, 128>}, {pipeline_mode = #tpu.pipeline_mode<synchronous>, transform_indices = @transform_1, window_bounds = array<i64: 128, 128>}, {transform_indices = @transform_2, window_bounds = array<i64: 512, 128>}, {transform_indices = @transform_3, window_bounds = array<i64: 8, 128>}, {transform_indices = @transform_4, window_bounds = array<i64: 8, 128>}]} {
    %c0 = arith.constant 0 : index
    %c0_0 = arith.constant 0 : index
    %0 = vector.load %arg1[%c0, %c0_0] : memref<512x128xf32, #tpu.memory_space<vmem>>, vector<512x128xf32>
    %c0_1 = arith.constant 0 : index
    %c0_2 = arith.constant 0 : index
    %1 = vector.load %arg2[%c0_1, %c0_2] : memref<128x128xf32, #tpu.memory_space<vmem>>, vector<128x128xf32>
    %cst = arith.constant dense<0.000000e+00> : vector<512x128xf32>
    %2 = tpu.matmul %0, %1, %cst {dimension_numbers = #tpu.dot_dimension_numbers<[1], [0], [0], [1], [0, 0, 1, 1], [], []>} : vector<512x128xf32>, vector<128x128xf32>, vector<512x128xf32> -> vector<512x128xf32>
    %c0_3 = arith.constant 0 : index
    %c0_4 = arith.constant 0 : index
    %3 = vector.load %arg3[%c0_3, %c0_4] : memref<512x128xf32, #tpu.memory_space<vmem>>, vector<512x128xf32>
    tpu.vector_store %arg3[%c0_3, %c0_4], %2 {strides = array<i32>} : memref<512x128xf32, #tpu.memory_space<vmem>>, vector<512x128xf32>,
    %4 = vector.shape_cast %2 : vector<512x128xf32> to vector<64x8x128xf32>
    %cst_5 = arith.constant dense<0.000000e+00> : vector<8x128xf32>
    %5 = vector.multi_reduction <add>, %4, %cst_5 [0] : vector<64x8x128xf32> to vector<8x128xf32>
    %c0_6 = arith.constant 0 : index
    %c0_7 = arith.constant 0 : index
    %6 = vector.load %arg4[%c0_6, %c0_7] : memref<8x128xf32, #tpu.memory_space<vmem>>, vector<8x128xf32>
    tpu.vector_store %arg4[%c0_6, %c0_7], %5 {strides = array<i32>} : memref<8x128xf32, #tpu.memory_space<vmem>>, vector<8x128xf32>,
    %7 = arith.mulf %4, %4 : vector<64x8x128xf32>
    %cst_8 = arith.constant dense<0.000000e+00> : vector<8x128xf32>
    %8 = vector.multi_reduction <add>, %7, %cst_8 [0] : vector<64x8x128xf32> to vector<8x128xf32>
    %c0_9 = arith.constant 0 : index
    %c0_10 = arith.constant 0 : index
    %9 = vector.load %arg5[%c0_9, %c0_10] : memref<8x128xf32, #tpu.memory_space<vmem>>, vector<8x128xf32>
    tpu.vector_store %arg5[%c0_9, %c0_10], %8 {strides = array<i32>} : memref<8x128xf32, #tpu.memory_space<vmem>>, vector<8x128xf32>,
    return
  }
  func.func @transform_0(%arg0: i32) -> (i32, i32) {
    %c0_i32 = arith.constant 0 : i32
    %c0_i32_0 = arith.constant 0 : i32
    return %arg0, %c0_i32 : i32, i32
  }
  func.func @transform_1(%arg0: i32) -> (i32, i32) {
    %c0_i32 = arith.constant 0 : i32
    %c0_i32_0 = arith.constant 0 : i32
    %c0_i32_1 = arith.constant 0 : i32
    return %c0_i32, %c0_i32_0 : i32, i32
  }
  func.func @transform_2(%arg0: i32) -> (i32, i32) {
    %c0_i32 = arith.constant 0 : i32
    %c0_i32_0 = arith.constant 0 : i32
    return %arg0, %c0_i32 : i32, i32
  }
  func.func @transform_3(%arg0: i32) -> (i32, i32) {
    %c0_i32 = arith.constant 0 : i32
    %c0_i32_0 = arith.constant 0 : i32
    return %arg0, %c0_i32 : i32, i32
  }
  func.func @transform_4(%arg0: i32) -> (i32, i32) {
    %c0_i32 = arith.constant 0 : i32
    %c0_i32_0 = arith.constant 0 : i32
    return %arg0, %c0_i32 : i32, i32
  }
}

module attributes {stable_mosaic.version = 11 : i64} {
  func.func @kernel(%arg0: i32, %arg1: memref<512x128xf32, #tpu.memory_space<vmem>>, %arg2: memref<1x128xf32, #tpu.memory_space<vmem>>, %arg3: memref<1x128xf32, #tpu.memory_space<vmem>>, %arg4: memref<512x128xf32, #tpu.memory_space<vmem>>) attributes {dimension_semantics = [#tpu.dimension_semantics<parallel>], iteration_bounds = array<i64: 1>, scalar_prefetch = 0 : i64, scratch_operands = 0 : i64, tpu.core_type = #tpu.core_type<tc>, window_params = [{transform_indices = @transform_0, window_bounds = array<i64: 512, 128>}, {pipeline_mode = #tpu.pipeline_mode<synchronous>, transform_indices = @transform_1, window_bounds = array<i64: 1, 128>}, {pipeline_mode = #tpu.pipeline_mode<synchronous>, transform_indices = @transform_2, window_bounds = array<i64: 1, 128>}, {transform_indices = @transform_3, window_bounds = array<i64: 512, 128>}]} {
    %c0 = arith.constant 0 : index
    %c0_0 = arith.constant 0 : index
    %0 = vector.load %arg1[%c0, %c0_0] : memref<512x128xf32, #tpu.memory_space<vmem>>, vector<512x128xf32>
    %c0_1 = arith.constant 0 : index
    %c0_2 = arith.constant 0 : index
    %1 = vector.load %arg2[%c0_1, %c0_2] : memref<1x128xf32, #tpu.memory_space<vmem>>, vector<1x128xf32>
    %2 = vector.broadcast %1 : vector<1x128xf32> to vector<512x128xf32>
    %3 = arith.mulf %0, %2 : vector<512x128xf32>
    %c0_3 = arith.constant 0 : index
    %c0_4 = arith.constant 0 : index
    %4 = vector.load %arg3[%c0_3, %c0_4] : memref<1x128xf32, #tpu.memory_space<vmem>>, vector<1x128xf32>
    %5 = vector.broadcast %4 : vector<1x128xf32> to vector<512x128xf32>
    %6 = arith.addf %3, %5 : vector<512x128xf32>
    %cst = arith.constant 0.000000e+00 : f32
    %7 = vector.broadcast %cst : f32 to vector<512x128xf32>
    %8 = arith.maximumf %6, %7 : vector<512x128xf32>
    %c0_5 = arith.constant 0 : index
    %c0_6 = arith.constant 0 : index
    %9 = vector.load %arg4[%c0_5, %c0_6] : memref<512x128xf32, #tpu.memory_space<vmem>>, vector<512x128xf32>
    tpu.vector_store %arg4[%c0_5, %c0_6], %8 {strides = array<i32>} : memref<512x128xf32, #tpu.memory_space<vmem>>, vector<512x128xf32>,
    return
  }
  func.func @transform_0(%arg0: i32) -> (i32, i32) {
    %c0_i32 = arith.constant 0 : i32
    %c0_i32_0 = arith.constant 0 : i32
    return %arg0, %c0_i32 : i32, i32
  }
  func.func @transform_1(%arg0: i32) -> (i32, i32) {
    %c0_i32 = arith.constant 0 : i32
    %c0_i32_0 = arith.constant 0 : i32
    %c0_i32_1 = arith.constant 0 : i32
    return %c0_i32, %c0_i32_0 : i32, i32
  }
  func.func @transform_2(%arg0: i32) -> (i32, i32) {
    %c0_i32 = arith.constant 0 : i32
    %c0_i32_0 = arith.constant 0 : i32
    %c0_i32_1 = arith.constant 0 : i32
    return %c0_i32, %c0_i32_0 : i32, i32
  }
  func.func @transform_3(%arg0: i32) -> (i32, i32) {
    %c0_i32 = arith.constant 0 : i32
    %c0_i32_0 = arith.constant 0 : i32
    return %arg0, %c0_i32 : i32, i32
  }
}

module attributes {stable_mosaic.version = 11 : i64} {
  func.func @kernel(%arg0: i32, %arg1: memref<512x128xf32, #tpu.memory_space<vmem>>, %arg2: memref<128x128xf32, #tpu.memory_space<vmem>>, %arg3: memref<512x128xf32, #tpu.memory_space<vmem>>, %arg4: memref<128x128xf32, #tpu.memory_space<vmem>>, %arg5: memref<512x128xf32, #tpu.memory_space<vmem>>, %arg6: memref<8x128xf32, #tpu.memory_space<vmem>>, %arg7: memref<8x128xf32, #tpu.memory_space<vmem>>, %arg8: memref<8x128xf32, #tpu.memory_space<vmem>>, %arg9: memref<8x128xf32, #tpu.memory_space<vmem>>) attributes {dimension_semantics = [#tpu.dimension_semantics<parallel>], iteration_bounds = array<i64: 1>, scalar_prefetch = 0 : i64, scratch_operands = 0 : i64, tpu.core_type = #tpu.core_type<tc>, window_params = [{transform_indices = @transform_0, window_bounds = array<i64: 512, 128>}, {pipeline_mode = #tpu.pipeline_mode<synchronous>, transform_indices = @transform_1, window_bounds = array<i64: 128, 128>}, {transform_indices = @transform_2, window_bounds = array<i64: 512, 128>}, {pipeline_mode = #tpu.pipeline_mode<synchronous>, transform_indices = @transform_3, window_bounds = array<i64: 128, 128>}, {transform_indices = @transform_4, window_bounds = array<i64: 512, 128>}, {transform_indices = @transform_5, window_bounds = array<i64: 8, 128>}, {transform_indices = @transform_6, window_bounds = array<i64: 8, 128>}, {transform_indices = @transform_7, window_bounds = array<i64: 8, 128>}, {transform_indices = @transform_8, window_bounds = array<i64: 8, 128>}]} {
    %c0 = arith.constant 0 : index
    %c0_0 = arith.constant 0 : index
    %0 = vector.load %arg1[%c0, %c0_0] : memref<512x128xf32, #tpu.memory_space<vmem>>, vector<512x128xf32>
    %c0_1 = arith.constant 0 : index
    %c0_2 = arith.constant 0 : index
    %1 = vector.load %arg2[%c0_1, %c0_2] : memref<128x128xf32, #tpu.memory_space<vmem>>, vector<128x128xf32>
    %cst = arith.constant dense<0.000000e+00> : vector<512x128xf32>
    %2 = tpu.matmul %0, %1, %cst {dimension_numbers = #tpu.dot_dimension_numbers<[1], [0], [0], [1], [0, 0, 1, 1], [], []>} : vector<512x128xf32>, vector<128x128xf32>, vector<512x128xf32> -> vector<512x128xf32>
    %c0_3 = arith.constant 0 : index
    %c0_4 = arith.constant 0 : index
    %3 = vector.load %arg5[%c0_3, %c0_4] : memref<512x128xf32, #tpu.memory_space<vmem>>, vector<512x128xf32>
    tpu.vector_store %arg5[%c0_3, %c0_4], %2 {strides = array<i32>} : memref<512x128xf32, #tpu.memory_space<vmem>>, vector<512x128xf32>,
    %4 = vector.shape_cast %2 : vector<512x128xf32> to vector<64x8x128xf32>
    %cst_5 = arith.constant dense<0.000000e+00> : vector<8x128xf32>
    %5 = vector.multi_reduction <add>, %4, %cst_5 [0] : vector<64x8x128xf32> to vector<8x128xf32>
    %c0_6 = arith.constant 0 : index
    %c0_7 = arith.constant 0 : index
    %6 = vector.load %arg6[%c0_6, %c0_7] : memref<8x128xf32, #tpu.memory_space<vmem>>, vector<8x128xf32>
    tpu.vector_store %arg6[%c0_6, %c0_7], %5 {strides = array<i32>} : memref<8x128xf32, #tpu.memory_space<vmem>>, vector<8x128xf32>,
    %7 = arith.mulf %4, %4 : vector<64x8x128xf32>
    %cst_8 = arith.constant dense<0.000000e+00> : vector<8x128xf32>
    %8 = vector.multi_reduction <add>, %7, %cst_8 [0] : vector<64x8x128xf32> to vector<8x128xf32>
    %c0_9 = arith.constant 0 : index
    %c0_10 = arith.constant 0 : index
    %9 = vector.load %arg7[%c0_9, %c0_10] : memref<8x128xf32, #tpu.memory_space<vmem>>, vector<8x128xf32>
    tpu.vector_store %arg7[%c0_9, %c0_10], %8 {strides = array<i32>} : memref<8x128xf32, #tpu.memory_space<vmem>>, vector<8x128xf32>,
    %c0_11 = arith.constant 0 : index
    %c0_12 = arith.constant 0 : index
    %10 = vector.load %arg3[%c0_11, %c0_12] : memref<512x128xf32, #tpu.memory_space<vmem>>, vector<512x128xf32>
    %c0_13 = arith.constant 0 : index
    %c0_14 = arith.constant 0 : index
    %11 = vector.load %arg4[%c0_13, %c0_14] : memref<128x128xf32, #tpu.memory_space<vmem>>, vector<128x128xf32>
    %cst_15 = arith.constant dense<0.000000e+00> : vector<512x128xf32>
    %12 = tpu.matmul %10, %11, %cst_15 {dimension_numbers = #tpu.dot_dimension_numbers<[1], [0], [0], [1], [0, 0, 1, 1], [], []>} : vector<512x128xf32>, vector<128x128xf32>, vector<512x128xf32> -> vector<512x128xf32>
    %13 = vector.shape_cast %12 : vector<512x128xf32> to vector<64x8x128xf32>
    %cst_16 = arith.constant dense<0.000000e+00> : vector<8x128xf32>
    %14 = vector.multi_reduction <add>, %13, %cst_16 [0] : vector<64x8x128xf32> to vector<8x128xf32>
    %c0_17 = arith.constant 0 : index
    %c0_18 = arith.constant 0 : index
    %15 = vector.load %arg8[%c0_17, %c0_18] : memref<8x128xf32, #tpu.memory_space<vmem>>, vector<8x128xf32>
    tpu.vector_store %arg8[%c0_17, %c0_18], %14 {strides = array<i32>} : memref<8x128xf32, #tpu.memory_space<vmem>>, vector<8x128xf32>,
    %16 = arith.mulf %13, %13 : vector<64x8x128xf32>
    %cst_19 = arith.constant dense<0.000000e+00> : vector<8x128xf32>
    %17 = vector.multi_reduction <add>, %16, %cst_19 [0] : vector<64x8x128xf32> to vector<8x128xf32>
    %c0_20 = arith.constant 0 : index
    %c0_21 = arith.constant 0 : index
    %18 = vector.load %arg9[%c0_20, %c0_21] : memref<8x128xf32, #tpu.memory_space<vmem>>, vector<8x128xf32>
    tpu.vector_store %arg9[%c0_20, %c0_21], %17 {strides = array<i32>} : memref<8x128xf32, #tpu.memory_space<vmem>>, vector<8x128xf32>,
    return
  }
  func.func @transform_0(%arg0: i32) -> (i32, i32) {
    %c0_i32 = arith.constant 0 : i32
    %c0_i32_0 = arith.constant 0 : i32
    return %arg0, %c0_i32 : i32, i32
  }
  func.func @transform_1(%arg0: i32) -> (i32, i32) {
    %c0_i32 = arith.constant 0 : i32
    %c0_i32_0 = arith.constant 0 : i32
    %c0_i32_1 = arith.constant 0 : i32
    return %c0_i32, %c0_i32_0 : i32, i32
  }
  func.func @transform_2(%arg0: i32) -> (i32, i32) {
    %c0_i32 = arith.constant 0 : i32
    %c0_i32_0 = arith.constant 0 : i32
    return %arg0, %c0_i32 : i32, i32
  }
  func.func @transform_3(%arg0: i32) -> (i32, i32) {
    %c0_i32 = arith.constant 0 : i32
    %c0_i32_0 = arith.constant 0 : i32
    %c0_i32_1 = arith.constant 0 : i32
    return %c0_i32, %c0_i32_0 : i32, i32
  }
  func.func @transform_4(%arg0: i32) -> (i32, i32) {
    %c0_i32 = arith.constant 0 : i32
    %c0_i32_0 = arith.constant 0 : i32
    return %arg0, %c0_i32 : i32, i32
  }
  func.func @transform_5(%arg0: i32) -> (i32, i32) {
    %c0_i32 = arith.constant 0 : i32
    %c0_i32_0 = arith.constant 0 : i32
    return %arg0, %c0_i32 : i32, i32
  }
  func.func @transform_6(%arg0: i32) -> (i32, i32) {
    %c0_i32 = arith.constant 0 : i32
    %c0_i32_0 = arith.constant 0 : i32
    return %arg0, %c0_i32 : i32, i32
  }
  func.func @transform_7(%arg0: i32) -> (i32, i32) {
    %c0_i32 = arith.constant 0 : i32
    %c0_i32_0 = arith.constant 0 : i32
    return %arg0, %c0_i32 : i32, i32
  }
  func.func @transform_8(%arg0: i32) -> (i32, i32) {
    %c0_i32 = arith.constant 0 : i32
    %c0_i32_0 = arith.constant 0 : i32
    return %arg0, %c0_i32 : i32, i32
  }
}

module attributes {stable_mosaic.version = 11 : i64} {
  func.func @kernel(%arg0: i32, %arg1: memref<512x128xf32, #tpu.memory_space<vmem>>, %arg2: memref<1x128xf32, #tpu.memory_space<vmem>>, %arg3: memref<1x128xf32, #tpu.memory_space<vmem>>, %arg4: memref<512x128xf32, #tpu.memory_space<vmem>>, %arg5: memref<128x128xf32, #tpu.memory_space<vmem>>, %arg6: memref<512x128xf32, #tpu.memory_space<vmem>>) attributes {dimension_semantics = [#tpu.dimension_semantics<parallel>], iteration_bounds = array<i64: 1>, scalar_prefetch = 0 : i64, scratch_operands = 0 : i64, tpu.core_type = #tpu.core_type<tc>, window_params = [{transform_indices = @transform_0, window_bounds = array<i64: 512, 128>}, {pipeline_mode = #tpu.pipeline_mode<synchronous>, transform_indices = @transform_1, window_bounds = array<i64: 1, 128>}, {pipeline_mode = #tpu.pipeline_mode<synchronous>, transform_indices = @transform_2, window_bounds = array<i64: 1, 128>}, {transform_indices = @transform_3, window_bounds = array<i64: 512, 128>}, {pipeline_mode = #tpu.pipeline_mode<synchronous>, transform_indices = @transform_4, window_bounds = array<i64: 128, 128>}, {transform_indices = @transform_5, window_bounds = array<i64: 512, 128>}]} {
    %c0 = arith.constant 0 : index
    %c0_0 = arith.constant 0 : index
    %0 = vector.load %arg1[%c0, %c0_0] : memref<512x128xf32, #tpu.memory_space<vmem>>, vector<512x128xf32>
    %c0_1 = arith.constant 0 : index
    %c0_2 = arith.constant 0 : index
    %1 = vector.load %arg2[%c0_1, %c0_2] : memref<1x128xf32, #tpu.memory_space<vmem>>, vector<1x128xf32>
    %2 = vector.broadcast %1 : vector<1x128xf32> to vector<512x128xf32>
    %3 = arith.mulf %0, %2 : vector<512x128xf32>
    %c0_3 = arith.constant 0 : index
    %c0_4 = arith.constant 0 : index
    %4 = vector.load %arg3[%c0_3, %c0_4] : memref<1x128xf32, #tpu.memory_space<vmem>>, vector<1x128xf32>
    %5 = vector.broadcast %4 : vector<1x128xf32> to vector<512x128xf32>
    %6 = arith.addf %3, %5 : vector<512x128xf32>
    %c0_5 = arith.constant 0 : index
    %c0_6 = arith.constant 0 : index
    %7 = vector.load %arg4[%c0_5, %c0_6] : memref<512x128xf32, #tpu.memory_space<vmem>>, vector<512x128xf32>
    %c0_7 = arith.constant 0 : index
    %c0_8 = arith.constant 0 : index
    %8 = vector.load %arg5[%c0_7, %c0_8] : memref<128x128xf32, #tpu.memory_space<vmem>>, vector<128x128xf32>
    %cst = arith.constant dense<0.000000e+00> : vector<512x128xf32>
    %9 = tpu.matmul %7, %8, %cst {dimension_numbers = #tpu.dot_dimension_numbers<[1], [0], [0], [1], [0, 0, 1, 1], [], []>} : vector<512x128xf32>, vector<128x128xf32>, vector<512x128xf32> -> vector<512x128xf32>
    %10 = arith.addf %6, %9 : vector<512x128xf32>
    %cst_9 = arith.constant 0.000000e+00 : f32
    %11 = vector.broadcast %cst_9 : f32 to vector<512x128xf32>
    %12 = arith.maximumf %10, %11 : vector<512x128xf32>
    %c0_10 = arith.constant 0 : index
    %c0_11 = arith.constant 0 : index
    %13 = vector.load %arg6[%c0_10, %c0_11] : memref<512x128xf32, #tpu.memory_space<vmem>>, vector<512x128xf32>
    tpu.vector_store %arg6[%c0_10, %c0_11], %12 {strides = array<i32>} : memref<512x128xf32, #tpu.memory_space<vmem>>, vector<512x128xf32>,
    return
  }
  func.func @transform_0(%arg0: i32) -> (i32, i32) {
    %c0_i32 = arith.constant 0 : i32
    %c0_i32_0 = arith.constant 0 : i32
    return %arg0, %c0_i32 : i32, i32
  }
  func.func @transform_1(%arg0: i32) -> (i32, i32) {
    %c0_i32 = arith.constant 0 : i32
    %c0_i32_0 = arith.constant 0 : i32
    %c0_i32_1 = arith.constant 0 : i32
    return %c0_i32, %c0_i32_0 : i32, i32
  }
  func.func @transform_2(%arg0: i32) -> (i32, i32) {
    %c0_i32 = arith.constant 0 : i32
    %c0_i32_0 = arith.constant 0 : i32
    %c0_i32_1 = arith.constant 0 : i32
    return %c0_i32, %c0_i32_0 : i32, i32
  }
  func.func @transform_3(%arg0: i32) -> (i32, i32) {
    %c0_i32 = arith.constant 0 : i32
    %c0_i32_0 = arith.constant 0 : i32
    return %arg0, %c0_i32 : i32, i32
  }
  func.func @transform_4(%arg0: i32) -> (i32, i32) {
    %c0_i32 = arith.constant 0 : i32
    %c0_i32_0 = arith.constant 0 : i32
    %c0_i32_1 = arith.constant 0 : i32
    return %c0_i32, %c0_i32_0 : i32, i32
  }
  func.func @transform_5(%arg0: i32) -> (i32, i32) {
    %c0_i32 = arith.constant 0 : i32
    %c0_i32_0 = arith.constant 0 : i32
    return %arg0, %c0_i32 : i32, i32
  }
}

</mosaic_0001>

<llo_original>
// kernel: basic_block_forward.5
$region0: #{basic_block_forward.5}
  #allocation0 [shape = 'u32[]', space=smem, size = 0x4, offset = 0x4, fixed_abs, tag = 'smem constant byte address 0x4 - core index']
  #allocation1 [shape = 'u32[72,128]{1,0:T(1,128)}', space=vmem, size = 0x9000, scoped, tag = 'internal scratch']
  %s0 = inlined_call_operand.vmem [shape: f32[512,128], index: 0, kind: input, shape index: {}, may-alias: {0,3}]
  %s1 = inlined_call_operand.vmem [shape: f32[1,128], index: 1, kind: input, shape index: {}]
  %s2 = inlined_call_operand.vmem [shape: f32[1,128], index: 2, kind: input, shape index: {}]
  %s3 = inlined_call_operand.vmem [shape: f32[512,128], index: 3, kind: output, shape index: {}, may-alias: {0,3}]
  %s4 = sld [smem:[#allocation0]]
  $region22: #{basic_block_forward.5} parent=0
    _
  %s6 = ssub.s32 1, %s4
  %s7 = scalar_select 0, %s6, %s4
  // Predicated region
  $region2: #{basic_block_forward.5} parent=0 // pred_check
    _
  $region3: #{basic_block_forward.5} parent=0 // pred_check_branch
    %9 = sbr.rel (0) target = $region5
  $region4: #{basic_block_forward.5} parent=0 // pred_region
    _
  $region5: #{basic_block_forward.5} parent=0 // pred_fallthru
    _
  // Predicated region
  $region6: #{basic_block_forward.5} parent=0 // pred_check
    _
  $region7: #{basic_block_forward.5} parent=0 // pred_check_branch
    %11 = sbr.rel (0) target = $region9
  $region8: #{basic_block_forward.5} parent=0 // pred_region
    _
  $region9: #{basic_block_forward.5} parent=0 // pred_fallthru
    _
  // Predicated region
  $region10: #{basic_block_forward.5} parent=0 // pred_check
    _
  $region11: #{basic_block_forward.5} parent=0 // pred_check_branch
    %13 = sbr.rel (0) target = $region13
  $region12: #{basic_block_forward.5} parent=0 // pred_region
    _
  $region13: #{basic_block_forward.5} parent=0 // pred_fallthru
    _
  %v14 = vld [vmem:[%s0] sm:$0xff]
  %v15 = vld [vmem:[%s0 + $0x8] sm:$0xff]
  %v16 = vld [vmem:[%s0 + $0x10] sm:$0xff]
  %v17 = vld [vmem:[%s0 + $0x18] sm:$0xff]
  %v18 = vld [vmem:[%s0 + $0x20] sm:$0xff]
  %v19 = vld [vmem:[%s0 + $0x28] sm:$0xff]
  %v20 = vld [vmem:[%s0 + $0x30] sm:$0xff]
  %v21 = vld [vmem:[%s0 + $0x38] sm:$0xff]
  %v22 = vld [vmem:[%s0 + $0x40] sm:$0xff]
  %v23 = vld [vmem:[%s0 + $0x48] sm:$0xff]
  %v24 = vld [vmem:[%s0 + $0x50] sm:$0xff]
  %v25 = vld [vmem:[%s0 + $0x58] sm:$0xff]
  %v26 = vld [vmem:[%s0 + $0x60] sm:$0xff]
  %v27 = vld [vmem:[%s0 + $0x68] sm:$0xff]
  %v28 = vld [vmem:[%s0 + $0x70] sm:$0xff]
  %v29 = vld [vmem:[%s0 + $0x78] sm:$0xff]
  %v30 = vld [vmem:[%s0 + $0x80] sm:$0xff]
  %v31 = vld [vmem:[%s0 + $0x88] sm:$0xff]
  %v32 = vld [vmem:[%s0 + $0x90] sm:$0xff]
  %v33 = vld [vmem:[%s0 + $0x98] sm:$0xff]
  %v34 = vld [vmem:[%s0 + $0xa0] sm:$0xff]
  %v35 = vld [vmem:[%s0 + $0xa8] sm:$0xff]
  %v36 = vld [vmem:[%s0 + $0xb0] sm:$0xff]
  %v37 = vld [vmem:[%s0 + $0xb8] sm:$0xff]
  %v38 = vld [vmem:[%s0 + $0xc0] sm:$0xff]
  %v39 = vld [vmem:[%s0 + $0xc8] sm:$0xff]
  %v40 = vld [vmem:[%s0 + $0xd0] sm:$0xff]
  %v41 = vld [vmem:[%s0 + $0xd8] sm:$0xff]
  %v42 = vld [vmem:[%s0 + $0xe0] sm:$0xff]
  %v43 = vld [vmem:[%s0 + $0xe8] sm:$0xff]
  %v44 = vld [vmem:[%s0 + $0xf0] sm:$0xff]
  %v45 = vld [vmem:[%s0 + $0xf8] sm:$0xff]
  %v46 = vld [vmem:[%s0 + $0x100] sm:$0xff]
  %v47 = vld [vmem:[%s0 + $0x108] sm:$0xff]
  %v48 = vld [vmem:[%s0 + $0x110] sm:$0xff]
  %v49 = vld [vmem:[%s0 + $0x118] sm:$0xff]
  %v50 = vld [vmem:[%s0 + $0x120] sm:$0xff]
  %v51 = vld [vmem:[%s0 + $0x128] sm:$0xff]
  %v52 = vld [vmem:[%s0 + $0x130] sm:$0xff]
  %v53 = vld [vmem:[%s0 + $0x138] sm:$0xff]
  %v54 = vld [vmem:[%s0 + $0x140] sm:$0xff]
  %v55 = vld [vmem:[%s0 + $0x148] sm:$0xff]
  %v56 = vld [vmem:[%s0 + $0x150] sm:$0xff]
  %v57 = vld [vmem:[%s0 + $0x158] sm:$0xff]
  %v58 = vld [vmem:[%s0 + $0x160] sm:$0xff]
  %v59 = vld [vmem:[%s0 + $0x168] sm:$0xff]
  %v60 = vld [vmem:[%s0 + $0x170] sm:$0xff]
  %v61 = vld [vmem:[%s0 + $0x178] sm:$0xff]
  %v62 = vld [vmem:[%s0 + $0x180] sm:$0xff]
  %v63 = vld [vmem:[%s0 + $0x188] sm:$0xff]
  %v64 = vld [vmem:[%s0 + $0x190] sm:$0xff]
  %v65 = vld [vmem:[%s0 + $0x198] sm:$0xff]
  %v66 = vld [vmem:[%s0 + $0x1a0] sm:$0xff]
  %v67 = vld [vmem:[%s0 + $0x1a8] sm:$0xff]
  %v68 = vld [vmem:[%s0 + $0x1b0] sm:$0xff]
  %v69 = vld [vmem:[%s0 + $0x1b8] sm:$0xff]
  %v70 = vld [vmem:[%s0 + $0x1c0] sm:$0xff]
  %v71 = vld [vmem:[%s0 + $0x1c8] sm:$0xff]
  %v72 = vld [vmem:[%s0 + $0x1d0] sm:$0xff]
  %v73 = vld [vmem:[%s0 + $0x1d8] sm:$0xff]
  %v74 = vld [vmem:[%s0 + $0x1e0] sm:$0xff]
  %v75 = vld [vmem:[%s0 + $0x1e8] sm:$0xff]
  %v76 = vld [vmem:[%s0 + $0x1f0] sm:$0xff]
  %v77 = vld [vmem:[%s0 + $0x1f8] sm:$0xff]
  %v78 = vld [vmem:[%s1] sm:$0x1]
  %v80 = vperm.slane %v78, 0
  %v82 = vmul.f32 %v14, %v80
  %v83 = vmul.f32 %v15, %v80
  %v84 = vmul.f32 %v16, %v80
  %v85 = vmul.f32 %v17, %v80
  %v86 = vmul.f32 %v18, %v80
  %v87 = vmul.f32 %v19, %v80
  %v88 = vmul.f32 %v20, %v80
  %v89 = vmul.f32 %v21, %v80
  %v90 = vmul.f32 %v22, %v80
  %v91 = vmul.f32 %v23, %v80
  %v92 = vmul.f32 %v24, %v80
  %v93 = vmul.f32 %v25, %v80
  %v94 = vmul.f32 %v26, %v80
  %v95 = vmul.f32 %v27, %v80
  %v96 = vmul.f32 %v28, %v80
  %v97 = vmul.f32 %v29, %v80
  %v98 = vmul.f32 %v30, %v80
  %v99 = vmul.f32 %v31, %v80
  %v100 = vmul.f32 %v32, %v80
  %v101 = vmul.f32 %v33, %v80
  %v102 = vmul.f32 %v34, %v80
  %v103 = vmul.f32 %v35, %v80
  %v104 = vmul.f32 %v36, %v80
  %v105 = vmul.f32 %v37, %v80
  %v106 = vmul.f32 %v38, %v80
  %v107 = vmul.f32 %v39, %v80
  %v108 = vmul.f32 %v40, %v80
  %v109 = vmul.f32 %v41, %v80
  %v110 = vmul.f32 %v42, %v80
  %v111 = vmul.f32 %v43, %v80
  %v112 = vmul.f32 %v44, %v80
  %v113 = vmul.f32 %v45, %v80
  %v114 = vmul.f32 %v46, %v80
  %v115 = vmul.f32 %v47, %v80
  %v116 = vmul.f32 %v48, %v80
  %v117 = vmul.f32 %v49, %v80
  %v118 = vmul.f32 %v50, %v80
  %v119 = vmul.f32 %v51, %v80
  %v120 = vmul.f32 %v52, %v80
  %v121 = vmul.f32 %v53, %v80
  %v122 = vmul.f32 %v54, %v80
  %v123 = vmul.f32 %v55, %v80
  %v124 = vmul.f32 %v56, %v80
  %v125 = vmul.f32 %v57, %v80
  %v126 = vmul.f32 %v58, %v80
  %v127 = vmul.f32 %v59, %v80
  %v128 = vmul.f32 %v60, %v80
  %v129 = vmul.f32 %v61, %v80
  %v130 = vmul.f32 %v62, %v80
  %v131 = vmul.f32 %v63, %v80
  %v132 = vmul.f32 %v64, %v80
  %v133 = vmul.f32 %v65, %v80
  %v134 = vmul.f32 %v66, %v80
  %v135 = vmul.f32 %v67, %v80
  %v136 = vmul.f32 %v68, %v80
  %v137 = vmul.f32 %v69, %v80
  %v138 = vmul.f32 %v70, %v80
  %v139 = vmul.f32 %v71, %v80
  %v140 = vmul.f32 %v72, %v80
  %v141 = vmul.f32 %v73, %v80
  %v142 = vmul.f32 %v74, %v80
  %v143 = vmul.f32 %v75, %v80
  %v144 = vmul.f32 %v76, %v80
  %v145 = vmul.f32 %v77, %v80
  %v146 = vld [vmem:[%s2] sm:$0x1]
  %v148 = vperm.slane %v146, 0
  %v150 = vadd.f32 %v82, %v148
  %v151 = vadd.f32 %v83, %v148
  %v152 = vadd.f32 %v84, %v148
  %v153 = vadd.f32 %v85, %v148
  %v154 = vadd.f32 %v86, %v148
  %v155 = vadd.f32 %v87, %v148
  %v156 = vadd.f32 %v88, %v148
  %v157 = vadd.f32 %v89, %v148
  %v158 = vadd.f32 %v90, %v148
  %v159 = vadd.f32 %v91, %v148
  %v160 = vadd.f32 %v92, %v148
  %v161 = vadd.f32 %v93, %v148
  %v162 = vadd.f32 %v94, %v148
  %v163 = vadd.f32 %v95, %v148
  %v164 = vadd.f32 %v96, %v148
  %v165 = vadd.f32 %v97, %v148
  %v166 = vadd.f32 %v98, %v148
  %v167 = vadd.f32 %v99, %v148
  %v168 = vadd.f32 %v100, %v148
  %v169 = vadd.f32 %v101, %v148
  %v170 = vadd.f32 %v102, %v148
  %v171 = vadd.f32 %v103, %v148
  %v172 = vadd.f32 %v104, %v148
  %v173 = vadd.f32 %v105, %v148
  %v174 = vadd.f32 %v106, %v148
  %v175 = vadd.f32 %v107, %v148
  %v176 = vadd.f32 %v108, %v148
  %v177 = vadd.f32 %v109, %v148
  %v178 = vadd.f32 %v110, %v148
  %v179 = vadd.f32 %v111, %v148
  %v180 = vadd.f32 %v112, %v148
  %v181 = vadd.f32 %v113, %v148
  %v182 = vadd.f32 %v114, %v148
  %v183 = vadd.f32 %v115, %v148
  %v184 = vadd.f32 %v116, %v148
  %v185 = vadd.f32 %v117, %v148
  %v186 = vadd.f32 %v118, %v148
  %v187 = vadd.f32 %v119, %v148
  %v188 = vadd.f32 %v120, %v148
  %v189 = vadd.f32 %v121, %v148
  %v190 = vadd.f32 %v122, %v148
  %v191 = vadd.f32 %v123, %v148
  %v192 = vadd.f32 %v124, %v148
  %v193 = vadd.f32 %v125, %v148
  %v194 = vadd.f32 %v126, %v148
  %v195 = vadd.f32 %v127, %v148
  %v196 = vadd.f32 %v128, %v148
  %v197 = vadd.f32 %v129, %v148
  %v198 = vadd.f32 %v130, %v148
  %v199 = vadd.f32 %v131, %v148
  %v200 = vadd.f32 %v132, %v148
  %v201 = vadd.f32 %v133, %v148
  %v202 = vadd.f32 %v134, %v148
  %v203 = vadd.f32 %v135, %v148
  %v204 = vadd.f32 %v136, %v148
  %v205 = vadd.f32 %v137, %v148
  %v206 = vadd.f32 %v138, %v148
  %v207 = vadd.f32 %v139, %v148
  %v208 = vadd.f32 %v140, %v148
  %v209 = vadd.f32 %v141, %v148
  %v210 = vadd.f32 %v142, %v148
  %v211 = vadd.f32 %v143, %v148
  %v212 = vadd.f32 %v144, %v148
  %v213 = vadd.f32 %v145, %v148
  %v214 = vmax.f32 %v150, 0.0
  %v215 = vmax.f32 %v151, 0.0
  %v216 = vmax.f32 %v152, 0.0
  %v217 = vmax.f32 %v153, 0.0
  %v218 = vmax.f32 %v154, 0.0
  %v219 = vmax.f32 %v155, 0.0
  %v220 = vmax.f32 %v156, 0.0
  %v221 = vmax.f32 %v157, 0.0
  %v222 = vmax.f32 %v158, 0.0
  %v223 = vmax.f32 %v159, 0.0
  %v224 = vmax.f32 %v160, 0.0
  %v225 = vmax.f32 %v161, 0.0
  %v226 = vmax.f32 %v162, 0.0
  %v227 = vmax.f32 %v163, 0.0
  %v228 = vmax.f32 %v164, 0.0
  %v229 = vmax.f32 %v165, 0.0
  %v230 = vmax.f32 %v166, 0.0
  %v231 = vmax.f32 %v167, 0.0
  %v232 = vmax.f32 %v168, 0.0
  %v233 = vmax.f32 %v169, 0.0
  %v234 = vmax.f32 %v170, 0.0
  %v235 = vmax.f32 %v171, 0.0
  %v236 = vmax.f32 %v172, 0.0
  %v237 = vmax.f32 %v173, 0.0
  %v238 = vmax.f32 %v174, 0.0
  %v239 = vmax.f32 %v175, 0.0
  %v240 = vmax.f32 %v176, 0.0
  %v241 = vmax.f32 %v177, 0.0
  %v242 = vmax.f32 %v178, 0.0
  %v243 = vmax.f32 %v179, 0.0
  %v244 = vmax.f32 %v180, 0.0
  %v245 = vmax.f32 %v181, 0.0
  %v246 = vmax.f32 %v182, 0.0
  %v247 = vmax.f32 %v183, 0.0
  %v248 = vmax.f32 %v184, 0.0
  %v249 = vmax.f32 %v185, 0.0
  %v250 = vmax.f32 %v186, 0.0
  %v251 = vmax.f32 %v187, 0.0
  %v252 = vmax.f32 %v188, 0.0
  %v253 = vmax.f32 %v189, 0.0
  %v254 = vmax.f32 %v190, 0.0
  %v255 = vmax.f32 %v191, 0.0
  %v256 = vmax.f32 %v192, 0.0
  %v257 = vmax.f32 %v193, 0.0
  %v258 = vmax.f32 %v194, 0.0
  %v259 = vmax.f32 %v195, 0.0
  %v260 = vmax.f32 %v196, 0.0
  %v261 = vmax.f32 %v197, 0.0
  %v262 = vmax.f32 %v198, 0.0
  %v263 = vmax.f32 %v199, 0.0
  %v264 = vmax.f32 %v200, 0.0
  %v265 = vmax.f32 %v201, 0.0
  %v266 = vmax.f32 %v202, 0.0
  %v267 = vmax.f32 %v203, 0.0
  %v268 = vmax.f32 %v204, 0.0
  %v269 = vmax.f32 %v205, 0.0
  %v270 = vmax.f32 %v206, 0.0
  %v271 = vmax.f32 %v207, 0.0
  %v272 = vmax.f32 %v208, 0.0
  %v273 = vmax.f32 %v209, 0.0
  %v274 = vmax.f32 %v210, 0.0
  %v275 = vmax.f32 %v211, 0.0
  %v276 = vmax.f32 %v212, 0.0
  %v277 = vmax.f32 %v213, 0.0
  %278 = vst [vmem:[%s3] sm:$0xff] %v214
  %279 = vst [vmem:[%s3 + $0x8] sm:$0xff] %v215
  %280 = vst [vmem:[%s3 + $0x10] sm:$0xff] %v216
  %281 = vst [vmem:[%s3 + $0x18] sm:$0xff] %v217
  %282 = vst [vmem:[%s3 + $0x20] sm:$0xff] %v218
  %283 = vst [vmem:[%s3 + $0x28] sm:$0xff] %v219
  %284 = vst [vmem:[%s3 + $0x30] sm:$0xff] %v220
  %285 = vst [vmem:[%s3 + $0x38] sm:$0xff] %v221
  %286 = vst [vmem:[%s3 + $0x40] sm:$0xff] %v222
  %287 = vst [vmem:[%s3 + $0x48] sm:$0xff] %v223
  %288 = vst [vmem:[%s3 + $0x50] sm:$0xff] %v224
  %289 = vst [vmem:[%s3 + $0x58] sm:$0xff] %v225
  %290 = vst [vmem:[%s3 + $0x60] sm:$0xff] %v226
  %291 = vst [vmem:[%s3 + $0x68] sm:$0xff] %v227
  %292 = vst [vmem:[%s3 + $0x70] sm:$0xff] %v228
  %293 = vst [vmem:[%s3 + $0x78] sm:$0xff] %v229
  %294 = vst [vmem:[%s3 + $0x80] sm:$0xff] %v230
  %295 = vst [vmem:[%s3 + $0x88] sm:$0xff] %v231
  %296 = vst [vmem:[%s3 + $0x90] sm:$0xff] %v232
  %297 = vst [vmem:[%s3 + $0x98] sm:$0xff] %v233
  %298 = vst [vmem:[%s3 + $0xa0] sm:$0xff] %v234
  %299 = vst [vmem:[%s3 + $0xa8] sm:$0xff] %v235
  %300 = vst [vmem:[%s3 + $0xb0] sm:$0xff] %v236
  %301 = vst [vmem:[%s3 + $0xb8] sm:$0xff] %v237
  %302 = vst [vmem:[%s3 + $0xc0] sm:$0xff] %v238
  %303 = vst [vmem:[%s3 + $0xc8] sm:$0xff] %v239
  %304 = vst [vmem:[%s3 + $0xd0] sm:$0xff] %v240
  %305 = vst [vmem:[%s3 + $0xd8] sm:$0xff] %v241
  %306 = vst [vmem:[%s3 + $0xe0] sm:$0xff] %v242
  %307 = vst [vmem:[%s3 + $0xe8] sm:$0xff] %v243
  %308 = vst [vmem:[%s3 + $0xf0] sm:$0xff] %v244
  %309 = vst [vmem:[%s3 + $0xf8] sm:$0xff] %v245
  %310 = vst [vmem:[%s3 + $0x100] sm:$0xff] %v246
  %311 = vst [vmem:[%s3 + $0x108] sm:$0xff] %v247
  %312 = vst [vmem:[%s3 + $0x110] sm:$0xff] %v248
  %313 = vst [vmem:[%s3 + $0x118] sm:$0xff] %v249
  %314 = vst [vmem:[%s3 + $0x120] sm:$0xff] %v250
  %315 = vst [vmem:[%s3 + $0x128] sm:$0xff] %v251
  %316 = vst [vmem:[%s3 + $0x130] sm:$0xff] %v252
  %317 = vst [vmem:[%s3 + $0x138] sm:$0xff] %v253
  %318 = vst [vmem:[%s3 + $0x140] sm:$0xff] %v254
  %319 = vst [vmem:[%s3 + $0x148] sm:$0xff] %v255
  %320 = vst [vmem:[%s3 + $0x150] sm:$0xff] %v256
  %321 = vst [vmem:[%s3 + $0x158] sm:$0xff] %v257
  %322 = vst [vmem:[%s3 + $0x160] sm:$0xff] %v258
  %323 = vst [vmem:[%s3 + $0x168] sm:$0xff] %v259
  %324 = vst [vmem:[%s3 + $0x170] sm:$0xff] %v260
  %325 = vst [vmem:[%s3 + $0x178] sm:$0xff] %v261
  %326 = vst [vmem:[%s3 + $0x180] sm:$0xff] %v262
  %327 = vst [vmem:[%s3 + $0x188] sm:$0xff] %v263
  %328 = vst [vmem:[%s3 + $0x190] sm:$0xff] %v264
  %329 = vst [vmem:[%s3 + $0x198] sm:$0xff] %v265
  %330 = vst [vmem:[%s3 + $0x1a0] sm:$0xff] %v266
  %331 = vst [vmem:[%s3 + $0x1a8] sm:$0xff] %v267
  %332 = vst [vmem:[%s3 + $0x1b0] sm:$0xff] %v268
  %333 = vst [vmem:[%s3 + $0x1b8] sm:$0xff] %v269
  %334 = vst [vmem:[%s3 + $0x1c0] sm:$0xff] %v270
  %335 = vst [vmem:[%s3 + $0x1c8] sm:$0xff] %v271
  %336 = vst [vmem:[%s3 + $0x1d0] sm:$0xff] %v272
  %337 = vst [vmem:[%s3 + $0x1d8] sm:$0xff] %v273
  %338 = vst [vmem:[%s3 + $0x1e0] sm:$0xff] %v274
  %339 = vst [vmem:[%s3 + $0x1e8] sm:$0xff] %v275
  %340 = vst [vmem:[%s3 + $0x1f0] sm:$0xff] %v276
  %341 = vst [vmem:[%s3 + $0x1f8] sm:$0xff] %v277
  // Predicated region
  $region14: #{basic_block_forward.5} parent=0 // pred_check
    _
  $region15: #{basic_block_forward.5} parent=0 // pred_check_branch
    %343 = sbr.rel (0) target = $region17
  $region16: #{basic_block_forward.5} parent=0 // pred_region
    _
  $region17: #{basic_block_forward.5} parent=0 // pred_fallthru
    _
  // Predicated region
  $region18: #{basic_block_forward.5} parent=0 // pred_check
    _
  $region19: #{basic_block_forward.5} parent=0 // pred_check_branch
    %345 = sbr.rel (0) target = $region21
  $region20: #{basic_block_forward.5} parent=0 // pred_region
    _
  $region21: #{basic_block_forward.5} parent=0 // pred_fallthru
    _

// kernel: basic_block_forward.4
$region0: #{basic_block_forward.4}
  #allocation0 [shape = 'u32[]', space=smem, size = 0x4, offset = 0x4, fixed_abs, tag = 'smem constant byte address 0x4 - core index']
  #allocation1 [shape = 'u32[72,128]{1,0:T(1,128)}', space=vmem, size = 0x9000, scoped, tag = 'internal scratch']
  %s0 = inlined_call_operand.vmem [shape: f32[512,128], index: 0, kind: input, shape index: {}]
  %s1 = inlined_call_operand.vmem [shape: f32[128,128], index: 1, kind: input, shape index: {}]
  %s2 = inlined_call_operand.vmem [shape: f32[512,128], index: 2, kind: output, shape index: {0}]
  %s3 = inlined_call_operand.vmem [shape: f32[8,128], index: 3, kind: output, shape index: {1}]
  %s4 = inlined_call_operand.vmem [shape: f32[8,128], index: 4, kind: output, shape index: {2}]
  %5 = xla_tuple %s2, %s3, %s4
  %s6 = sld [smem:[#allocation0]]
  $region34: #{basic_block_forward.4} parent=0
    _
  %s8 = ssub.s32 1, %s6
  %s9 = scalar_select 0, %s8, %s6
  // Predicated region
  $region2: #{basic_block_forward.4} parent=0 // pred_check
    _
  $region3: #{basic_block_forward.4} parent=0 // pred_check_branch
    %11 = sbr.rel (0) target = $region5
  $region4: #{basic_block_forward.4} parent=0 // pred_region
    _
  $region5: #{basic_block_forward.4} parent=0 // pred_fallthru
    _
  // Predicated region
  $region6: #{basic_block_forward.4} parent=0 // pred_check
    _
  $region7: #{basic_block_forward.4} parent=0 // pred_check_branch
    %13 = sbr.rel (0) target = $region9
  $region8: #{basic_block_forward.4} parent=0 // pred_region
    _
  $region9: #{basic_block_forward.4} parent=0 // pred_fallthru
    _
  %v14 = vld [vmem:[%s0] sm:$0xff]
  %v15 = vld [vmem:[%s0 + $0x8] sm:$0xff]
  %v16 = vld [vmem:[%s0 + $0x10] sm:$0xff]
  %v17 = vld [vmem:[%s0 + $0x18] sm:$0xff]
  %v18 = vld [vmem:[%s0 + $0x20] sm:$0xff]
  %v19 = vld [vmem:[%s0 + $0x28] sm:$0xff]
  %v20 = vld [vmem:[%s0 + $0x30] sm:$0xff]
  %v21 = vld [vmem:[%s0 + $0x38] sm:$0xff]
  %v22 = vld [vmem:[%s0 + $0x40] sm:$0xff]
  %v23 = vld [vmem:[%s0 + $0x48] sm:$0xff]
  %v24 = vld [vmem:[%s0 + $0x50] sm:$0xff]
  %v25 = vld [vmem:[%s0 + $0x58] sm:$0xff]
  %v26 = vld [vmem:[%s0 + $0x60] sm:$0xff]
  %v27 = vld [vmem:[%s0 + $0x68] sm:$0xff]
  %v28 = vld [vmem:[%s0 + $0x70] sm:$0xff]
  %v29 = vld [vmem:[%s0 + $0x78] sm:$0xff]
  %v30 = vld [vmem:[%s0 + $0x80] sm:$0xff]
  %v31 = vld [vmem:[%s0 + $0x88] sm:$0xff]
  %v32 = vld [vmem:[%s0 + $0x90] sm:$0xff]
  %v33 = vld [vmem:[%s0 + $0x98] sm:$0xff]
  %v34 = vld [vmem:[%s0 + $0xa0] sm:$0xff]
  %v35 = vld [vmem:[%s0 + $0xa8] sm:$0xff]
  %v36 = vld [vmem:[%s0 + $0xb0] sm:$0xff]
  %v37 = vld [vmem:[%s0 + $0xb8] sm:$0xff]
  %v38 = vld [vmem:[%s0 + $0xc0] sm:$0xff]
  %v39 = vld [vmem:[%s0 + $0xc8] sm:$0xff]
  %v40 = vld [vmem:[%s0 + $0xd0] sm:$0xff]
  %v41 = vld [vmem:[%s0 + $0xd8] sm:$0xff]
  %v42 = vld [vmem:[%s0 + $0xe0] sm:$0xff]
  %v43 = vld [vmem:[%s0 + $0xe8] sm:$0xff]
  %v44 = vld [vmem:[%s0 + $0xf0] sm:$0xff]
  %v45 = vld [vmem:[%s0 + $0xf8] sm:$0xff]
  %v46 = vld [vmem:[%s0 + $0x100] sm:$0xff]
  %v47 = vld [vmem:[%s0 + $0x108] sm:$0xff]
  %v48 = vld [vmem:[%s0 + $0x110] sm:$0xff]
  %v49 = vld [vmem:[%s0 + $0x118] sm:$0xff]
  %v50 = vld [vmem:[%s0 + $0x120] sm:$0xff]
  %v51 = vld [vmem:[%s0 + $0x128] sm:$0xff]
  %v52 = vld [vmem:[%s0 + $0x130] sm:$0xff]
  %v53 = vld [vmem:[%s0 + $0x138] sm:$0xff]
  %v54 = vld [vmem:[%s0 + $0x140] sm:$0xff]
  %v55 = vld [vmem:[%s0 + $0x148] sm:$0xff]
  %v56 = vld [vmem:[%s0 + $0x150] sm:$0xff]
  %v57 = vld [vmem:[%s0 + $0x158] sm:$0xff]
  %v58 = vld [vmem:[%s0 + $0x160] sm:$0xff]
  %v59 = vld [vmem:[%s0 + $0x168] sm:$0xff]
  %v60 = vld [vmem:[%s0 + $0x170] sm:$0xff]
  %v61 = vld [vmem:[%s0 + $0x178] sm:$0xff]
  %v62 = vld [vmem:[%s0 + $0x180] sm:$0xff]
  %v63 = vld [vmem:[%s0 + $0x188] sm:$0xff]
  %v64 = vld [vmem:[%s0 + $0x190] sm:$0xff]
  %v65 = vld [vmem:[%s0 + $0x198] sm:$0xff]
  %v66 = vld [vmem:[%s0 + $0x1a0] sm:$0xff]
  %v67 = vld [vmem:[%s0 + $0x1a8] sm:$0xff]
  %v68 = vld [vmem:[%s0 + $0x1b0] sm:$0xff]
  %v69 = vld [vmem:[%s0 + $0x1b8] sm:$0xff]
  %v70 = vld [vmem:[%s0 + $0x1c0] sm:$0xff]
  %v71 = vld [vmem:[%s0 + $0x1c8] sm:$0xff]
  %v72 = vld [vmem:[%s0 + $0x1d0] sm:$0xff]
  %v73 = vld [vmem:[%s0 + $0x1d8] sm:$0xff]
  %v74 = vld [vmem:[%s0 + $0x1e0] sm:$0xff]
  %v75 = vld [vmem:[%s0 + $0x1e8] sm:$0xff]
  %v76 = vld [vmem:[%s0 + $0x1f0] sm:$0xff]
  %v77 = vld [vmem:[%s0 + $0x1f8] sm:$0xff]
  %v78 = vld [vmem:[%s1] sm:$0xff]
  %v79 = vld [vmem:[%s1 + $0x8] sm:$0xff]
  %v80 = vld [vmem:[%s1 + $0x10] sm:$0xff]
  %v81 = vld [vmem:[%s1 + $0x18] sm:$0xff]
  %v82 = vld [vmem:[%s1 + $0x20] sm:$0xff]
  %v83 = vld [vmem:[%s1 + $0x28] sm:$0xff]
  %v84 = vld [vmem:[%s1 + $0x30] sm:$0xff]
  %v85 = vld [vmem:[%s1 + $0x38] sm:$0xff]
  %v86 = vld [vmem:[%s1 + $0x40] sm:$0xff]
  %v87 = vld [vmem:[%s1 + $0x48] sm:$0xff]
  %v88 = vld [vmem:[%s1 + $0x50] sm:$0xff]
  %v89 = vld [vmem:[%s1 + $0x58] sm:$0xff]
  %v90 = vld [vmem:[%s1 + $0x60] sm:$0xff]
  %v91 = vld [vmem:[%s1 + $0x68] sm:$0xff]
  %v92 = vld [vmem:[%s1 + $0x70] sm:$0xff]
  %v93 = vld [vmem:[%s1 + $0x78] sm:$0xff]
  %94 = vmatpush.msra.mxu0 %v93
  %95 = vmatpush.msra.mxu0 %v92
  %96 = vmatpush.msra.mxu0 %v91
  %97 = vmatpush.msra.mxu0 %v90
  %98 = vmatpush.msra.mxu0 %v89
  %99 = vmatpush.msra.mxu0 %v88
  %100 = vmatpush.msra.mxu0 %v87
  %101 = vmatpush.msra.mxu0 %v86
  %102 = vmatpush.msra.mxu0 %v85
  %103 = vmatpush.msra.mxu0 %v84
  %104 = vmatpush.msra.mxu0 %v83
  %105 = vmatpush.msra.mxu0 %v82
  %106 = vmatpush.msra.mxu0 %v81
  %107 = vmatpush.msra.mxu0 %v80
  %108 = vmatpush.msra.mxu0 %v79
  %109 = vmatpush.msra.mxu0 %v78
  %110 = vmatmul.f32.gmra.mxu0 %v14
  %v111 = vpop.f32.mrf.mxu0
  %v112 = vadd.f32 0.0, %v111
  %113 = vmatmul.f32.gmra.mxu0 %v15
  %v114 = vpop.f32.mrf.mxu0
  %v115 = vadd.f32 0.0, %v114
  %116 = vmatmul.f32.gmra.mxu0 %v16
  %v117 = vpop.f32.mrf.mxu0
  %v118 = vadd.f32 0.0, %v117
  %119 = vmatmul.f32.gmra.mxu0 %v17
  %v120 = vpop.f32.mrf.mxu0
  %v121 = vadd.f32 0.0, %v120
  %122 = vmatmul.f32.gmra.mxu0 %v18
  %v123 = vpop.f32.mrf.mxu0
  %v124 = vadd.f32 0.0, %v123
  %125 = vmatmul.f32.gmra.mxu0 %v19
  %v126 = vpop.f32.mrf.mxu0
  %v127 = vadd.f32 0.0, %v126
  %128 = vmatmul.f32.gmra.mxu0 %v20
  %v129 = vpop.f32.mrf.mxu0
  %v130 = vadd.f32 0.0, %v129
  %131 = vmatmul.f32.gmra.mxu0 %v21
  %v132 = vpop.f32.mrf.mxu0
  %v133 = vadd.f32 0.0, %v132
  %134 = vmatmul.f32.gmra.mxu0 %v22
  %v135 = vpop.f32.mrf.mxu0
  %v136 = vadd.f32 0.0, %v135
  %137 = vmatmul.f32.gmra.mxu0 %v23
  %v138 = vpop.f32.mrf.mxu0
  %v139 = vadd.f32 0.0, %v138
  %140 = vmatmul.f32.gmra.mxu0 %v24
  %v141 = vpop.f32.mrf.mxu0
  %v142 = vadd.f32 0.0, %v141
  %143 = vmatmul.f32.gmra.mxu0 %v25
  %v144 = vpop.f32.mrf.mxu0
  %v145 = vadd.f32 0.0, %v144
  %146 = vmatmul.f32.gmra.mxu0 %v26
  %v147 = vpop.f32.mrf.mxu0
  %v148 = vadd.f32 0.0, %v147
  %149 = vmatmul.f32.gmra.mxu0 %v27
  %v150 = vpop.f32.mrf.mxu0
  %v151 = vadd.f32 0.0, %v150
  %152 = vmatmul.f32.gmra.mxu0 %v28
  %v153 = vpop.f32.mrf.mxu0
  %v154 = vadd.f32 0.0, %v153
  %155 = vmatmul.f32.gmra.mxu0 %v29
  %v156 = vpop.f32.mrf.mxu0
  %v157 = vadd.f32 0.0, %v156
  %158 = vmatmul.f32.gmra.mxu0 %v30
  %v159 = vpop.f32.mrf.mxu0
  %v160 = vadd.f32 0.0, %v159
  %161 = vmatmul.f32.gmra.mxu0 %v31
  %v162 = vpop.f32.mrf.mxu0
  %v163 = vadd.f32 0.0, %v162
  %164 = vmatmul.f32.gmra.mxu0 %v32
  %v165 = vpop.f32.mrf.mxu0
  %v166 = vadd.f32 0.0, %v165
  %167 = vmatmul.f32.gmra.mxu0 %v33
  %v168 = vpop.f32.mrf.mxu0
  %v169 = vadd.f32 0.0, %v168
  %170 = vmatmul.f32.gmra.mxu0 %v34
  %v171 = vpop.f32.mrf.mxu0
  %v172 = vadd.f32 0.0, %v171
  %173 = vmatmul.f32.gmra.mxu0 %v35
  %v174 = vpop.f32.mrf.mxu0
  %v175 = vadd.f32 0.0, %v174
  %176 = vmatmul.f32.gmra.mxu0 %v36
  %v177 = vpop.f32.mrf.mxu0
  %v178 = vadd.f32 0.0, %v177
  %179 = vmatmul.f32.gmra.mxu0 %v37
  %v180 = vpop.f32.mrf.mxu0
  %v181 = vadd.f32 0.0, %v180
  %182 = vmatmul.f32.gmra.mxu0 %v38
  %v183 = vpop.f32.mrf.mxu0
  %v184 = vadd.f32 0.0, %v183
  %185 = vmatmul.f32.gmra.mxu0 %v39
  %v186 = vpop.f32.mrf.mxu0
  %v187 = vadd.f32 0.0, %v186
  %188 = vmatmul.f32.gmra.mxu0 %v40
  %v189 = vpop.f32.mrf.mxu0
  %v190 = vadd.f32 0.0, %v189
  %191 = vmatmul.f32.gmra.mxu0 %v41
  %v192 = vpop.f32.mrf.mxu0
  %v193 = vadd.f32 0.0, %v192
  %194 = vmatmul.f32.gmra.mxu0 %v42
  %v195 = vpop.f32.mrf.mxu0
  %v196 = vadd.f32 0.0, %v195
  %197 = vmatmul.f32.gmra.mxu0 %v43
  %v198 = vpop.f32.mrf.mxu0
  %v199 = vadd.f32 0.0, %v198
  %200 = vmatmul.f32.gmra.mxu0 %v44
  %v201 = vpop.f32.mrf.mxu0
  %v202 = vadd.f32 0.0, %v201
  %203 = vmatmul.f32.gmra.mxu0 %v45
  %v204 = vpop.f32.mrf.mxu0
  %v205 = vadd.f32 0.0, %v204
  %206 = vmatmul.f32.gmra.mxu0 %v46
  %v207 = vpop.f32.mrf.mxu0
  %v208 = vadd.f32 0.0, %v207
  %209 = vmatmul.f32.gmra.mxu0 %v47
  %v210 = vpop.f32.mrf.mxu0
  %v211 = vadd.f32 0.0, %v210
  %212 = vmatmul.f32.gmra.mxu0 %v48
  %v213 = vpop.f32.mrf.mxu0
  %v214 = vadd.f32 0.0, %v213
  %215 = vmatmul.f32.gmra.mxu0 %v49
  %v216 = vpop.f32.mrf.mxu0
  %v217 = vadd.f32 0.0, %v216
  %218 = vmatmul.f32.gmra.mxu0 %v50
  %v219 = vpop.f32.mrf.mxu0
  %v220 = vadd.f32 0.0, %v219
  %221 = vmatmul.f32.gmra.mxu0 %v51
  %v222 = vpop.f32.mrf.mxu0
  %v223 = vadd.f32 0.0, %v222
  %224 = vmatmul.f32.gmra.mxu0 %v52
  %v225 = vpop.f32.mrf.mxu0
  %v226 = vadd.f32 0.0, %v225
  %227 = vmatmul.f32.gmra.mxu0 %v53
  %v228 = vpop.f32.mrf.mxu0
  %v229 = vadd.f32 0.0, %v228
  %230 = vmatmul.f32.gmra.mxu0 %v54
  %v231 = vpop.f32.mrf.mxu0
  %v232 = vadd.f32 0.0, %v231
  %233 = vmatmul.f32.gmra.mxu0 %v55
  %v234 = vpop.f32.mrf.mxu0
  %v235 = vadd.f32 0.0, %v234
  %236 = vmatmul.f32.gmra.mxu0 %v56
  %v237 = vpop.f32.mrf.mxu0
  %v238 = vadd.f32 0.0, %v237
  %239 = vmatmul.f32.gmra.mxu0 %v57
  %v240 = vpop.f32.mrf.mxu0
  %v241 = vadd.f32 0.0, %v240
  %242 = vmatmul.f32.gmra.mxu0 %v58
  %v243 = vpop.f32.mrf.mxu0
  %v244 = vadd.f32 0.0, %v243
  %245 = vmatmul.f32.gmra.mxu0 %v59
  %v246 = vpop.f32.mrf.mxu0
  %v247 = vadd.f32 0.0, %v246
  %248 = vmatmul.f32.gmra.mxu0 %v60
  %v249 = vpop.f32.mrf.mxu0
  %v250 = vadd.f32 0.0, %v249
  %251 = vmatmul.f32.gmra.mxu0 %v61
  %v252 = vpop.f32.mrf.mxu0
  %v253 = vadd.f32 0.0, %v252
  %254 = vmatmul.f32.gmra.mxu0 %v62
  %v255 = vpop.f32.mrf.mxu0
  %v256 = vadd.f32 0.0, %v255
  %257 = vmatmul.f32.gmra.mxu0 %v63
  %v258 = vpop.f32.mrf.mxu0
  %v259 = vadd.f32 0.0, %v258
  %260 = vmatmul.f32.gmra.mxu0 %v64
  %v261 = vpop.f32.mrf.mxu0
  %v262 = vadd.f32 0.0, %v261
  %263 = vmatmul.f32.gmra.mxu0 %v65
  %v264 = vpop.f32.mrf.mxu0
  %v265 = vadd.f32 0.0, %v264
  %266 = vmatmul.f32.gmra.mxu0 %v66
  %v267 = vpop.f32.mrf.mxu0
  %v268 = vadd.f32 0.0, %v267
  %269 = vmatmul.f32.gmra.mxu0 %v67
  %v270 = vpop.f32.mrf.mxu0
  %v271 = vadd.f32 0.0, %v270
  %272 = vmatmul.f32.gmra.mxu0 %v68
  %v273 = vpop.f32.mrf.mxu0
  %v274 = vadd.f32 0.0, %v273
  %275 = vmatmul.f32.gmra.mxu0 %v69
  %v276 = vpop.f32.mrf.mxu0
  %v277 = vadd.f32 0.0, %v276
  %278 = vmatmul.f32.gmra.mxu0 %v70
  %v279 = vpop.f32.mrf.mxu0
  %v280 = vadd.f32 0.0, %v279
  %281 = vmatmul.f32.gmra.mxu0 %v71
  %v282 = vpop.f32.mrf.mxu0
  %v283 = vadd.f32 0.0, %v282
  %284 = vmatmul.f32.gmra.mxu0 %v72
  %v285 = vpop.f32.mrf.mxu0
  %v286 = vadd.f32 0.0, %v285
  %287 = vmatmul.f32.gmra.mxu0 %v73
  %v288 = vpop.f32.mrf.mxu0
  %v289 = vadd.f32 0.0, %v288
  %290 = vmatmul.f32.gmra.mxu0 %v74
  %v291 = vpop.f32.mrf.mxu0
  %v292 = vadd.f32 0.0, %v291
  %293 = vmatmul.f32.gmra.mxu0 %v75
  %v294 = vpop.f32.mrf.mxu0
  %v295 = vadd.f32 0.0, %v294
  %296 = vmatmul.f32.gmra.mxu0 %v76
  %v297 = vpop.f32.mrf.mxu0
  %v298 = vadd.f32 0.0, %v297
  %299 = vmatmul.f32.gmra.mxu0 %v77
  %v300 = vpop.f32.mrf.mxu0
  %v301 = vadd.f32 0.0, %v300
  %302 = vdwg.mxu0
  %303 = vst [vmem:[%s2] sm:$0xff] %v112
  %304 = vst [vmem:[%s2 + $0x8] sm:$0xff] %v115
  %305 = vst [vmem:[%s2 + $0x10] sm:$0xff] %v118
  %306 = vst [vmem:[%s2 + $0x18] sm:$0xff] %v121
  %307 = vst [vmem:[%s2 + $0x20] sm:$0xff] %v124
  %308 = vst [vmem:[%s2 + $0x28] sm:$0xff] %v127
  %309 = vst [vmem:[%s2 + $0x30] sm:$0xff] %v130
  %310 = vst [vmem:[%s2 + $0x38] sm:$0xff] %v133
  %311 = vst [vmem:[%s2 + $0x40] sm:$0xff] %v136
  %312 = vst [vmem:[%s2 + $0x48] sm:$0xff] %v139
  %313 = vst [vmem:[%s2 + $0x50] sm:$0xff] %v142
  %314 = vst [vmem:[%s2 + $0x58] sm:$0xff] %v145
  %315 = vst [vmem:[%s2 + $0x60] sm:$0xff] %v148
  %316 = vst [vmem:[%s2 + $0x68] sm:$0xff] %v151
  %317 = vst [vmem:[%s2 + $0x70] sm:$0xff] %v154
  %318 = vst [vmem:[%s2 + $0x78] sm:$0xff] %v157
  %319 = vst [vmem:[%s2 + $0x80] sm:$0xff] %v160
  %320 = vst [vmem:[%s2 + $0x88] sm:$0xff] %v163
  %321 = vst [vmem:[%s2 + $0x90] sm:$0xff] %v166
  %322 = vst [vmem:[%s2 + $0x98] sm:$0xff] %v169
  %323 = vst [vmem:[%s2 + $0xa0] sm:$0xff] %v172
  %324 = vst [vmem:[%s2 + $0xa8] sm:$0xff] %v175
  %325 = vst [vmem:[%s2 + $0xb0] sm:$0xff] %v178
  %326 = vst [vmem:[%s2 + $0xb8] sm:$0xff] %v181
  %327 = vst [vmem:[%s2 + $0xc0] sm:$0xff] %v184
  %328 = vst [vmem:[%s2 + $0xc8] sm:$0xff] %v187
  %329 = vst [vmem:[%s2 + $0xd0] sm:$0xff] %v190
  %330 = vst [vmem:[%s2 + $0xd8] sm:$0xff] %v193
  %331 = vst [vmem:[%s2 + $0xe0] sm:$0xff] %v196
  %332 = vst [vmem:[%s2 + $0xe8] sm:$0xff] %v199
  %333 = vst [vmem:[%s2 + $0xf0] sm:$0xff] %v202
  %334 = vst [vmem:[%s2 + $0xf8] sm:$0xff] %v205
  %335 = vst [vmem:[%s2 + $0x100] sm:$0xff] %v208
  %336 = vst [vmem:[%s2 + $0x108] sm:$0xff] %v211
  %337 = vst [vmem:[%s2 + $0x110] sm:$0xff] %v214
  %338 = vst [vmem:[%s2 + $0x118] sm:$0xff] %v217
  %339 = vst [vmem:[%s2 + $0x120] sm:$0xff] %v220
  %340 = vst [vmem:[%s2 + $0x128] sm:$0xff] %v223
  %341 = vst [vmem:[%s2 + $0x130] sm:$0xff] %v226
  %342 = vst [vmem:[%s2 + $0x138] sm:$0xff] %v229
  %343 = vst [vmem:[%s2 + $0x140] sm:$0xff] %v232
  %344 = vst [vmem:[%s2 + $0x148] sm:$0xff] %v235
  %345 = vst [vmem:[%s2 + $0x150] sm:$0xff] %v238
  %346 = vst [vmem:[%s2 + $0x158] sm:$0xff] %v241
  %347 = vst [vmem:[%s2 + $0x160] sm:$0xff] %v244
  %348 = vst [vmem:[%s2 + $0x168] sm:$0xff] %v247
  %349 = vst [vmem:[%s2 + $0x170] sm:$0xff] %v250
  %350 = vst [vmem:[%s2 + $0x178] sm:$0xff] %v253
  %351 = vst [vmem:[%s2 + $0x180] sm:$0xff] %v256
  %352 = vst [vmem:[%s2 + $0x188] sm:$0xff] %v259
  %353 = vst [vmem:[%s2 + $0x190] sm:$0xff] %v262
  %354 = vst [vmem:[%s2 + $0x198] sm:$0xff] %v265
  %355 = vst [vmem:[%s2 + $0x1a0] sm:$0xff] %v268
  %356 = vst [vmem:[%s2 + $0x1a8] sm:$0xff] %v271
  %357 = vst [vmem:[%s2 + $0x1b0] sm:$0xff] %v274
  %358 = vst [vmem:[%s2 + $0x1b8] sm:$0xff] %v277
  %359 = vst [vmem:[%s2 + $0x1c0] sm:$0xff] %v280
  %360 = vst [vmem:[%s2 + $0x1c8] sm:$0xff] %v283
  %361 = vst [vmem:[%s2 + $0x1d0] sm:$0xff] %v286
  %362 = vst [vmem:[%s2 + $0x1d8] sm:$0xff] %v289
  %363 = vst [vmem:[%s2 + $0x1e0] sm:$0xff] %v292
  %364 = vst [vmem:[%s2 + $0x1e8] sm:$0xff] %v295
  %365 = vst [vmem:[%s2 + $0x1f0] sm:$0xff] %v298
  %366 = vst [vmem:[%s2 + $0x1f8] sm:$0xff] %v301
  %v367 = vadd.f32 %v112, %v115
  %v368 = vadd.f32 %v367, %v118
  %v369 = vadd.f32 %v368, %v121
  %v370 = vadd.f32 %v369, %v124
  %v371 = vadd.f32 %v370, %v127
  %v372 = vadd.f32 %v371, %v130
  %v373 = vadd.f32 %v372, %v133
  %v374 = vadd.f32 %v373, %v136
  %v375 = vadd.f32 %v374, %v139
  %v376 = vadd.f32 %v375, %v142
  %v377 = vadd.f32 %v376, %v145
  %v378 = vadd.f32 %v377, %v148
  %v379 = vadd.f32 %v378, %v151
  %v380 = vadd.f32 %v379, %v154
  %v381 = vadd.f32 %v380, %v157
  %v382 = vadd.f32 %v381, %v160
  %v383 = vadd.f32 %v382, %v163
  %v384 = vadd.f32 %v383, %v166
  %v385 = vadd.f32 %v384, %v169
  %v386 = vadd.f32 %v385, %v172
  %v387 = vadd.f32 %v386, %v175
  %v388 = vadd.f32 %v387, %v178
  %v389 = vadd.f32 %v388, %v181
  %v390 = vadd.f32 %v389, %v184
  %v391 = vadd.f32 %v390, %v187
  %v392 = vadd.f32 %v391, %v190
  %v393 = vadd.f32 %v392, %v193
  %v394 = vadd.f32 %v393, %v196
  %v395 = vadd.f32 %v394, %v199
  %v396 = vadd.f32 %v395, %v202
  %v397 = vadd.f32 %v396, %v205
  %v398 = vadd.f32 %v397, %v208
  %v399 = vadd.f32 %v398, %v211
  %v400 = vadd.f32 %v399, %v214
  %v401 = vadd.f32 %v400, %v217
  %v402 = vadd.f32 %v401, %v220
  %v403 = vadd.f32 %v402, %v223
  %v404 = vadd.f32 %v403, %v226
  %v405 = vadd.f32 %v404, %v229
  %v406 = vadd.f32 %v405, %v232
  %v407 = vadd.f32 %v406, %v235
  %v408 = vadd.f32 %v407, %v238
  %v409 = vadd.f32 %v408, %v241
  %v410 = vadd.f32 %v409, %v244
  %v411 = vadd.f32 %v410, %v247
  %v412 = vadd.f32 %v411, %v250
  %v413 = vadd.f32 %v412, %v253
  %v414 = vadd.f32 %v413, %v256
  %v415 = vadd.f32 %v414, %v259
  %v416 = vadd.f32 %v415, %v262
  %v417 = vadd.f32 %v416, %v265
  %v418 = vadd.f32 %v417, %v268
  %v419 = vadd.f32 %v418, %v271
  %v420 = vadd.f32 %v419, %v274
  %v421 = vadd.f32 %v420, %v277
  %v422 = vadd.f32 %v421, %v280
  %v423 = vadd.f32 %v422, %v283
  %v424 = vadd.f32 %v423, %v286
  %v425 = vadd.f32 %v424, %v289
  %v426 = vadd.f32 %v425, %v292
  %v427 = vadd.f32 %v426, %v295
  %v428 = vadd.f32 %v427, %v298
  %v429 = vadd.f32 %v428, %v301
  %430 = vst [vmem:[%s3] sm:$0xff] %v429
  %v431 = vmul.f32 %v112, %v112
  %v432 = vmul.f32 %v115, %v115
  %v433 = vmul.f32 %v118, %v118
  %v434 = vmul.f32 %v121, %v121
  %v435 = vmul.f32 %v124, %v124
  %v436 = vmul.f32 %v127, %v127
  %v437 = vmul.f32 %v130, %v130
  %v438 = vmul.f32 %v133, %v133
  %v439 = vmul.f32 %v136, %v136
  %v440 = vmul.f32 %v139, %v139
  %v441 = vmul.f32 %v142, %v142
  %v442 = vmul.f32 %v145, %v145
  %v443 = vmul.f32 %v148, %v148
  %v444 = vmul.f32 %v151, %v151
  %v445 = vmul.f32 %v154, %v154
  %v446 = vmul.f32 %v157, %v157
  %v447 = vmul.f32 %v160, %v160
  %v448 = vmul.f32 %v163, %v163
  %v449 = vmul.f32 %v166, %v166
  %v450 = vmul.f32 %v169, %v169
  %v451 = vmul.f32 %v172, %v172
  %v452 = vmul.f32 %v175, %v175
  %v453 = vmul.f32 %v178, %v178
  %v454 = vmul.f32 %v181, %v181
  %v455 = vmul.f32 %v184, %v184
  %v456 = vmul.f32 %v187, %v187
  %v457 = vmul.f32 %v190, %v190
  %v458 = vmul.f32 %v193, %v193
  %v459 = vmul.f32 %v196, %v196
  %v460 = vmul.f32 %v199, %v199
  %v461 = vmul.f32 %v202, %v202
  %v462 = vmul.f32 %v205, %v205
  %v463 = vmul.f32 %v208, %v208
  %v464 = vmul.f32 %v211, %v211
  %v465 = vmul.f32 %v214, %v214
  %v466 = vmul.f32 %v217, %v217
  %v467 = vmul.f32 %v220, %v220
  %v468 = vmul.f32 %v223, %v223
  %v469 = vmul.f32 %v226, %v226
  %v470 = vmul.f32 %v229, %v229
  %v471 = vmul.f32 %v232, %v232
  %v472 = vmul.f32 %v235, %v235
  %v473 = vmul.f32 %v238, %v238
  %v474 = vmul.f32 %v241, %v241
  %v475 = vmul.f32 %v244, %v244
  %v476 = vmul.f32 %v247, %v247
  %v477 = vmul.f32 %v250, %v250
  %v478 = vmul.f32 %v253, %v253
  %v479 = vmul.f32 %v256, %v256
  %v480 = vmul.f32 %v259, %v259
  %v481 = vmul.f32 %v262, %v262
  %v482 = vmul.f32 %v265, %v265
  %v483 = vmul.f32 %v268, %v268
  %v484 = vmul.f32 %v271, %v271
  %v485 = vmul.f32 %v274, %v274
  %v486 = vmul.f32 %v277, %v277
  %v487 = vmul.f32 %v280, %v280
  %v488 = vmul.f32 %v283, %v283
  %v489 = vmul.f32 %v286, %v286
  %v490 = vmul.f32 %v289, %v289
  %v491 = vmul.f32 %v292, %v292
  %v492 = vmul.f32 %v295, %v295
  %v493 = vmul.f32 %v298, %v298
  %v494 = vmul.f32 %v301, %v301
  %v495 = vadd.f32 %v431, %v432
  %v496 = vadd.f32 %v495, %v433
  %v497 = vadd.f32 %v496, %v434
  %v498 = vadd.f32 %v497, %v435
  %v499 = vadd.f32 %v498, %v436
  %v500 = vadd.f32 %v499, %v437
  %v501 = vadd.f32 %v500, %v438
  %v502 = vadd.f32 %v501, %v439
  %v503 = vadd.f32 %v502, %v440
  %v504 = vadd.f32 %v503, %v441
  %v505 = vadd.f32 %v504, %v442
  %v506 = vadd.f32 %v505, %v443
  %v507 = vadd.f32 %v506, %v444
  %v508 = vadd.f32 %v507, %v445
  %v509 = vadd.f32 %v508, %v446
  %v510 = vadd.f32 %v509, %v447
  %v511 = vadd.f32 %v510, %v448
  %v512 = vadd.f32 %v511, %v449
  %v513 = vadd.f32 %v512, %v450
  %v514 = vadd.f32 %v513, %v451
  %v515 = vadd.f32 %v514, %v452
  %v516 = vadd.f32 %v515, %v453
  %v517 = vadd.f32 %v516, %v454
  %v518 = vadd.f32 %v517, %v455
  %v519 = vadd.f32 %v518, %v456
  %v520 = vadd.f32 %v519, %v457
  %v521 = vadd.f32 %v520, %v458
  %v522 = vadd.f32 %v521, %v459
  %v523 = vadd.f32 %v522, %v460
  %v524 = vadd.f32 %v523, %v461
  %v525 = vadd.f32 %v524, %v462
  %v526 = vadd.f32 %v525, %v463
  %v527 = vadd.f32 %v526, %v464
  %v528 = vadd.f32 %v527, %v465
  %v529 = vadd.f32 %v528, %v466
  %v530 = vadd.f32 %v529, %v467
  %v531 = vadd.f32 %v530, %v468
  %v532 = vadd.f32 %v531, %v469
  %v533 = vadd.f32 %v532, %v470
  %v534 = vadd.f32 %v533, %v471
  %v535 = vadd.f32 %v534, %v472
  %v536 = vadd.f32 %v535, %v473
  %v537 = vadd.f32 %v536, %v474
  %v538 = vadd.f32 %v537, %v475
  %v539 = vadd.f32 %v538, %v476
  %v540 = vadd.f32 %v539, %v477
  %v541 = vadd.f32 %v540, %v478
  %v542 = vadd.f32 %v541, %v479
  %v543 = vadd.f32 %v542, %v480
  %v544 = vadd.f32 %v543, %v481
  %v545 = vadd.f32 %v544, %v482
  %v546 = vadd.f32 %v545, %v483
  %v547 = vadd.f32 %v546, %v484
  %v548 = vadd.f32 %v547, %v485
  %v549 = vadd.f32 %v548, %v486
  %v550 = vadd.f32 %v549, %v487
  %v551 = vadd.f32 %v550, %v488
  %v552 = vadd.f32 %v551, %v489
  %v553 = vadd.f32 %v552, %v490
  %v554 = vadd.f32 %v553, %v491
  %v555 = vadd.f32 %v554, %v492
  %v556 = vadd.f32 %v555, %v493
  %v557 = vadd.f32 %v556, %v494
  %558 = vst [vmem:[%s4] sm:$0xff] %v557
  // Predicated region
  $region10: #{basic_block_forward.4} parent=0 // pred_check
    _
  $region11: #{basic_block_forward.4} parent=0 // pred_check_branch
    %560 = sbr.rel (0) target = $region13
  $region12: #{basic_block_forward.4} parent=0 // pred_region
    _
  $region13: #{basic_block_forward.4} parent=0 // pred_fallthru
    _
  // Predicated region
  $region14: #{basic_block_forward.4} parent=0 // pred_check
    _
  $region15: #{basic_block_forward.4} parent=0 // pred_check_branch
    %562 = sbr.rel (0) target = $region17
  $region16: #{basic_block_forward.4} parent=0 // pred_region
    _
  $region17: #{basic_block_forward.4} parent=0 // pred_fallthru
    _
  // Predicated region
  $region18: #{basic_block_forward.4} parent=0 // pred_check
    _
  $region19: #{basic_block_forward.4} parent=0 // pred_check_branch
    %564 = sbr.rel (0) target = $region21
  $region20: #{basic_block_forward.4} parent=0 // pred_region
    _
  $region21: #{basic_block_forward.4} parent=0 // pred_fallthru
    _
  // Predicated region
  $region22: #{basic_block_forward.4} parent=0 // pred_check
    _
  $region23: #{basic_block_forward.4} parent=0 // pred_check_branch
    %566 = sbr.rel (0) target = $region25
  $region24: #{basic_block_forward.4} parent=0 // pred_region
    _
  $region25: #{basic_block_forward.4} parent=0 // pred_fallthru
    _
  // Predicated region
  $region26: #{basic_block_forward.4} parent=0 // pred_check
    _
  $region27: #{basic_block_forward.4} parent=0 // pred_check_branch
    %568 = sbr.rel (0) target = $region29
  $region28: #{basic_block_forward.4} parent=0 // pred_region
    _
  $region29: #{basic_block_forward.4} parent=0 // pred_fallthru
    _
  // Predicated region
  $region30: #{basic_block_forward.4} parent=0 // pred_check
    _
  $region31: #{basic_block_forward.4} parent=0 // pred_check_branch
    %570 = sbr.rel (0) target = $region33
  $region32: #{basic_block_forward.4} parent=0 // pred_region
    _
  $region33: #{basic_block_forward.4} parent=0 // pred_fallthru
    _

// kernel: basic_block_forward.6
$region0: #{basic_block_forward.6}
  #allocation0 [shape = 'u32[]', space=smem, size = 0x4, offset = 0x4, fixed_abs, tag = 'smem constant byte address 0x4 - core index']
  #allocation1 [shape = 'u32[72,128]{1,0:T(1,128)}', space=vmem, size = 0x9000, scoped, tag = 'internal scratch']
  %s0 = inlined_call_operand.vmem [shape: f32[512,128], index: 0, kind: input, shape index: {}]
  %s1 = inlined_call_operand.vmem [shape: f32[128,128], index: 1, kind: input, shape index: {}]
  %s2 = inlined_call_operand.vmem [shape: f32[512,128], index: 2, kind: input, shape index: {}]
  %s3 = inlined_call_operand.vmem [shape: f32[128,128], index: 3, kind: input, shape index: {}]
  %s4 = inlined_call_operand.vmem [shape: f32[512,128], index: 4, kind: output, shape index: {0}]
  %s5 = inlined_call_operand.vmem [shape: f32[8,128], index: 5, kind: output, shape index: {1}]
  %s6 = inlined_call_operand.vmem [shape: f32[8,128], index: 6, kind: output, shape index: {2}]
  %s7 = inlined_call_operand.vmem [shape: f32[8,128], index: 7, kind: output, shape index: {3}]
  %s8 = inlined_call_operand.vmem [shape: f32[8,128], index: 8, kind: output, shape index: {4}]
  %9 = xla_tuple %s4, %s5, %s6, %s7, %s8
  %s10 = sld [smem:[#allocation0]]
  $region58: #{basic_block_forward.6} parent=0
    _
  %s12 = ssub.s32 1, %s10
  %s13 = scalar_select 0, %s12, %s10
  // Predicated region
  $region2: #{basic_block_forward.6} parent=0 // pred_check
    _
  $region3: #{basic_block_forward.6} parent=0 // pred_check_branch
    %15 = sbr.rel (0) target = $region5
  $region4: #{basic_block_forward.6} parent=0 // pred_region
    _
  $region5: #{basic_block_forward.6} parent=0 // pred_fallthru
    _
  // Predicated region
  $region6: #{basic_block_forward.6} parent=0 // pred_check
    _
  $region7: #{basic_block_forward.6} parent=0 // pred_check_branch
    %17 = sbr.rel (0) target = $region9
  $region8: #{basic_block_forward.6} parent=0 // pred_region
    _
  $region9: #{basic_block_forward.6} parent=0 // pred_fallthru
    _
  // Predicated region
  $region10: #{basic_block_forward.6} parent=0 // pred_check
    _
  $region11: #{basic_block_forward.6} parent=0 // pred_check_branch
    %19 = sbr.rel (0) target = $region13
  $region12: #{basic_block_forward.6} parent=0 // pred_region
    _
  $region13: #{basic_block_forward.6} parent=0 // pred_fallthru
    _
  // Predicated region
  $region14: #{basic_block_forward.6} parent=0 // pred_check
    _
  $region15: #{basic_block_forward.6} parent=0 // pred_check_branch
    %21 = sbr.rel (0) target = $region17
  $region16: #{basic_block_forward.6} parent=0 // pred_region
    _
  $region17: #{basic_block_forward.6} parent=0 // pred_fallthru
    _
  %v22 = vld [vmem:[%s0] sm:$0xff]
  %v23 = vld [vmem:[%s0 + $0x8] sm:$0xff]
  %v24 = vld [vmem:[%s0 + $0x10] sm:$0xff]
  %v25 = vld [vmem:[%s0 + $0x18] sm:$0xff]
  %v26 = vld [vmem:[%s0 + $0x20] sm:$0xff]
  %v27 = vld [vmem:[%s0 + $0x28] sm:$0xff]
  %v28 = vld [vmem:[%s0 + $0x30] sm:$0xff]
  %v29 = vld [vmem:[%s0 + $0x38] sm:$0xff]
  %v30 = vld [vmem:[%s0 + $0x40] sm:$0xff]
  %v31 = vld [vmem:[%s0 + $0x48] sm:$0xff]
  %v32 = vld [vmem:[%s0 + $0x50] sm:$0xff]
  %v33 = vld [vmem:[%s0 + $0x58] sm:$0xff]
  %v34 = vld [vmem:[%s0 + $0x60] sm:$0xff]
  %v35 = vld [vmem:[%s0 + $0x68] sm:$0xff]
  %v36 = vld [vmem:[%s0 + $0x70] sm:$0xff]
  %v37 = vld [vmem:[%s0 + $0x78] sm:$0xff]
  %v38 = vld [vmem:[%s0 + $0x80] sm:$0xff]
  %v39 = vld [vmem:[%s0 + $0x88] sm:$0xff]
  %v40 = vld [vmem:[%s0 + $0x90] sm:$0xff]
  %v41 = vld [vmem:[%s0 + $0x98] sm:$0xff]
  %v42 = vld [vmem:[%s0 + $0xa0] sm:$0xff]
  %v43 = vld [vmem:[%s0 + $0xa8] sm:$0xff]
  %v44 = vld [vmem:[%s0 + $0xb0] sm:$0xff]
  %v45 = vld [vmem:[%s0 + $0xb8] sm:$0xff]
  %v46 = vld [vmem:[%s0 + $0xc0] sm:$0xff]
  %v47 = vld [vmem:[%s0 + $0xc8] sm:$0xff]
  %v48 = vld [vmem:[%s0 + $0xd0] sm:$0xff]
  %v49 = vld [vmem:[%s0 + $0xd8] sm:$0xff]
  %v50 = vld [vmem:[%s0 + $0xe0] sm:$0xff]
  %v51 = vld [vmem:[%s0 + $0xe8] sm:$0xff]
  %v52 = vld [vmem:[%s0 + $0xf0] sm:$0xff]
  %v53 = vld [vmem:[%s0 + $0xf8] sm:$0xff]
  %v54 = vld [vmem:[%s0 + $0x100] sm:$0xff]
  %v55 = vld [vmem:[%s0 + $0x108] sm:$0xff]
  %v56 = vld [vmem:[%s0 + $0x110] sm:$0xff]
  %v57 = vld [vmem:[%s0 + $0x118] sm:$0xff]
  %v58 = vld [vmem:[%s0 + $0x120] sm:$0xff]
  %v59 = vld [vmem:[%s0 + $0x128] sm:$0xff]
  %v60 = vld [vmem:[%s0 + $0x130] sm:$0xff]
  %v61 = vld [vmem:[%s0 + $0x138] sm:$0xff]
  %v62 = vld [vmem:[%s0 + $0x140] sm:$0xff]
  %v63 = vld [vmem:[%s0 + $0x148] sm:$0xff]
  %v64 = vld [vmem:[%s0 + $0x150] sm:$0xff]
  %v65 = vld [vmem:[%s0 + $0x158] sm:$0xff]
  %v66 = vld [vmem:[%s0 + $0x160] sm:$0xff]
  %v67 = vld [vmem:[%s0 + $0x168] sm:$0xff]
  %v68 = vld [vmem:[%s0 + $0x170] sm:$0xff]
  %v69 = vld [vmem:[%s0 + $0x178] sm:$0xff]
  %v70 = vld [vmem:[%s0 + $0x180] sm:$0xff]
  %v71 = vld [vmem:[%s0 + $0x188] sm:$0xff]
  %v72 = vld [vmem:[%s0 + $0x190] sm:$0xff]
  %v73 = vld [vmem:[%s0 + $0x198] sm:$0xff]
  %v74 = vld [vmem:[%s0 + $0x1a0] sm:$0xff]
  %v75 = vld [vmem:[%s0 + $0x1a8] sm:$0xff]
  %v76 = vld [vmem:[%s0 + $0x1b0] sm:$0xff]
  %v77 = vld [vmem:[%s0 + $0x1b8] sm:$0xff]
  %v78 = vld [vmem:[%s0 + $0x1c0] sm:$0xff]
  %v79 = vld [vmem:[%s0 + $0x1c8] sm:$0xff]
  %v80 = vld [vmem:[%s0 + $0x1d0] sm:$0xff]
  %v81 = vld [vmem:[%s0 + $0x1d8] sm:$0xff]
  %v82 = vld [vmem:[%s0 + $0x1e0] sm:$0xff]
  %v83 = vld [vmem:[%s0 + $0x1e8] sm:$0xff]
  %v84 = vld [vmem:[%s0 + $0x1f0] sm:$0xff]
  %v85 = vld [vmem:[%s0 + $0x1f8] sm:$0xff]
  %v86 = vld [vmem:[%s1] sm:$0xff]
  %v87 = vld [vmem:[%s1 + $0x8] sm:$0xff]
  %v88 = vld [vmem:[%s1 + $0x10] sm:$0xff]
  %v89 = vld [vmem:[%s1 + $0x18] sm:$0xff]
  %v90 = vld [vmem:[%s1 + $0x20] sm:$0xff]
  %v91 = vld [vmem:[%s1 + $0x28] sm:$0xff]
  %v92 = vld [vmem:[%s1 + $0x30] sm:$0xff]
  %v93 = vld [vmem:[%s1 + $0x38] sm:$0xff]
  %v94 = vld [vmem:[%s1 + $0x40] sm:$0xff]
  %v95 = vld [vmem:[%s1 + $0x48] sm:$0xff]
  %v96 = vld [vmem:[%s1 + $0x50] sm:$0xff]
  %v97 = vld [vmem:[%s1 + $0x58] sm:$0xff]
  %v98 = vld [vmem:[%s1 + $0x60] sm:$0xff]
  %v99 = vld [vmem:[%s1 + $0x68] sm:$0xff]
  %v100 = vld [vmem:[%s1 + $0x70] sm:$0xff]
  %v101 = vld [vmem:[%s1 + $0x78] sm:$0xff]
  %102 = vmatpush.msra.mxu0 %v101
  %103 = vmatpush.msra.mxu0 %v100
  %104 = vmatpush.msra.mxu0 %v99
  %105 = vmatpush.msra.mxu0 %v98
  %106 = vmatpush.msra.mxu0 %v97
  %107 = vmatpush.msra.mxu0 %v96
  %108 = vmatpush.msra.mxu0 %v95
  %109 = vmatpush.msra.mxu0 %v94
  %110 = vmatpush.msra.mxu0 %v93
  %111 = vmatpush.msra.mxu0 %v92
  %112 = vmatpush.msra.mxu0 %v91
  %113 = vmatpush.msra.mxu0 %v90
  %114 = vmatpush.msra.mxu0 %v89
  %115 = vmatpush.msra.mxu0 %v88
  %116 = vmatpush.msra.mxu0 %v87
  %117 = vmatpush.msra.mxu0 %v86
  %118 = vmatmul.f32.gmra.mxu0 %v22
  %v119 = vpop.f32.mrf.mxu0
  %v120 = vadd.f32 0.0, %v119
  %121 = vmatmul.f32.gmra.mxu0 %v23
  %v122 = vpop.f32.mrf.mxu0
  %v123 = vadd.f32 0.0, %v122
  %124 = vmatmul.f32.gmra.mxu0 %v24
  %v125 = vpop.f32.mrf.mxu0
  %v126 = vadd.f32 0.0, %v125
  %127 = vmatmul.f32.gmra.mxu0 %v25
  %v128 = vpop.f32.mrf.mxu0
  %v129 = vadd.f32 0.0, %v128
  %130 = vmatmul.f32.gmra.mxu0 %v26
  %v131 = vpop.f32.mrf.mxu0
  %v132 = vadd.f32 0.0, %v131
  %133 = vmatmul.f32.gmra.mxu0 %v27
  %v134 = vpop.f32.mrf.mxu0
  %v135 = vadd.f32 0.0, %v134
  %136 = vmatmul.f32.gmra.mxu0 %v28
  %v137 = vpop.f32.mrf.mxu0
  %v138 = vadd.f32 0.0, %v137
  %139 = vmatmul.f32.gmra.mxu0 %v29
  %v140 = vpop.f32.mrf.mxu0
  %v141 = vadd.f32 0.0, %v140
  %142 = vmatmul.f32.gmra.mxu0 %v30
  %v143 = vpop.f32.mrf.mxu0
  %v144 = vadd.f32 0.0, %v143
  %145 = vmatmul.f32.gmra.mxu0 %v31
  %v146 = vpop.f32.mrf.mxu0
  %v147 = vadd.f32 0.0, %v146
  %148 = vmatmul.f32.gmra.mxu0 %v32
  %v149 = vpop.f32.mrf.mxu0
  %v150 = vadd.f32 0.0, %v149
  %151 = vmatmul.f32.gmra.mxu0 %v33
  %v152 = vpop.f32.mrf.mxu0
  %v153 = vadd.f32 0.0, %v152
  %154 = vmatmul.f32.gmra.mxu0 %v34
  %v155 = vpop.f32.mrf.mxu0
  %v156 = vadd.f32 0.0, %v155
  %157 = vmatmul.f32.gmra.mxu0 %v35
  %v158 = vpop.f32.mrf.mxu0
  %v159 = vadd.f32 0.0, %v158
  %160 = vmatmul.f32.gmra.mxu0 %v36
  %v161 = vpop.f32.mrf.mxu0
  %v162 = vadd.f32 0.0, %v161
  %163 = vmatmul.f32.gmra.mxu0 %v37
  %v164 = vpop.f32.mrf.mxu0
  %v165 = vadd.f32 0.0, %v164
  %166 = vmatmul.f32.gmra.mxu0 %v38
  %v167 = vpop.f32.mrf.mxu0
  %v168 = vadd.f32 0.0, %v167
  %169 = vmatmul.f32.gmra.mxu0 %v39
  %v170 = vpop.f32.mrf.mxu0
  %v171 = vadd.f32 0.0, %v170
  %172 = vmatmul.f32.gmra.mxu0 %v40
  %v173 = vpop.f32.mrf.mxu0
  %v174 = vadd.f32 0.0, %v173
  %175 = vmatmul.f32.gmra.mxu0 %v41
  %v176 = vpop.f32.mrf.mxu0
  %v177 = vadd.f32 0.0, %v176
  %178 = vmatmul.f32.gmra.mxu0 %v42
  %v179 = vpop.f32.mrf.mxu0
  %v180 = vadd.f32 0.0, %v179
  %181 = vmatmul.f32.gmra.mxu0 %v43
  %v182 = vpop.f32.mrf.mxu0
  %v183 = vadd.f32 0.0, %v182
  %184 = vmatmul.f32.gmra.mxu0 %v44
  %v185 = vpop.f32.mrf.mxu0
  %v186 = vadd.f32 0.0, %v185
  %187 = vmatmul.f32.gmra.mxu0 %v45
  %v188 = vpop.f32.mrf.mxu0
  %v189 = vadd.f32 0.0, %v188
  %190 = vmatmul.f32.gmra.mxu0 %v46
  %v191 = vpop.f32.mrf.mxu0
  %v192 = vadd.f32 0.0, %v191
  %193 = vmatmul.f32.gmra.mxu0 %v47
  %v194 = vpop.f32.mrf.mxu0
  %v195 = vadd.f32 0.0, %v194
  %196 = vmatmul.f32.gmra.mxu0 %v48
  %v197 = vpop.f32.mrf.mxu0
  %v198 = vadd.f32 0.0, %v197
  %199 = vmatmul.f32.gmra.mxu0 %v49
  %v200 = vpop.f32.mrf.mxu0
  %v201 = vadd.f32 0.0, %v200
  %202 = vmatmul.f32.gmra.mxu0 %v50
  %v203 = vpop.f32.mrf.mxu0
  %v204 = vadd.f32 0.0, %v203
  %205 = vmatmul.f32.gmra.mxu0 %v51
  %v206 = vpop.f32.mrf.mxu0
  %v207 = vadd.f32 0.0, %v206
  %208 = vmatmul.f32.gmra.mxu0 %v52
  %v209 = vpop.f32.mrf.mxu0
  %v210 = vadd.f32 0.0, %v209
  %211 = vmatmul.f32.gmra.mxu0 %v53
  %v212 = vpop.f32.mrf.mxu0
  %v213 = vadd.f32 0.0, %v212
  %214 = vmatmul.f32.gmra.mxu0 %v54
  %v215 = vpop.f32.mrf.mxu0
  %v216 = vadd.f32 0.0, %v215
  %217 = vmatmul.f32.gmra.mxu0 %v55
  %v218 = vpop.f32.mrf.mxu0
  %v219 = vadd.f32 0.0, %v218
  %220 = vmatmul.f32.gmra.mxu0 %v56
  %v221 = vpop.f32.mrf.mxu0
  %v222 = vadd.f32 0.0, %v221
  %223 = vmatmul.f32.gmra.mxu0 %v57
  %v224 = vpop.f32.mrf.mxu0
  %v225 = vadd.f32 0.0, %v224
  %226 = vmatmul.f32.gmra.mxu0 %v58
  %v227 = vpop.f32.mrf.mxu0
  %v228 = vadd.f32 0.0, %v227
  %229 = vmatmul.f32.gmra.mxu0 %v59
  %v230 = vpop.f32.mrf.mxu0
  %v231 = vadd.f32 0.0, %v230
  %232 = vmatmul.f32.gmra.mxu0 %v60
  %v233 = vpop.f32.mrf.mxu0
  %v234 = vadd.f32 0.0, %v233
  %235 = vmatmul.f32.gmra.mxu0 %v61
  %v236 = vpop.f32.mrf.mxu0
  %v237 = vadd.f32 0.0, %v236
  %238 = vmatmul.f32.gmra.mxu0 %v62
  %v239 = vpop.f32.mrf.mxu0
  %v240 = vadd.f32 0.0, %v239
  %241 = vmatmul.f32.gmra.mxu0 %v63
  %v242 = vpop.f32.mrf.mxu0
  %v243 = vadd.f32 0.0, %v242
  %244 = vmatmul.f32.gmra.mxu0 %v64
  %v245 = vpop.f32.mrf.mxu0
  %v246 = vadd.f32 0.0, %v245
  %247 = vmatmul.f32.gmra.mxu0 %v65
  %v248 = vpop.f32.mrf.mxu0
  %v249 = vadd.f32 0.0, %v248
  %250 = vmatmul.f32.gmra.mxu0 %v66
  %v251 = vpop.f32.mrf.mxu0
  %v252 = vadd.f32 0.0, %v251
  %253 = vmatmul.f32.gmra.mxu0 %v67
  %v254 = vpop.f32.mrf.mxu0
  %v255 = vadd.f32 0.0, %v254
  %256 = vmatmul.f32.gmra.mxu0 %v68
  %v257 = vpop.f32.mrf.mxu0
  %v258 = vadd.f32 0.0, %v257
  %259 = vmatmul.f32.gmra.mxu0 %v69
  %v260 = vpop.f32.mrf.mxu0
  %v261 = vadd.f32 0.0, %v260
  %262 = vmatmul.f32.gmra.mxu0 %v70
  %v263 = vpop.f32.mrf.mxu0
  %v264 = vadd.f32 0.0, %v263
  %265 = vmatmul.f32.gmra.mxu0 %v71
  %v266 = vpop.f32.mrf.mxu0
  %v267 = vadd.f32 0.0, %v266
  %268 = vmatmul.f32.gmra.mxu0 %v72
  %v269 = vpop.f32.mrf.mxu0
  %v270 = vadd.f32 0.0, %v269
  %271 = vmatmul.f32.gmra.mxu0 %v73
  %v272 = vpop.f32.mrf.mxu0
  %v273 = vadd.f32 0.0, %v272
  %274 = vmatmul.f32.gmra.mxu0 %v74
  %v275 = vpop.f32.mrf.mxu0
  %v276 = vadd.f32 0.0, %v275
  %277 = vmatmul.f32.gmra.mxu0 %v75
  %v278 = vpop.f32.mrf.mxu0
  %v279 = vadd.f32 0.0, %v278
  %280 = vmatmul.f32.gmra.mxu0 %v76
  %v281 = vpop.f32.mrf.mxu0
  %v282 = vadd.f32 0.0, %v281
  %283 = vmatmul.f32.gmra.mxu0 %v77
  %v284 = vpop.f32.mrf.mxu0
  %v285 = vadd.f32 0.0, %v284
  %286 = vmatmul.f32.gmra.mxu0 %v78
  %v287 = vpop.f32.mrf.mxu0
  %v288 = vadd.f32 0.0, %v287
  %289 = vmatmul.f32.gmra.mxu0 %v79
  %v290 = vpop.f32.mrf.mxu0
  %v291 = vadd.f32 0.0, %v290
  %292 = vmatmul.f32.gmra.mxu0 %v80
  %v293 = vpop.f32.mrf.mxu0
  %v294 = vadd.f32 0.0, %v293
  %295 = vmatmul.f32.gmra.mxu0 %v81
  %v296 = vpop.f32.mrf.mxu0
  %v297 = vadd.f32 0.0, %v296
  %298 = vmatmul.f32.gmra.mxu0 %v82
  %v299 = vpop.f32.mrf.mxu0
  %v300 = vadd.f32 0.0, %v299
  %301 = vmatmul.f32.gmra.mxu0 %v83
  %v302 = vpop.f32.mrf.mxu0
  %v303 = vadd.f32 0.0, %v302
  %304 = vmatmul.f32.gmra.mxu0 %v84
  %v305 = vpop.f32.mrf.mxu0
  %v306 = vadd.f32 0.0, %v305
  %307 = vmatmul.f32.gmra.mxu0 %v85
  %v308 = vpop.f32.mrf.mxu0
  %v309 = vadd.f32 0.0, %v308
  %310 = vdwg.mxu0
  %311 = vst [vmem:[%s4] sm:$0xff] %v120
  %312 = vst [vmem:[%s4 + $0x8] sm:$0xff] %v123
  %313 = vst [vmem:[%s4 + $0x10] sm:$0xff] %v126
  %314 = vst [vmem:[%s4 + $0x18] sm:$0xff] %v129
  %315 = vst [vmem:[%s4 + $0x20] sm:$0xff] %v132
  %316 = vst [vmem:[%s4 + $0x28] sm:$0xff] %v135
  %317 = vst [vmem:[%s4 + $0x30] sm:$0xff] %v138
  %318 = vst [vmem:[%s4 + $0x38] sm:$0xff] %v141
  %319 = vst [vmem:[%s4 + $0x40] sm:$0xff] %v144
  %320 = vst [vmem:[%s4 + $0x48] sm:$0xff] %v147
  %321 = vst [vmem:[%s4 + $0x50] sm:$0xff] %v150
  %322 = vst [vmem:[%s4 + $0x58] sm:$0xff] %v153
  %323 = vst [vmem:[%s4 + $0x60] sm:$0xff] %v156
  %324 = vst [vmem:[%s4 + $0x68] sm:$0xff] %v159
  %325 = vst [vmem:[%s4 + $0x70] sm:$0xff] %v162
  %326 = vst [vmem:[%s4 + $0x78] sm:$0xff] %v165
  %327 = vst [vmem:[%s4 + $0x80] sm:$0xff] %v168
  %328 = vst [vmem:[%s4 + $0x88] sm:$0xff] %v171
  %329 = vst [vmem:[%s4 + $0x90] sm:$0xff] %v174
  %330 = vst [vmem:[%s4 + $0x98] sm:$0xff] %v177
  %331 = vst [vmem:[%s4 + $0xa0] sm:$0xff] %v180
  %332 = vst [vmem:[%s4 + $0xa8] sm:$0xff] %v183
  %333 = vst [vmem:[%s4 + $0xb0] sm:$0xff] %v186
  %334 = vst [vmem:[%s4 + $0xb8] sm:$0xff] %v189
  %335 = vst [vmem:[%s4 + $0xc0] sm:$0xff] %v192
  %336 = vst [vmem:[%s4 + $0xc8] sm:$0xff] %v195
  %337 = vst [vmem:[%s4 + $0xd0] sm:$0xff] %v198
  %338 = vst [vmem:[%s4 + $0xd8] sm:$0xff] %v201
  %339 = vst [vmem:[%s4 + $0xe0] sm:$0xff] %v204
  %340 = vst [vmem:[%s4 + $0xe8] sm:$0xff] %v207
  %341 = vst [vmem:[%s4 + $0xf0] sm:$0xff] %v210
  %342 = vst [vmem:[%s4 + $0xf8] sm:$0xff] %v213
  %343 = vst [vmem:[%s4 + $0x100] sm:$0xff] %v216
  %344 = vst [vmem:[%s4 + $0x108] sm:$0xff] %v219
  %345 = vst [vmem:[%s4 + $0x110] sm:$0xff] %v222
  %346 = vst [vmem:[%s4 + $0x118] sm:$0xff] %v225
  %347 = vst [vmem:[%s4 + $0x120] sm:$0xff] %v228
  %348 = vst [vmem:[%s4 + $0x128] sm:$0xff] %v231
  %349 = vst [vmem:[%s4 + $0x130] sm:$0xff] %v234
  %350 = vst [vmem:[%s4 + $0x138] sm:$0xff] %v237
  %351 = vst [vmem:[%s4 + $0x140] sm:$0xff] %v240
  %352 = vst [vmem:[%s4 + $0x148] sm:$0xff] %v243
  %353 = vst [vmem:[%s4 + $0x150] sm:$0xff] %v246
  %354 = vst [vmem:[%s4 + $0x158] sm:$0xff] %v249
  %355 = vst [vmem:[%s4 + $0x160] sm:$0xff] %v252
  %356 = vst [vmem:[%s4 + $0x168] sm:$0xff] %v255
  %357 = vst [vmem:[%s4 + $0x170] sm:$0xff] %v258
  %358 = vst [vmem:[%s4 + $0x178] sm:$0xff] %v261
  %359 = vst [vmem:[%s4 + $0x180] sm:$0xff] %v264
  %360 = vst [vmem:[%s4 + $0x188] sm:$0xff] %v267
  %361 = vst [vmem:[%s4 + $0x190] sm:$0xff] %v270
  %362 = vst [vmem:[%s4 + $0x198] sm:$0xff] %v273
  %363 = vst [vmem:[%s4 + $0x1a0] sm:$0xff] %v276
  %364 = vst [vmem:[%s4 + $0x1a8] sm:$0xff] %v279
  %365 = vst [vmem:[%s4 + $0x1b0] sm:$0xff] %v282
  %366 = vst [vmem:[%s4 + $0x1b8] sm:$0xff] %v285
  %367 = vst [vmem:[%s4 + $0x1c0] sm:$0xff] %v288
  %368 = vst [vmem:[%s4 + $0x1c8] sm:$0xff] %v291
  %369 = vst [vmem:[%s4 + $0x1d0] sm:$0xff] %v294
  %370 = vst [vmem:[%s4 + $0x1d8] sm:$0xff] %v297
  %371 = vst [vmem:[%s4 + $0x1e0] sm:$0xff] %v300
  %372 = vst [vmem:[%s4 + $0x1e8] sm:$0xff] %v303
  %373 = vst [vmem:[%s4 + $0x1f0] sm:$0xff] %v306
  %374 = vst [vmem:[%s4 + $0x1f8] sm:$0xff] %v309
  %v375 = vadd.f32 %v120, %v123
  %v376 = vadd.f32 %v375, %v126
  %v377 = vadd.f32 %v376, %v129
  %v378 = vadd.f32 %v377, %v132
  %v379 = vadd.f32 %v378, %v135
  %v380 = vadd.f32 %v379, %v138
  %v381 = vadd.f32 %v380, %v141
  %v382 = vadd.f32 %v381, %v144
  %v383 = vadd.f32 %v382, %v147
  %v384 = vadd.f32 %v383, %v150
  %v385 = vadd.f32 %v384, %v153
  %v386 = vadd.f32 %v385, %v156
  %v387 = vadd.f32 %v386, %v159
  %v388 = vadd.f32 %v387, %v162
  %v389 = vadd.f32 %v388, %v165
  %v390 = vadd.f32 %v389, %v168
  %v391 = vadd.f32 %v390, %v171
  %v392 = vadd.f32 %v391, %v174
  %v393 = vadd.f32 %v392, %v177
  %v394 = vadd.f32 %v393, %v180
  %v395 = vadd.f32 %v394, %v183
  %v396 = vadd.f32 %v395, %v186
  %v397 = vadd.f32 %v396, %v189
  %v398 = vadd.f32 %v397, %v192
  %v399 = vadd.f32 %v398, %v195
  %v400 = vadd.f32 %v399, %v198
  %v401 = vadd.f32 %v400, %v201
  %v402 = vadd.f32 %v401, %v204
  %v403 = vadd.f32 %v402, %v207
  %v404 = vadd.f32 %v403, %v210
  %v405 = vadd.f32 %v404, %v213
  %v406 = vadd.f32 %v405, %v216
  %v407 = vadd.f32 %v406, %v219
  %v408 = vadd.f32 %v407, %v222
  %v409 = vadd.f32 %v408, %v225
  %v410 = vadd.f32 %v409, %v228
  %v411 = vadd.f32 %v410, %v231
  %v412 = vadd.f32 %v411, %v234
  %v413 = vadd.f32 %v412, %v237
  %v414 = vadd.f32 %v413, %v240
  %v415 = vadd.f32 %v414, %v243
  %v416 = vadd.f32 %v415, %v246
  %v417 = vadd.f32 %v416, %v249
  %v418 = vadd.f32 %v417, %v252
  %v419 = vadd.f32 %v418, %v255
  %v420 = vadd.f32 %v419, %v258
  %v421 = vadd.f32 %v420, %v261
  %v422 = vadd.f32 %v421, %v264
  %v423 = vadd.f32 %v422, %v267
  %v424 = vadd.f32 %v423, %v270
  %v425 = vadd.f32 %v424, %v273
  %v426 = vadd.f32 %v425, %v276
  %v427 = vadd.f32 %v426, %v279
  %v428 = vadd.f32 %v427, %v282
  %v429 = vadd.f32 %v428, %v285
  %v430 = vadd.f32 %v429, %v288
  %v431 = vadd.f32 %v430, %v291
  %v432 = vadd.f32 %v431, %v294
  %v433 = vadd.f32 %v432, %v297
  %v434 = vadd.f32 %v433, %v300
  %v435 = vadd.f32 %v434, %v303
  %v436 = vadd.f32 %v435, %v306
  %v437 = vadd.f32 %v436, %v309
  %438 = vst [vmem:[%s5] sm:$0xff] %v437
  %v439 = vmul.f32 %v120, %v120
  %v440 = vmul.f32 %v123, %v123
  %v441 = vmul.f32 %v126, %v126
  %v442 = vmul.f32 %v129, %v129
  %v443 = vmul.f32 %v132, %v132
  %v444 = vmul.f32 %v135, %v135
  %v445 = vmul.f32 %v138, %v138
  %v446 = vmul.f32 %v141, %v141
  %v447 = vmul.f32 %v144, %v144
  %v448 = vmul.f32 %v147, %v147
  %v449 = vmul.f32 %v150, %v150
  %v450 = vmul.f32 %v153, %v153
  %v451 = vmul.f32 %v156, %v156
  %v452 = vmul.f32 %v159, %v159
  %v453 = vmul.f32 %v162, %v162
  %v454 = vmul.f32 %v165, %v165
  %v455 = vmul.f32 %v168, %v168
  %v456 = vmul.f32 %v171, %v171
  %v457 = vmul.f32 %v174, %v174
  %v458 = vmul.f32 %v177, %v177
  %v459 = vmul.f32 %v180, %v180
  %v460 = vmul.f32 %v183, %v183
  %v461 = vmul.f32 %v186, %v186
  %v462 = vmul.f32 %v189, %v189
  %v463 = vmul.f32 %v192, %v192
  %v464 = vmul.f32 %v195, %v195
  %v465 = vmul.f32 %v198, %v198
  %v466 = vmul.f32 %v201, %v201
  %v467 = vmul.f32 %v204, %v204
  %v468 = vmul.f32 %v207, %v207
  %v469 = vmul.f32 %v210, %v210
  %v470 = vmul.f32 %v213, %v213
  %v471 = vmul.f32 %v216, %v216
  %v472 = vmul.f32 %v219, %v219
  %v473 = vmul.f32 %v222, %v222
  %v474 = vmul.f32 %v225, %v225
  %v475 = vmul.f32 %v228, %v228
  %v476 = vmul.f32 %v231, %v231
  %v477 = vmul.f32 %v234, %v234
  %v478 = vmul.f32 %v237, %v237
  %v479 = vmul.f32 %v240, %v240
  %v480 = vmul.f32 %v243, %v243
  %v481 = vmul.f32 %v246, %v246
  %v482 = vmul.f32 %v249, %v249
  %v483 = vmul.f32 %v252, %v252
  %v484 = vmul.f32 %v255, %v255
  %v485 = vmul.f32 %v258, %v258
  %v486 = vmul.f32 %v261, %v261
  %v487 = vmul.f32 %v264, %v264
  %v488 = vmul.f32 %v267, %v267
  %v489 = vmul.f32 %v270, %v270
  %v490 = vmul.f32 %v273, %v273
  %v491 = vmul.f32 %v276, %v276
  %v492 = vmul.f32 %v279, %v279
  %v493 = vmul.f32 %v282, %v282
  %v494 = vmul.f32 %v285, %v285
  %v495 = vmul.f32 %v288, %v288
  %v496 = vmul.f32 %v291, %v291
  %v497 = vmul.f32 %v294, %v294
  %v498 = vmul.f32 %v297, %v297
  %v499 = vmul.f32 %v300, %v300
  %v500 = vmul.f32 %v303, %v303
  %v501 = vmul.f32 %v306, %v306
  %v502 = vmul.f32 %v309, %v309
  %v503 = vadd.f32 %v439, %v440
  %v504 = vadd.f32 %v503, %v441
  %v505 = vadd.f32 %v504, %v442
  %v506 = vadd.f32 %v505, %v443
  %v507 = vadd.f32 %v506, %v444
  %v508 = vadd.f32 %v507, %v445
  %v509 = vadd.f32 %v508, %v446
  %v510 = vadd.f32 %v509, %v447
  %v511 = vadd.f32 %v510, %v448
  %v512 = vadd.f32 %v511, %v449
  %v513 = vadd.f32 %v512, %v450
  %v514 = vadd.f32 %v513, %v451
  %v515 = vadd.f32 %v514, %v452
  %v516 = vadd.f32 %v515, %v453
  %v517 = vadd.f32 %v516, %v454
  %v518 = vadd.f32 %v517, %v455
  %v519 = vadd.f32 %v518, %v456
  %v520 = vadd.f32 %v519, %v457
  %v521 = vadd.f32 %v520, %v458
  %v522 = vadd.f32 %v521, %v459
  %v523 = vadd.f32 %v522, %v460
  %v524 = vadd.f32 %v523, %v461
  %v525 = vadd.f32 %v524, %v462
  %v526 = vadd.f32 %v525, %v463
  %v527 = vadd.f32 %v526, %v464
  %v528 = vadd.f32 %v527, %v465
  %v529 = vadd.f32 %v528, %v466
  %v530 = vadd.f32 %v529, %v467
  %v531 = vadd.f32 %v530, %v468
  %v532 = vadd.f32 %v531, %v469
  %v533 = vadd.f32 %v532, %v470
  %v534 = vadd.f32 %v533, %v471
  %v535 = vadd.f32 %v534, %v472
  %v536 = vadd.f32 %v535, %v473
  %v537 = vadd.f32 %v536, %v474
  %v538 = vadd.f32 %v537, %v475
  %v539 = vadd.f32 %v538, %v476
  %v540 = vadd.f32 %v539, %v477
  %v541 = vadd.f32 %v540, %v478
  %v542 = vadd.f32 %v541, %v479
  %v543 = vadd.f32 %v542, %v480
  %v544 = vadd.f32 %v543, %v481
  %v545 = vadd.f32 %v544, %v482
  %v546 = vadd.f32 %v545, %v483
  %v547 = vadd.f32 %v546, %v484
  %v548 = vadd.f32 %v547, %v485
  %v549 = vadd.f32 %v548, %v486
  %v550 = vadd.f32 %v549, %v487
  %v551 = vadd.f32 %v550, %v488
  %v552 = vadd.f32 %v551, %v489
  %v553 = vadd.f32 %v552, %v490
  %v554 = vadd.f32 %v553, %v491
  %v555 = vadd.f32 %v554, %v492
  %v556 = vadd.f32 %v555, %v493
  %v557 = vadd.f32 %v556, %v494
  %v558 = vadd.f32 %v557, %v495
  %v559 = vadd.f32 %v558, %v496
  %v560 = vadd.f32 %v559, %v497
  %v561 = vadd.f32 %v560, %v498
  %v562 = vadd.f32 %v561, %v499
  %v563 = vadd.f32 %v562, %v500
  %v564 = vadd.f32 %v563, %v501
  %v565 = vadd.f32 %v564, %v502
  %566 = vst [vmem:[%s6] sm:$0xff] %v565
  %v567 = vld [vmem:[%s2] sm:$0xff]
  %v568 = vld [vmem:[%s2 + $0x8] sm:$0xff]
  %v569 = vld [vmem:[%s2 + $0x10] sm:$0xff]
  %v570 = vld [vmem:[%s2 + $0x18] sm:$0xff]
  %v571 = vld [vmem:[%s2 + $0x20] sm:$0xff]
  %v572 = vld [vmem:[%s2 + $0x28] sm:$0xff]
  %v573 = vld [vmem:[%s2 + $0x30] sm:$0xff]
  %v574 = vld [vmem:[%s2 + $0x38] sm:$0xff]
  %v575 = vld [vmem:[%s2 + $0x40] sm:$0xff]
  %v576 = vld [vmem:[%s2 + $0x48] sm:$0xff]
  %v577 = vld [vmem:[%s2 + $0x50] sm:$0xff]
  %v578 = vld [vmem:[%s2 + $0x58] sm:$0xff]
  %v579 = vld [vmem:[%s2 + $0x60] sm:$0xff]
  %v580 = vld [vmem:[%s2 + $0x68] sm:$0xff]
  %v581 = vld [vmem:[%s2 + $0x70] sm:$0xff]
  %v582 = vld [vmem:[%s2 + $0x78] sm:$0xff]
  %v583 = vld [vmem:[%s2 + $0x80] sm:$0xff]
  %v584 = vld [vmem:[%s2 + $0x88] sm:$0xff]
  %v585 = vld [vmem:[%s2 + $0x90] sm:$0xff]
  %v586 = vld [vmem:[%s2 + $0x98] sm:$0xff]
  %v587 = vld [vmem:[%s2 + $0xa0] sm:$0xff]
  %v588 = vld [vmem:[%s2 + $0xa8] sm:$0xff]
  %v589 = vld [vmem:[%s2 + $0xb0] sm:$0xff]
  %v590 = vld [vmem:[%s2 + $0xb8] sm:$0xff]
  %v591 = vld [vmem:[%s2 + $0xc0] sm:$0xff]
  %v592 = vld [vmem:[%s2 + $0xc8] sm:$0xff]
  %v593 = vld [vmem:[%s2 + $0xd0] sm:$0xff]
  %v594 = vld [vmem:[%s2 + $0xd8] sm:$0xff]
  %v595 = vld [vmem:[%s2 + $0xe0] sm:$0xff]
  %v596 = vld [vmem:[%s2 + $0xe8] sm:$0xff]
  %v597 = vld [vmem:[%s2 + $0xf0] sm:$0xff]
  %v598 = vld [vmem:[%s2 + $0xf8] sm:$0xff]
  %v599 = vld [vmem:[%s2 + $0x100] sm:$0xff]
  %v600 = vld [vmem:[%s2 + $0x108] sm:$0xff]
  %v601 = vld [vmem:[%s2 + $0x110] sm:$0xff]
  %v602 = vld [vmem:[%s2 + $0x118] sm:$0xff]
  %v603 = vld [vmem:[%s2 + $0x120] sm:$0xff]
  %v604 = vld [vmem:[%s2 + $0x128] sm:$0xff]
  %v605 = vld [vmem:[%s2 + $0x130] sm:$0xff]
  %v606 = vld [vmem:[%s2 + $0x138] sm:$0xff]
  %v607 = vld [vmem:[%s2 + $0x140] sm:$0xff]
  %v608 = vld [vmem:[%s2 + $0x148] sm:$0xff]
  %v609 = vld [vmem:[%s2 + $0x150] sm:$0xff]
  %v610 = vld [vmem:[%s2 + $0x158] sm:$0xff]
  %v611 = vld [vmem:[%s2 + $0x160] sm:$0xff]
  %v612 = vld [vmem:[%s2 + $0x168] sm:$0xff]
  %v613 = vld [vmem:[%s2 + $0x170] sm:$0xff]
  %v614 = vld [vmem:[%s2 + $0x178] sm:$0xff]
  %v615 = vld [vmem:[%s2 + $0x180] sm:$0xff]
  %v616 = vld [vmem:[%s2 + $0x188] sm:$0xff]
  %v617 = vld [vmem:[%s2 + $0x190] sm:$0xff]
  %v618 = vld [vmem:[%s2 + $0x198] sm:$0xff]
  %v619 = vld [vmem:[%s2 + $0x1a0] sm:$0xff]
  %v620 = vld [vmem:[%s2 + $0x1a8] sm:$0xff]
  %v621 = vld [vmem:[%s2 + $0x1b0] sm:$0xff]
  %v622 = vld [vmem:[%s2 + $0x1b8] sm:$0xff]
  %v623 = vld [vmem:[%s2 + $0x1c0] sm:$0xff]
  %v624 = vld [vmem:[%s2 + $0x1c8] sm:$0xff]
  %v625 = vld [vmem:[%s2 + $0x1d0] sm:$0xff]
  %v626 = vld [vmem:[%s2 + $0x1d8] sm:$0xff]
  %v627 = vld [vmem:[%s2 + $0x1e0] sm:$0xff]
  %v628 = vld [vmem:[%s2 + $0x1e8] sm:$0xff]
  %v629 = vld [vmem:[%s2 + $0x1f0] sm:$0xff]
  %v630 = vld [vmem:[%s2 + $0x1f8] sm:$0xff]
  %v631 = vld [vmem:[%s3] sm:$0xff]
  %v632 = vld [vmem:[%s3 + $0x8] sm:$0xff]
  %v633 = vld [vmem:[%s3 + $0x10] sm:$0xff]
  %v634 = vld [vmem:[%s3 + $0x18] sm:$0xff]
  %v635 = vld [vmem:[%s3 + $0x20] sm:$0xff]
  %v636 = vld [vmem:[%s3 + $0x28] sm:$0xff]
  %v637 = vld [vmem:[%s3 + $0x30] sm:$0xff]
  %v638 = vld [vmem:[%s3 + $0x38] sm:$0xff]
  %v639 = vld [vmem:[%s3 + $0x40] sm:$0xff]
  %v640 = vld [vmem:[%s3 + $0x48] sm:$0xff]
  %v641 = vld [vmem:[%s3 + $0x50] sm:$0xff]
  %v642 = vld [vmem:[%s3 + $0x58] sm:$0xff]
  %v643 = vld [vmem:[%s3 + $0x60] sm:$0xff]
  %v644 = vld [vmem:[%s3 + $0x68] sm:$0xff]
  %v645 = vld [vmem:[%s3 + $0x70] sm:$0xff]
  %v646 = vld [vmem:[%s3 + $0x78] sm:$0xff]
  %647 = vmatpush.msra.mxu0 %v646
  %648 = vmatpush.msra.mxu0 %v645
  %649 = vmatpush.msra.mxu0 %v644
  %650 = vmatpush.msra.mxu0 %v643
  %651 = vmatpush.msra.mxu0 %v642
  %652 = vmatpush.msra.mxu0 %v641
  %653 = vmatpush.msra.mxu0 %v640
  %654 = vmatpush.msra.mxu0 %v639
  %655 = vmatpush.msra.mxu0 %v638
  %656 = vmatpush.msra.mxu0 %v637
  %657 = vmatpush.msra.mxu0 %v636
  %658 = vmatpush.msra.mxu0 %v635
  %659 = vmatpush.msra.mxu0 %v634
  %660 = vmatpush.msra.mxu0 %v633
  %661 = vmatpush.msra.mxu0 %v632
  %662 = vmatpush.msra.mxu0 %v631
  %663 = vmatmul.f32.gmra.mxu0 %v567
  %v664 = vpop.f32.mrf.mxu0
  %v665 = vadd.f32 0.0, %v664
  %666 = vmatmul.f32.gmra.mxu0 %v568
  %v667 = vpop.f32.mrf.mxu0
  %v668 = vadd.f32 0.0, %v667
  %669 = vmatmul.f32.gmra.mxu0 %v569
  %v670 = vpop.f32.mrf.mxu0
  %v671 = vadd.f32 0.0, %v670
  %672 = vmatmul.f32.gmra.mxu0 %v570
  %v673 = vpop.f32.mrf.mxu0
  %v674 = vadd.f32 0.0, %v673
  %675 = vmatmul.f32.gmra.mxu0 %v571
  %v676 = vpop.f32.mrf.mxu0
  %v677 = vadd.f32 0.0, %v676
  %678 = vmatmul.f32.gmra.mxu0 %v572
  %v679 = vpop.f32.mrf.mxu0
  %v680 = vadd.f32 0.0, %v679
  %681 = vmatmul.f32.gmra.mxu0 %v573
  %v682 = vpop.f32.mrf.mxu0
  %v683 = vadd.f32 0.0, %v682
  %684 = vmatmul.f32.gmra.mxu0 %v574
  %v685 = vpop.f32.mrf.mxu0
  %v686 = vadd.f32 0.0, %v685
  %687 = vmatmul.f32.gmra.mxu0 %v575
  %v688 = vpop.f32.mrf.mxu0
  %v689 = vadd.f32 0.0, %v688
  %690 = vmatmul.f32.gmra.mxu0 %v576
  %v691 = vpop.f32.mrf.mxu0
  %v692 = vadd.f32 0.0, %v691
  %693 = vmatmul.f32.gmra.mxu0 %v577
  %v694 = vpop.f32.mrf.mxu0
  %v695 = vadd.f32 0.0, %v694
  %696 = vmatmul.f32.gmra.mxu0 %v578
  %v697 = vpop.f32.mrf.mxu0
  %v698 = vadd.f32 0.0, %v697
  %699 = vmatmul.f32.gmra.mxu0 %v579
  %v700 = vpop.f32.mrf.mxu0
  %v701 = vadd.f32 0.0, %v700
  %702 = vmatmul.f32.gmra.mxu0 %v580
  %v703 = vpop.f32.mrf.mxu0
  %v704 = vadd.f32 0.0, %v703
  %705 = vmatmul.f32.gmra.mxu0 %v581
  %v706 = vpop.f32.mrf.mxu0
  %v707 = vadd.f32 0.0, %v706
  %708 = vmatmul.f32.gmra.mxu0 %v582
  %v709 = vpop.f32.mrf.mxu0
  %v710 = vadd.f32 0.0, %v709
  %711 = vmatmul.f32.gmra.mxu0 %v583
  %v712 = vpop.f32.mrf.mxu0
  %v713 = vadd.f32 0.0, %v712
  %714 = vmatmul.f32.gmra.mxu0 %v584
  %v715 = vpop.f32.mrf.mxu0
  %v716 = vadd.f32 0.0, %v715
  %717 = vmatmul.f32.gmra.mxu0 %v585
  %v718 = vpop.f32.mrf.mxu0
  %v719 = vadd.f32 0.0, %v718
  %720 = vmatmul.f32.gmra.mxu0 %v586
  %v721 = vpop.f32.mrf.mxu0
  %v722 = vadd.f32 0.0, %v721
  %723 = vmatmul.f32.gmra.mxu0 %v587
  %v724 = vpop.f32.mrf.mxu0
  %v725 = vadd.f32 0.0, %v724
  %726 = vmatmul.f32.gmra.mxu0 %v588
  %v727 = vpop.f32.mrf.mxu0
  %v728 = vadd.f32 0.0, %v727
  %729 = vmatmul.f32.gmra.mxu0 %v589
  %v730 = vpop.f32.mrf.mxu0
  %v731 = vadd.f32 0.0, %v730
  %732 = vmatmul.f32.gmra.mxu0 %v590
  %v733 = vpop.f32.mrf.mxu0
  %v734 = vadd.f32 0.0, %v733
  %735 = vmatmul.f32.gmra.mxu0 %v591
  %v736 = vpop.f32.mrf.mxu0
  %v737 = vadd.f32 0.0, %v736
  %738 = vmatmul.f32.gmra.mxu0 %v592
  %v739 = vpop.f32.mrf.mxu0
  %v740 = vadd.f32 0.0, %v739
  %741 = vmatmul.f32.gmra.mxu0 %v593
  %v742 = vpop.f32.mrf.mxu0
  %v743 = vadd.f32 0.0, %v742
  %744 = vmatmul.f32.gmra.mxu0 %v594
  %v745 = vpop.f32.mrf.mxu0
  %v746 = vadd.f32 0.0, %v745
  %747 = vmatmul.f32.gmra.mxu0 %v595
  %v748 = vpop.f32.mrf.mxu0
  %v749 = vadd.f32 0.0, %v748
  %750 = vmatmul.f32.gmra.mxu0 %v596
  %v751 = vpop.f32.mrf.mxu0
  %v752 = vadd.f32 0.0, %v751
  %753 = vmatmul.f32.gmra.mxu0 %v597
  %v754 = vpop.f32.mrf.mxu0
  %v755 = vadd.f32 0.0, %v754
  %756 = vmatmul.f32.gmra.mxu0 %v598
  %v757 = vpop.f32.mrf.mxu0
  %v758 = vadd.f32 0.0, %v757
  %759 = vmatmul.f32.gmra.mxu0 %v599
  %v760 = vpop.f32.mrf.mxu0
  %v761 = vadd.f32 0.0, %v760
  %762 = vmatmul.f32.gmra.mxu0 %v600
  %v763 = vpop.f32.mrf.mxu0
  %v764 = vadd.f32 0.0, %v763
  %765 = vmatmul.f32.gmra.mxu0 %v601
  %v766 = vpop.f32.mrf.mxu0
  %v767 = vadd.f32 0.0, %v766
  %768 = vmatmul.f32.gmra.mxu0 %v602
  %v769 = vpop.f32.mrf.mxu0
  %v770 = vadd.f32 0.0, %v769
  %771 = vmatmul.f32.gmra.mxu0 %v603
  %v772 = vpop.f32.mrf.mxu0
  %v773 = vadd.f32 0.0, %v772
  %774 = vmatmul.f32.gmra.mxu0 %v604
  %v775 = vpop.f32.mrf.mxu0
  %v776 = vadd.f32 0.0, %v775
  %777 = vmatmul.f32.gmra.mxu0 %v605
  %v778 = vpop.f32.mrf.mxu0
  %v779 = vadd.f32 0.0, %v778
  %780 = vmatmul.f32.gmra.mxu0 %v606
  %v781 = vpop.f32.mrf.mxu0
  %v782 = vadd.f32 0.0, %v781
  %783 = vmatmul.f32.gmra.mxu0 %v607
  %v784 = vpop.f32.mrf.mxu0
  %v785 = vadd.f32 0.0, %v784
  %786 = vmatmul.f32.gmra.mxu0 %v608
  %v787 = vpop.f32.mrf.mxu0
  %v788 = vadd.f32 0.0, %v787
  %789 = vmatmul.f32.gmra.mxu0 %v609
  %v790 = vpop.f32.mrf.mxu0
  %v791 = vadd.f32 0.0, %v790
  %792 = vmatmul.f32.gmra.mxu0 %v610
  %v793 = vpop.f32.mrf.mxu0
  %v794 = vadd.f32 0.0, %v793
  %795 = vmatmul.f32.gmra.mxu0 %v611
  %v796 = vpop.f32.mrf.mxu0
  %v797 = vadd.f32 0.0, %v796
  %798 = vmatmul.f32.gmra.mxu0 %v612
  %v799 = vpop.f32.mrf.mxu0
  %v800 = vadd.f32 0.0, %v799
  %801 = vmatmul.f32.gmra.mxu0 %v613
  %v802 = vpop.f32.mrf.mxu0
  %v803 = vadd.f32 0.0, %v802
  %804 = vmatmul.f32.gmra.mxu0 %v614
  %v805 = vpop.f32.mrf.mxu0
  %v806 = vadd.f32 0.0, %v805
  %807 = vmatmul.f32.gmra.mxu0 %v615
  %v808 = vpop.f32.mrf.mxu0
  %v809 = vadd.f32 0.0, %v808
  %810 = vmatmul.f32.gmra.mxu0 %v616
  %v811 = vpop.f32.mrf.mxu0
  %v812 = vadd.f32 0.0, %v811
  %813 = vmatmul.f32.gmra.mxu0 %v617
  %v814 = vpop.f32.mrf.mxu0
  %v815 = vadd.f32 0.0, %v814
  %816 = vmatmul.f32.gmra.mxu0 %v618
  %v817 = vpop.f32.mrf.mxu0
  %v818 = vadd.f32 0.0, %v817
  %819 = vmatmul.f32.gmra.mxu0 %v619
  %v820 = vpop.f32.mrf.mxu0
  %v821 = vadd.f32 0.0, %v820
  %822 = vmatmul.f32.gmra.mxu0 %v620
  %v823 = vpop.f32.mrf.mxu0
  %v824 = vadd.f32 0.0, %v823
  %825 = vmatmul.f32.gmra.mxu0 %v621
  %v826 = vpop.f32.mrf.mxu0
  %v827 = vadd.f32 0.0, %v826
  %828 = vmatmul.f32.gmra.mxu0 %v622
  %v829 = vpop.f32.mrf.mxu0
  %v830 = vadd.f32 0.0, %v829
  %831 = vmatmul.f32.gmra.mxu0 %v623
  %v832 = vpop.f32.mrf.mxu0
  %v833 = vadd.f32 0.0, %v832
  %834 = vmatmul.f32.gmra.mxu0 %v624
  %v835 = vpop.f32.mrf.mxu0
  %v836 = vadd.f32 0.0, %v835
  %837 = vmatmul.f32.gmra.mxu0 %v625
  %v838 = vpop.f32.mrf.mxu0
  %v839 = vadd.f32 0.0, %v838
  %840 = vmatmul.f32.gmra.mxu0 %v626
  %v841 = vpop.f32.mrf.mxu0
  %v842 = vadd.f32 0.0, %v841
  %843 = vmatmul.f32.gmra.mxu0 %v627
  %v844 = vpop.f32.mrf.mxu0
  %v845 = vadd.f32 0.0, %v844
  %846 = vmatmul.f32.gmra.mxu0 %v628
  %v847 = vpop.f32.mrf.mxu0
  %v848 = vadd.f32 0.0, %v847
  %849 = vmatmul.f32.gmra.mxu0 %v629
  %v850 = vpop.f32.mrf.mxu0
  %v851 = vadd.f32 0.0, %v850
  %852 = vmatmul.f32.gmra.mxu0 %v630
  %v853 = vpop.f32.mrf.mxu0
  %v854 = vadd.f32 0.0, %v853
  %855 = vdwg.mxu0
  %v856 = vadd.f32 %v665, %v668
  %v857 = vadd.f32 %v856, %v671
  %v858 = vadd.f32 %v857, %v674
  %v859 = vadd.f32 %v858, %v677
  %v860 = vadd.f32 %v859, %v680
  %v861 = vadd.f32 %v860, %v683
  %v862 = vadd.f32 %v861, %v686
  %v863 = vadd.f32 %v862, %v689
  %v864 = vadd.f32 %v863, %v692
  %v865 = vadd.f32 %v864, %v695
  %v866 = vadd.f32 %v865, %v698
  %v867 = vadd.f32 %v866, %v701
  %v868 = vadd.f32 %v867, %v704
  %v869 = vadd.f32 %v868, %v707
  %v870 = vadd.f32 %v869, %v710
  %v871 = vadd.f32 %v870, %v713
  %v872 = vadd.f32 %v871, %v716
  %v873 = vadd.f32 %v872, %v719
  %v874 = vadd.f32 %v873, %v722
  %v875 = vadd.f32 %v874, %v725
  %v876 = vadd.f32 %v875, %v728
  %v877 = vadd.f32 %v876, %v731
  %v878 = vadd.f32 %v877, %v734
  %v879 = vadd.f32 %v878, %v737
  %v880 = vadd.f32 %v879, %v740
  %v881 = vadd.f32 %v880, %v743
  %v882 = vadd.f32 %v881, %v746
  %v883 = vadd.f32 %v882, %v749
  %v884 = vadd.f32 %v883, %v752
  %v885 = vadd.f32 %v884, %v755
  %v886 = vadd.f32 %v885, %v758
  %v887 = vadd.f32 %v886, %v761
  %v888 = vadd.f32 %v887, %v764
  %v889 = vadd.f32 %v888, %v767
  %v890 = vadd.f32 %v889, %v770
  %v891 = vadd.f32 %v890, %v773
  %v892 = vadd.f32 %v891, %v776
  %v893 = vadd.f32 %v892, %v779
  %v894 = vadd.f32 %v893, %v782
  %v895 = vadd.f32 %v894, %v785
  %v896 = vadd.f32 %v895, %v788
  %v897 = vadd.f32 %v896, %v791
  %v898 = vadd.f32 %v897, %v794
  %v899 = vadd.f32 %v898, %v797
  %v900 = vadd.f32 %v899, %v800
  %v901 = vadd.f32 %v900, %v803
  %v902 = vadd.f32 %v901, %v806
  %v903 = vadd.f32 %v902, %v809
  %v904 = vadd.f32 %v903, %v812
  %v905 = vadd.f32 %v904, %v815
  %v906 = vadd.f32 %v905, %v818
  %v907 = vadd.f32 %v906, %v821
  %v908 = vadd.f32 %v907, %v824
  %v909 = vadd.f32 %v908, %v827
  %v910 = vadd.f32 %v909, %v830
  %v911 = vadd.f32 %v910, %v833
  %v912 = vadd.f32 %v911, %v836
  %v913 = vadd.f32 %v912, %v839
  %v914 = vadd.f32 %v913, %v842
  %v915 = vadd.f32 %v914, %v845
  %v916 = vadd.f32 %v915, %v848
  %v917 = vadd.f32 %v916, %v851
  %v918 = vadd.f32 %v917, %v854
  %919 = vst [vmem:[%s7] sm:$0xff] %v918
  %v920 = vmul.f32 %v665, %v665
  %v921 = vmul.f32 %v668, %v668
  %v922 = vmul.f32 %v671, %v671
  %v923 = vmul.f32 %v674, %v674
  %v924 = vmul.f32 %v677, %v677
  %v925 = vmul.f32 %v680, %v680
  %v926 = vmul.f32 %v683, %v683
  %v927 = vmul.f32 %v686, %v686
  %v928 = vmul.f32 %v689, %v689
  %v929 = vmul.f32 %v692, %v692
  %v930 = vmul.f32 %v695, %v695
  %v931 = vmul.f32 %v698, %v698
  %v932 = vmul.f32 %v701, %v701
  %v933 = vmul.f32 %v704, %v704
  %v934 = vmul.f32 %v707, %v707
  %v935 = vmul.f32 %v710, %v710
  %v936 = vmul.f32 %v713, %v713
  %v937 = vmul.f32 %v716, %v716
  %v938 = vmul.f32 %v719, %v719
  %v939 = vmul.f32 %v722, %v722
  %v940 = vmul.f32 %v725, %v725
  %v941 = vmul.f32 %v728, %v728
  %v942 = vmul.f32 %v731, %v731
  %v943 = vmul.f32 %v734, %v734
  %v944 = vmul.f32 %v737, %v737
  %v945 = vmul.f32 %v740, %v740
  %v946 = vmul.f32 %v743, %v743
  %v947 = vmul.f32 %v746, %v746
  %v948 = vmul.f32 %v749, %v749
  %v949 = vmul.f32 %v752, %v752
  %v950 = vmul.f32 %v755, %v755
  %v951 = vmul.f32 %v758, %v758
  %v952 = vmul.f32 %v761, %v761
  %v953 = vmul.f32 %v764, %v764
  %v954 = vmul.f32 %v767, %v767
  %v955 = vmul.f32 %v770, %v770
  %v956 = vmul.f32 %v773, %v773
  %v957 = vmul.f32 %v776, %v776
  %v958 = vmul.f32 %v779, %v779
  %v959 = vmul.f32 %v782, %v782
  %v960 = vmul.f32 %v785, %v785
  %v961 = vmul.f32 %v788, %v788
  %v962 = vmul.f32 %v791, %v791
  %v963 = vmul.f32 %v794, %v794
  %v964 = vmul.f32 %v797, %v797
  %v965 = vmul.f32 %v800, %v800
  %v966 = vmul.f32 %v803, %v803
  %v967 = vmul.f32 %v806, %v806
  %v968 = vmul.f32 %v809, %v809
  %v969 = vmul.f32 %v812, %v812
  %v970 = vmul.f32 %v815, %v815
  %v971 = vmul.f32 %v818, %v818
  %v972 = vmul.f32 %v821, %v821
  %v973 = vmul.f32 %v824, %v824
  %v974 = vmul.f32 %v827, %v827
  %v975 = vmul.f32 %v830, %v830
  %v976 = vmul.f32 %v833, %v833
  %v977 = vmul.f32 %v836, %v836
  %v978 = vmul.f32 %v839, %v839
  %v979 = vmul.f32 %v842, %v842
  %v980 = vmul.f32 %v845, %v845
  %v981 = vmul.f32 %v848, %v848
  %v982 = vmul.f32 %v851, %v851
  %v983 = vmul.f32 %v854, %v854
  %v984 = vadd.f32 %v920, %v921
  %v985 = vadd.f32 %v984, %v922
  %v986 = vadd.f32 %v985, %v923
  %v987 = vadd.f32 %v986, %v924
  %v988 = vadd.f32 %v987, %v925
  %v989 = vadd.f32 %v988, %v926
  %v990 = vadd.f32 %v989, %v927
  %v991 = vadd.f32 %v990, %v928
  %v992 = vadd.f32 %v991, %v929
  %v993 = vadd.f32 %v992, %v930
  %v994 = vadd.f32 %v993, %v931
  %v995 = vadd.f32 %v994, %v932
  %v996 = vadd.f32 %v995, %v933
  %v997 = vadd.f32 %v996, %v934
  %v998 = vadd.f32 %v997, %v935
  %v999 = vadd.f32 %v998, %v936
  %v1000 = vadd.f32 %v999, %v937
  %v1001 = vadd.f32 %v1000, %v938
  %v1002 = vadd.f32 %v1001, %v939
  %v1003 = vadd.f32 %v1002, %v940
  %v1004 = vadd.f32 %v1003, %v941
  %v1005 = vadd.f32 %v1004, %v942
  %v1006 = vadd.f32 %v1005, %v943
  %v1007 = vadd.f32 %v1006, %v944
  %v1008 = vadd.f32 %v1007, %v945
  %v1009 = vadd.f32 %v1008, %v946
  %v1010 = vadd.f32 %v1009, %v947
  %v1011 = vadd.f32 %v1010, %v948
  %v1012 = vadd.f32 %v1011, %v949
  %v1013 = vadd.f32 %v1012, %v950
  %v1014 = vadd.f32 %v1013, %v951
  %v1015 = vadd.f32 %v1014, %v952
  %v1016 = vadd.f32 %v1015, %v953
  %v1017 = vadd.f32 %v1016, %v954
  %v1018 = vadd.f32 %v1017, %v955
  %v1019 = vadd.f32 %v1018, %v956
  %v1020 = vadd.f32 %v1019, %v957
  %v1021 = vadd.f32 %v1020, %v958
  %v1022 = vadd.f32 %v1021, %v959
  %v1023 = vadd.f32 %v1022, %v960
  %v1024 = vadd.f32 %v1023, %v961
  %v1025 = vadd.f32 %v1024, %v962
  %v1026 = vadd.f32 %v1025, %v963
  %v1027 = vadd.f32 %v1026, %v964
  %v1028 = vadd.f32 %v1027, %v965
  %v1029 = vadd.f32 %v1028, %v966
  %v1030 = vadd.f32 %v1029, %v967
  %v1031 = vadd.f32 %v1030, %v968
  %v1032 = vadd.f32 %v1031, %v969
  %v1033 = vadd.f32 %v1032, %v970
  %v1034 = vadd.f32 %v1033, %v971
  %v1035 = vadd.f32 %v1034, %v972
  %v1036 = vadd.f32 %v1035, %v973
  %v1037 = vadd.f32 %v1036, %v974
  %v1038 = vadd.f32 %v1037, %v975
  %v1039 = vadd.f32 %v1038, %v976
  %v1040 = vadd.f32 %v1039, %v977
  %v1041 = vadd.f32 %v1040, %v978
  %v1042 = vadd.f32 %v1041, %v979
  %v1043 = vadd.f32 %v1042, %v980
  %v1044 = vadd.f32 %v1043, %v981
  %v1045 = vadd.f32 %v1044, %v982
  %v1046 = vadd.f32 %v1045, %v983
  %1047 = vst [vmem:[%s8] sm:$0xff] %v1046
  // Predicated region
  $region18: #{basic_block_forward.6} parent=0 // pred_check
    _
  $region19: #{basic_block_forward.6} parent=0 // pred_check_branch
    %1049 = sbr.rel (0) target = $region21
  $region20: #{basic_block_forward.6} parent=0 // pred_region
    _
  $region21: #{basic_block_forward.6} parent=0 // pred_fallthru
    _
  // Predicated region
  $region22: #{basic_block_forward.6} parent=0 // pred_check
    _
  $region23: #{basic_block_forward.6} parent=0 // pred_check_branch
    %1051 = sbr.rel (0) target = $region25
  $region24: #{basic_block_forward.6} parent=0 // pred_region
    _
  $region25: #{basic_block_forward.6} parent=0 // pred_fallthru
    _
  // Predicated region
  $region26: #{basic_block_forward.6} parent=0 // pred_check
    _
  $region27: #{basic_block_forward.6} parent=0 // pred_check_branch
    %1053 = sbr.rel (0) target = $region29
  $region28: #{basic_block_forward.6} parent=0 // pred_region
    _
  $region29: #{basic_block_forward.6} parent=0 // pred_fallthru
    _
  // Predicated region
  $region30: #{basic_block_forward.6} parent=0 // pred_check
    _
  $region31: #{basic_block_forward.6} parent=0 // pred_check_branch
    %1055 = sbr.rel (0) target = $region33
  $region32: #{basic_block_forward.6} parent=0 // pred_region
    _
  $region33: #{basic_block_forward.6} parent=0 // pred_fallthru
    _
  // Predicated region
  $region34: #{basic_block_forward.6} parent=0 // pred_check
    _
  $region35: #{basic_block_forward.6} parent=0 // pred_check_branch
    %1057 = sbr.rel (0) target = $region37
  $region36: #{basic_block_forward.6} parent=0 // pred_region
    _
  $region37: #{basic_block_forward.6} parent=0 // pred_fallthru
    _
  // Predicated region
  $region38: #{basic_block_forward.6} parent=0 // pred_check
    _
  $region39: #{basic_block_forward.6} parent=0 // pred_check_branch
    %1059 = sbr.rel (0) target = $region41
  $region40: #{basic_block_forward.6} parent=0 // pred_region
    _
  $region41: #{basic_block_forward.6} parent=0 // pred_fallthru
    _
  // Predicated region
  $region42: #{basic_block_forward.6} parent=0 // pred_check
    _
  $region43: #{basic_block_forward.6} parent=0 // pred_check_branch
    %1061 = sbr.rel (0) target = $region45
  $region44: #{basic_block_forward.6} parent=0 // pred_region
    _
  $region45: #{basic_block_forward.6} parent=0 // pred_fallthru
    _
  // Predicated region
  $region46: #{basic_block_forward.6} parent=0 // pred_check
    _
  $region47: #{basic_block_forward.6} parent=0 // pred_check_branch
    %1063 = sbr.rel (0) target = $region49
  $region48: #{basic_block_forward.6} parent=0 // pred_region
    _
  $region49: #{basic_block_forward.6} parent=0 // pred_fallthru
    _
  // Predicated region
  $region50: #{basic_block_forward.6} parent=0 // pred_check
    _
  $region51: #{basic_block_forward.6} parent=0 // pred_check_branch
    %1065 = sbr.rel (0) target = $region53
  $region52: #{basic_block_forward.6} parent=0 // pred_region
    _
  $region53: #{basic_block_forward.6} parent=0 // pred_fallthru
    _
  // Predicated region
  $region54: #{basic_block_forward.6} parent=0 // pred_check
    _
  $region55: #{basic_block_forward.6} parent=0 // pred_check_branch
    %1067 = sbr.rel (0) target = $region57
  $region56: #{basic_block_forward.6} parent=0 // pred_region
    _
  $region57: #{basic_block_forward.6} parent=0 // pred_fallthru
    _

// kernel: basic_block_forward.7
$region0: #{basic_block_forward.7}
  #allocation0 [shape = 'u32[]', space=smem, size = 0x4, offset = 0x4, fixed_abs, tag = 'smem constant byte address 0x4 - core index']
  #allocation1 [shape = 'u32[72,128]{1,0:T(1,128)}', space=vmem, size = 0x9000, scoped, tag = 'internal scratch']
  %s0 = inlined_call_operand.vmem [shape: f32[512,128], index: 0, kind: input, shape index: {}, may-alias: {0,5}]
  %s1 = inlined_call_operand.vmem [shape: f32[1,128], index: 1, kind: input, shape index: {}]
  %s2 = inlined_call_operand.vmem [shape: f32[1,128], index: 2, kind: input, shape index: {}]
  %s3 = inlined_call_operand.vmem [shape: f32[512,128], index: 3, kind: input, shape index: {}]
  %s4 = inlined_call_operand.vmem [shape: f32[128,128], index: 4, kind: input, shape index: {}]
  %s5 = inlined_call_operand.vmem [shape: f32[512,128], index: 5, kind: output, shape index: {}, may-alias: {0,5}]
  %s6 = sld [smem:[#allocation0]]
  $region30: #{basic_block_forward.7} parent=0
    _
  %s8 = ssub.s32 1, %s6
  %s9 = scalar_select 0, %s8, %s6
  // Predicated region
  $region2: #{basic_block_forward.7} parent=0 // pred_check
    _
  $region3: #{basic_block_forward.7} parent=0 // pred_check_branch
    %11 = sbr.rel (0) target = $region5
  $region4: #{basic_block_forward.7} parent=0 // pred_region
    _
  $region5: #{basic_block_forward.7} parent=0 // pred_fallthru
    _
  // Predicated region
  $region6: #{basic_block_forward.7} parent=0 // pred_check
    _
  $region7: #{basic_block_forward.7} parent=0 // pred_check_branch
    %13 = sbr.rel (0) target = $region9
  $region8: #{basic_block_forward.7} parent=0 // pred_region
    _
  $region9: #{basic_block_forward.7} parent=0 // pred_fallthru
    _
  // Predicated region
  $region10: #{basic_block_forward.7} parent=0 // pred_check
    _
  $region11: #{basic_block_forward.7} parent=0 // pred_check_branch
    %15 = sbr.rel (0) target = $region13
  $region12: #{basic_block_forward.7} parent=0 // pred_region
    _
  $region13: #{basic_block_forward.7} parent=0 // pred_fallthru
    _
  // Predicated region
  $region14: #{basic_block_forward.7} parent=0 // pred_check
    _
  $region15: #{basic_block_forward.7} parent=0 // pred_check_branch
    %17 = sbr.rel (0) target = $region17
  $region16: #{basic_block_forward.7} parent=0 // pred_region
    _
  $region17: #{basic_block_forward.7} parent=0 // pred_fallthru
    _
  // Predicated region
  $region18: #{basic_block_forward.7} parent=0 // pred_check
    _
  $region19: #{basic_block_forward.7} parent=0 // pred_check_branch
    %19 = sbr.rel (0) target = $region21
  $region20: #{basic_block_forward.7} parent=0 // pred_region
    _
  $region21: #{basic_block_forward.7} parent=0 // pred_fallthru
    _
  %v20 = vld [vmem:[%s0] sm:$0xff]
  %v21 = vld [vmem:[%s0 + $0x8] sm:$0xff]
  %v22 = vld [vmem:[%s0 + $0x10] sm:$0xff]
  %v23 = vld [vmem:[%s0 + $0x18] sm:$0xff]
  %v24 = vld [vmem:[%s0 + $0x20] sm:$0xff]
  %v25 = vld [vmem:[%s0 + $0x28] sm:$0xff]
  %v26 = vld [vmem:[%s0 + $0x30] sm:$0xff]
  %v27 = vld [vmem:[%s0 + $0x38] sm:$0xff]
  %v28 = vld [vmem:[%s0 + $0x40] sm:$0xff]
  %v29 = vld [vmem:[%s0 + $0x48] sm:$0xff]
  %v30 = vld [vmem:[%s0 + $0x50] sm:$0xff]
  %v31 = vld [vmem:[%s0 + $0x58] sm:$0xff]
  %v32 = vld [vmem:[%s0 + $0x60] sm:$0xff]
  %v33 = vld [vmem:[%s0 + $0x68] sm:$0xff]
  %v34 = vld [vmem:[%s0 + $0x70] sm:$0xff]
  %v35 = vld [vmem:[%s0 + $0x78] sm:$0xff]
  %v36 = vld [vmem:[%s0 + $0x80] sm:$0xff]
  %v37 = vld [vmem:[%s0 + $0x88] sm:$0xff]
  %v38 = vld [vmem:[%s0 + $0x90] sm:$0xff]
  %v39 = vld [vmem:[%s0 + $0x98] sm:$0xff]
  %v40 = vld [vmem:[%s0 + $0xa0] sm:$0xff]
  %v41 = vld [vmem:[%s0 + $0xa8] sm:$0xff]
  %v42 = vld [vmem:[%s0 + $0xb0] sm:$0xff]
  %v43 = vld [vmem:[%s0 + $0xb8] sm:$0xff]
  %v44 = vld [vmem:[%s0 + $0xc0] sm:$0xff]
  %v45 = vld [vmem:[%s0 + $0xc8] sm:$0xff]
  %v46 = vld [vmem:[%s0 + $0xd0] sm:$0xff]
  %v47 = vld [vmem:[%s0 + $0xd8] sm:$0xff]
  %v48 = vld [vmem:[%s0 + $0xe0] sm:$0xff]
  %v49 = vld [vmem:[%s0 + $0xe8] sm:$0xff]
  %v50 = vld [vmem:[%s0 + $0xf0] sm:$0xff]
  %v51 = vld [vmem:[%s0 + $0xf8] sm:$0xff]
  %v52 = vld [vmem:[%s0 + $0x100] sm:$0xff]
  %v53 = vld [vmem:[%s0 + $0x108] sm:$0xff]
  %v54 = vld [vmem:[%s0 + $0x110] sm:$0xff]
  %v55 = vld [vmem:[%s0 + $0x118] sm:$0xff]
  %v56 = vld [vmem:[%s0 + $0x120] sm:$0xff]
  %v57 = vld [vmem:[%s0 + $0x128] sm:$0xff]
  %v58 = vld [vmem:[%s0 + $0x130] sm:$0xff]
  %v59 = vld [vmem:[%s0 + $0x138] sm:$0xff]
  %v60 = vld [vmem:[%s0 + $0x140] sm:$0xff]
  %v61 = vld [vmem:[%s0 + $0x148] sm:$0xff]
  %v62 = vld [vmem:[%s0 + $0x150] sm:$0xff]
  %v63 = vld [vmem:[%s0 + $0x158] sm:$0xff]
  %v64 = vld [vmem:[%s0 + $0x160] sm:$0xff]
  %v65 = vld [vmem:[%s0 + $0x168] sm:$0xff]
  %v66 = vld [vmem:[%s0 + $0x170] sm:$0xff]
  %v67 = vld [vmem:[%s0 + $0x178] sm:$0xff]
  %v68 = vld [vmem:[%s0 + $0x180] sm:$0xff]
  %v69 = vld [vmem:[%s0 + $0x188] sm:$0xff]
  %v70 = vld [vmem:[%s0 + $0x190] sm:$0xff]
  %v71 = vld [vmem:[%s0 + $0x198] sm:$0xff]
  %v72 = vld [vmem:[%s0 + $0x1a0] sm:$0xff]
  %v73 = vld [vmem:[%s0 + $0x1a8] sm:$0xff]
  %v74 = vld [vmem:[%s0 + $0x1b0] sm:$0xff]
  %v75 = vld [vmem:[%s0 + $0x1b8] sm:$0xff]
  %v76 = vld [vmem:[%s0 + $0x1c0] sm:$0xff]
  %v77 = vld [vmem:[%s0 + $0x1c8] sm:$0xff]
  %v78 = vld [vmem:[%s0 + $0x1d0] sm:$0xff]
  %v79 = vld [vmem:[%s0 + $0x1d8] sm:$0xff]
  %v80 = vld [vmem:[%s0 + $0x1e0] sm:$0xff]
  %v81 = vld [vmem:[%s0 + $0x1e8] sm:$0xff]
  %v82 = vld [vmem:[%s0 + $0x1f0] sm:$0xff]
  %v83 = vld [vmem:[%s0 + $0x1f8] sm:$0xff]
  %v84 = vld [vmem:[%s1] sm:$0x1]
  %v86 = vperm.slane %v84, 0
  %v88 = vmul.f32 %v20, %v86
  %v89 = vmul.f32 %v21, %v86
  %v90 = vmul.f32 %v22, %v86
  %v91 = vmul.f32 %v23, %v86
  %v92 = vmul.f32 %v24, %v86
  %v93 = vmul.f32 %v25, %v86
  %v94 = vmul.f32 %v26, %v86
  %v95 = vmul.f32 %v27, %v86
  %v96 = vmul.f32 %v28, %v86
  %v97 = vmul.f32 %v29, %v86
  %v98 = vmul.f32 %v30, %v86
  %v99 = vmul.f32 %v31, %v86
  %v100 = vmul.f32 %v32, %v86
  %v101 = vmul.f32 %v33, %v86
  %v102 = vmul.f32 %v34, %v86
  %v103 = vmul.f32 %v35, %v86
  %v104 = vmul.f32 %v36, %v86
  %v105 = vmul.f32 %v37, %v86
  %v106 = vmul.f32 %v38, %v86
  %v107 = vmul.f32 %v39, %v86
  %v108 = vmul.f32 %v40, %v86
  %v109 = vmul.f32 %v41, %v86
  %v110 = vmul.f32 %v42, %v86
  %v111 = vmul.f32 %v43, %v86
  %v112 = vmul.f32 %v44, %v86
  %v113 = vmul.f32 %v45, %v86
  %v114 = vmul.f32 %v46, %v86
  %v115 = vmul.f32 %v47, %v86
  %v116 = vmul.f32 %v48, %v86
  %v117 = vmul.f32 %v49, %v86
  %v118 = vmul.f32 %v50, %v86
  %v119 = vmul.f32 %v51, %v86
  %v120 = vmul.f32 %v52, %v86
  %v121 = vmul.f32 %v53, %v86
  %v122 = vmul.f32 %v54, %v86
  %v123 = vmul.f32 %v55, %v86
  %v124 = vmul.f32 %v56, %v86
  %v125 = vmul.f32 %v57, %v86
  %v126 = vmul.f32 %v58, %v86
  %v127 = vmul.f32 %v59, %v86
  %v128 = vmul.f32 %v60, %v86
  %v129 = vmul.f32 %v61, %v86
  %v130 = vmul.f32 %v62, %v86
  %v131 = vmul.f32 %v63, %v86
  %v132 = vmul.f32 %v64, %v86
  %v133 = vmul.f32 %v65, %v86
  %v134 = vmul.f32 %v66, %v86
  %v135 = vmul.f32 %v67, %v86
  %v136 = vmul.f32 %v68, %v86
  %v137 = vmul.f32 %v69, %v86
  %v138 = vmul.f32 %v70, %v86
  %v139 = vmul.f32 %v71, %v86
  %v140 = vmul.f32 %v72, %v86
  %v141 = vmul.f32 %v73, %v86
  %v142 = vmul.f32 %v74, %v86
  %v143 = vmul.f32 %v75, %v86
  %v144 = vmul.f32 %v76, %v86
  %v145 = vmul.f32 %v77, %v86
  %v146 = vmul.f32 %v78, %v86
  %v147 = vmul.f32 %v79, %v86
  %v148 = vmul.f32 %v80, %v86
  %v149 = vmul.f32 %v81, %v86
  %v150 = vmul.f32 %v82, %v86
  %v151 = vmul.f32 %v83, %v86
  %v152 = vld [vmem:[%s2] sm:$0x1]
  %v154 = vperm.slane %v152, 0
  %v156 = vadd.f32 %v88, %v154
  %v157 = vadd.f32 %v89, %v154
  %v158 = vadd.f32 %v90, %v154
  %v159 = vadd.f32 %v91, %v154
  %v160 = vadd.f32 %v92, %v154
  %v161 = vadd.f32 %v93, %v154
  %v162 = vadd.f32 %v94, %v154
  %v163 = vadd.f32 %v95, %v154
  %v164 = vadd.f32 %v96, %v154
  %v165 = vadd.f32 %v97, %v154
  %v166 = vadd.f32 %v98, %v154
  %v167 = vadd.f32 %v99, %v154
  %v168 = vadd.f32 %v100, %v154
  %v169 = vadd.f32 %v101, %v154
  %v170 = vadd.f32 %v102, %v154
  %v171 = vadd.f32 %v103, %v154
  %v172 = vadd.f32 %v104, %v154
  %v173 = vadd.f32 %v105, %v154
  %v174 = vadd.f32 %v106, %v154
  %v175 = vadd.f32 %v107, %v154
  %v176 = vadd.f32 %v108, %v154
  %v177 = vadd.f32 %v109, %v154
  %v178 = vadd.f32 %v110, %v154
  %v179 = vadd.f32 %v111, %v154
  %v180 = vadd.f32 %v112, %v154
  %v181 = vadd.f32 %v113, %v154
  %v182 = vadd.f32 %v114, %v154
  %v183 = vadd.f32 %v115, %v154
  %v184 = vadd.f32 %v116, %v154
  %v185 = vadd.f32 %v117, %v154
  %v186 = vadd.f32 %v118, %v154
  %v187 = vadd.f32 %v119, %v154
  %v188 = vadd.f32 %v120, %v154
  %v189 = vadd.f32 %v121, %v154
  %v190 = vadd.f32 %v122, %v154
  %v191 = vadd.f32 %v123, %v154
  %v192 = vadd.f32 %v124, %v154
  %v193 = vadd.f32 %v125, %v154
  %v194 = vadd.f32 %v126, %v154
  %v195 = vadd.f32 %v127, %v154
  %v196 = vadd.f32 %v128, %v154
  %v197 = vadd.f32 %v129, %v154
  %v198 = vadd.f32 %v130, %v154
  %v199 = vadd.f32 %v131, %v154
  %v200 = vadd.f32 %v132, %v154
  %v201 = vadd.f32 %v133, %v154
  %v202 = vadd.f32 %v134, %v154
  %v203 = vadd.f32 %v135, %v154
  %v204 = vadd.f32 %v136, %v154
  %v205 = vadd.f32 %v137, %v154
  %v206 = vadd.f32 %v138, %v154
  %v207 = vadd.f32 %v139, %v154
  %v208 = vadd.f32 %v140, %v154
  %v209 = vadd.f32 %v141, %v154
  %v210 = vadd.f32 %v142, %v154
  %v211 = vadd.f32 %v143, %v154
  %v212 = vadd.f32 %v144, %v154
  %v213 = vadd.f32 %v145, %v154
  %v214 = vadd.f32 %v146, %v154
  %v215 = vadd.f32 %v147, %v154
  %v216 = vadd.f32 %v148, %v154
  %v217 = vadd.f32 %v149, %v154
  %v218 = vadd.f32 %v150, %v154
  %v219 = vadd.f32 %v151, %v154
  %v220 = vld [vmem:[%s3] sm:$0xff]
  %v221 = vld [vmem:[%s3 + $0x8] sm:$0xff]
  %v222 = vld [vmem:[%s3 + $0x10] sm:$0xff]
  %v223 = vld [vmem:[%s3 + $0x18] sm:$0xff]
  %v224 = vld [vmem:[%s3 + $0x20] sm:$0xff]
  %v225 = vld [vmem:[%s3 + $0x28] sm:$0xff]
  %v226 = vld [vmem:[%s3 + $0x30] sm:$0xff]
  %v227 = vld [vmem:[%s3 + $0x38] sm:$0xff]
  %v228 = vld [vmem:[%s3 + $0x40] sm:$0xff]
  %v229 = vld [vmem:[%s3 + $0x48] sm:$0xff]
  %v230 = vld [vmem:[%s3 + $0x50] sm:$0xff]
  %v231 = vld [vmem:[%s3 + $0x58] sm:$0xff]
  %v232 = vld [vmem:[%s3 + $0x60] sm:$0xff]
  %v233 = vld [vmem:[%s3 + $0x68] sm:$0xff]
  %v234 = vld [vmem:[%s3 + $0x70] sm:$0xff]
  %v235 = vld [vmem:[%s3 + $0x78] sm:$0xff]
  %v236 = vld [vmem:[%s3 + $0x80] sm:$0xff]
  %v237 = vld [vmem:[%s3 + $0x88] sm:$0xff]
  %v238 = vld [vmem:[%s3 + $0x90] sm:$0xff]
  %v239 = vld [vmem:[%s3 + $0x98] sm:$0xff]
  %v240 = vld [vmem:[%s3 + $0xa0] sm:$0xff]
  %v241 = vld [vmem:[%s3 + $0xa8] sm:$0xff]
  %v242 = vld [vmem:[%s3 + $0xb0] sm:$0xff]
  %v243 = vld [vmem:[%s3 + $0xb8] sm:$0xff]
  %v244 = vld [vmem:[%s3 + $0xc0] sm:$0xff]
  %v245 = vld [vmem:[%s3 + $0xc8] sm:$0xff]
  %v246 = vld [vmem:[%s3 + $0xd0] sm:$0xff]
  %v247 = vld [vmem:[%s3 + $0xd8] sm:$0xff]
  %v248 = vld [vmem:[%s3 + $0xe0] sm:$0xff]
  %v249 = vld [vmem:[%s3 + $0xe8] sm:$0xff]
  %v250 = vld [vmem:[%s3 + $0xf0] sm:$0xff]
  %v251 = vld [vmem:[%s3 + $0xf8] sm:$0xff]
  %v252 = vld [vmem:[%s3 + $0x100] sm:$0xff]
  %v253 = vld [vmem:[%s3 + $0x108] sm:$0xff]
  %v254 = vld [vmem:[%s3 + $0x110] sm:$0xff]
  %v255 = vld [vmem:[%s3 + $0x118] sm:$0xff]
  %v256 = vld [vmem:[%s3 + $0x120] sm:$0xff]
  %v257 = vld [vmem:[%s3 + $0x128] sm:$0xff]
  %v258 = vld [vmem:[%s3 + $0x130] sm:$0xff]
  %v259 = vld [vmem:[%s3 + $0x138] sm:$0xff]
  %v260 = vld [vmem:[%s3 + $0x140] sm:$0xff]
  %v261 = vld [vmem:[%s3 + $0x148] sm:$0xff]
  %v262 = vld [vmem:[%s3 + $0x150] sm:$0xff]
  %v263 = vld [vmem:[%s3 + $0x158] sm:$0xff]
  %v264 = vld [vmem:[%s3 + $0x160] sm:$0xff]
  %v265 = vld [vmem:[%s3 + $0x168] sm:$0xff]
  %v266 = vld [vmem:[%s3 + $0x170] sm:$0xff]
  %v267 = vld [vmem:[%s3 + $0x178] sm:$0xff]
  %v268 = vld [vmem:[%s3 + $0x180] sm:$0xff]
  %v269 = vld [vmem:[%s3 + $0x188] sm:$0xff]
  %v270 = vld [vmem:[%s3 + $0x190] sm:$0xff]
  %v271 = vld [vmem:[%s3 + $0x198] sm:$0xff]
  %v272 = vld [vmem:[%s3 + $0x1a0] sm:$0xff]
  %v273 = vld [vmem:[%s3 + $0x1a8] sm:$0xff]
  %v274 = vld [vmem:[%s3 + $0x1b0] sm:$0xff]
  %v275 = vld [vmem:[%s3 + $0x1b8] sm:$0xff]
  %v276 = vld [vmem:[%s3 + $0x1c0] sm:$0xff]
  %v277 = vld [vmem:[%s3 + $0x1c8] sm:$0xff]
  %v278 = vld [vmem:[%s3 + $0x1d0] sm:$0xff]
  %v279 = vld [vmem:[%s3 + $0x1d8] sm:$0xff]
  %v280 = vld [vmem:[%s3 + $0x1e0] sm:$0xff]
  %v281 = vld [vmem:[%s3 + $0x1e8] sm:$0xff]
  %v282 = vld [vmem:[%s3 + $0x1f0] sm:$0xff]
  %v283 = vld [vmem:[%s3 + $0x1f8] sm:$0xff]
  %v284 = vld [vmem:[%s4] sm:$0xff]
  %v285 = vld [vmem:[%s4 + $0x8] sm:$0xff]
  %v286 = vld [vmem:[%s4 + $0x10] sm:$0xff]
  %v287 = vld [vmem:[%s4 + $0x18] sm:$0xff]
  %v288 = vld [vmem:[%s4 + $0x20] sm:$0xff]
  %v289 = vld [vmem:[%s4 + $0x28] sm:$0xff]
  %v290 = vld [vmem:[%s4 + $0x30] sm:$0xff]
  %v291 = vld [vmem:[%s4 + $0x38] sm:$0xff]
  %v292 = vld [vmem:[%s4 + $0x40] sm:$0xff]
  %v293 = vld [vmem:[%s4 + $0x48] sm:$0xff]
  %v294 = vld [vmem:[%s4 + $0x50] sm:$0xff]
  %v295 = vld [vmem:[%s4 + $0x58] sm:$0xff]
  %v296 = vld [vmem:[%s4 + $0x60] sm:$0xff]
  %v297 = vld [vmem:[%s4 + $0x68] sm:$0xff]
  %v298 = vld [vmem:[%s4 + $0x70] sm:$0xff]
  %v299 = vld [vmem:[%s4 + $0x78] sm:$0xff]
  %300 = vmatpush.msra.mxu0 %v299
  %301 = vmatpush.msra.mxu0 %v298
  %302 = vmatpush.msra.mxu0 %v297
  %303 = vmatpush.msra.mxu0 %v296
  %304 = vmatpush.msra.mxu0 %v295
  %305 = vmatpush.msra.mxu0 %v294
  %306 = vmatpush.msra.mxu0 %v293
  %307 = vmatpush.msra.mxu0 %v292
  %308 = vmatpush.msra.mxu0 %v291
  %309 = vmatpush.msra.mxu0 %v290
  %310 = vmatpush.msra.mxu0 %v289
  %311 = vmatpush.msra.mxu0 %v288
  %312 = vmatpush.msra.mxu0 %v287
  %313 = vmatpush.msra.mxu0 %v286
  %314 = vmatpush.msra.mxu0 %v285
  %315 = vmatpush.msra.mxu0 %v284
  %316 = vmatmul.f32.gmra.mxu0 %v220
  %v317 = vpop.f32.mrf.mxu0
  %v318 = vadd.f32 0.0, %v317
  %319 = vmatmul.f32.gmra.mxu0 %v221
  %v320 = vpop.f32.mrf.mxu0
  %v321 = vadd.f32 0.0, %v320
  %322 = vmatmul.f32.gmra.mxu0 %v222
  %v323 = vpop.f32.mrf.mxu0
  %v324 = vadd.f32 0.0, %v323
  %325 = vmatmul.f32.gmra.mxu0 %v223
  %v326 = vpop.f32.mrf.mxu0
  %v327 = vadd.f32 0.0, %v326
  %328 = vmatmul.f32.gmra.mxu0 %v224
  %v329 = vpop.f32.mrf.mxu0
  %v330 = vadd.f32 0.0, %v329
  %331 = vmatmul.f32.gmra.mxu0 %v225
  %v332 = vpop.f32.mrf.mxu0
  %v333 = vadd.f32 0.0, %v332
  %334 = vmatmul.f32.gmra.mxu0 %v226
  %v335 = vpop.f32.mrf.mxu0
  %v336 = vadd.f32 0.0, %v335
  %337 = vmatmul.f32.gmra.mxu0 %v227
  %v338 = vpop.f32.mrf.mxu0
  %v339 = vadd.f32 0.0, %v338
  %340 = vmatmul.f32.gmra.mxu0 %v228
  %v341 = vpop.f32.mrf.mxu0
  %v342 = vadd.f32 0.0, %v341
  %343 = vmatmul.f32.gmra.mxu0 %v229
  %v344 = vpop.f32.mrf.mxu0
  %v345 = vadd.f32 0.0, %v344
  %346 = vmatmul.f32.gmra.mxu0 %v230
  %v347 = vpop.f32.mrf.mxu0
  %v348 = vadd.f32 0.0, %v347
  %349 = vmatmul.f32.gmra.mxu0 %v231
  %v350 = vpop.f32.mrf.mxu0
  %v351 = vadd.f32 0.0, %v350
  %352 = vmatmul.f32.gmra.mxu0 %v232
  %v353 = vpop.f32.mrf.mxu0
  %v354 = vadd.f32 0.0, %v353
  %355 = vmatmul.f32.gmra.mxu0 %v233
  %v356 = vpop.f32.mrf.mxu0
  %v357 = vadd.f32 0.0, %v356
  %358 = vmatmul.f32.gmra.mxu0 %v234
  %v359 = vpop.f32.mrf.mxu0
  %v360 = vadd.f32 0.0, %v359
  %361 = vmatmul.f32.gmra.mxu0 %v235
  %v362 = vpop.f32.mrf.mxu0
  %v363 = vadd.f32 0.0, %v362
  %364 = vmatmul.f32.gmra.mxu0 %v236
  %v365 = vpop.f32.mrf.mxu0
  %v366 = vadd.f32 0.0, %v365
  %367 = vmatmul.f32.gmra.mxu0 %v237
  %v368 = vpop.f32.mrf.mxu0
  %v369 = vadd.f32 0.0, %v368
  %370 = vmatmul.f32.gmra.mxu0 %v238
  %v371 = vpop.f32.mrf.mxu0
  %v372 = vadd.f32 0.0, %v371
  %373 = vmatmul.f32.gmra.mxu0 %v239
  %v374 = vpop.f32.mrf.mxu0
  %v375 = vadd.f32 0.0, %v374
  %376 = vmatmul.f32.gmra.mxu0 %v240
  %v377 = vpop.f32.mrf.mxu0
  %v378 = vadd.f32 0.0, %v377
  %379 = vmatmul.f32.gmra.mxu0 %v241
  %v380 = vpop.f32.mrf.mxu0
  %v381 = vadd.f32 0.0, %v380
  %382 = vmatmul.f32.gmra.mxu0 %v242
  %v383 = vpop.f32.mrf.mxu0
  %v384 = vadd.f32 0.0, %v383
  %385 = vmatmul.f32.gmra.mxu0 %v243
  %v386 = vpop.f32.mrf.mxu0
  %v387 = vadd.f32 0.0, %v386
  %388 = vmatmul.f32.gmra.mxu0 %v244
  %v389 = vpop.f32.mrf.mxu0
  %v390 = vadd.f32 0.0, %v389
  %391 = vmatmul.f32.gmra.mxu0 %v245
  %v392 = vpop.f32.mrf.mxu0
  %v393 = vadd.f32 0.0, %v392
  %394 = vmatmul.f32.gmra.mxu0 %v246
  %v395 = vpop.f32.mrf.mxu0
  %v396 = vadd.f32 0.0, %v395
  %397 = vmatmul.f32.gmra.mxu0 %v247
  %v398 = vpop.f32.mrf.mxu0
  %v399 = vadd.f32 0.0, %v398
  %400 = vmatmul.f32.gmra.mxu0 %v248
  %v401 = vpop.f32.mrf.mxu0
  %v402 = vadd.f32 0.0, %v401
  %403 = vmatmul.f32.gmra.mxu0 %v249
  %v404 = vpop.f32.mrf.mxu0
  %v405 = vadd.f32 0.0, %v404
  %406 = vmatmul.f32.gmra.mxu0 %v250
  %v407 = vpop.f32.mrf.mxu0
  %v408 = vadd.f32 0.0, %v407
  %409 = vmatmul.f32.gmra.mxu0 %v251
  %v410 = vpop.f32.mrf.mxu0
  %v411 = vadd.f32 0.0, %v410
  %412 = vmatmul.f32.gmra.mxu0 %v252
  %v413 = vpop.f32.mrf.mxu0
  %v414 = vadd.f32 0.0, %v413
  %415 = vmatmul.f32.gmra.mxu0 %v253
  %v416 = vpop.f32.mrf.mxu0
  %v417 = vadd.f32 0.0, %v416
  %418 = vmatmul.f32.gmra.mxu0 %v254
  %v419 = vpop.f32.mrf.mxu0
  %v420 = vadd.f32 0.0, %v419
  %421 = vmatmul.f32.gmra.mxu0 %v255
  %v422 = vpop.f32.mrf.mxu0
  %v423 = vadd.f32 0.0, %v422
  %424 = vmatmul.f32.gmra.mxu0 %v256
  %v425 = vpop.f32.mrf.mxu0
  %v426 = vadd.f32 0.0, %v425
  %427 = vmatmul.f32.gmra.mxu0 %v257
  %v428 = vpop.f32.mrf.mxu0
  %v429 = vadd.f32 0.0, %v428
  %430 = vmatmul.f32.gmra.mxu0 %v258
  %v431 = vpop.f32.mrf.mxu0
  %v432 = vadd.f32 0.0, %v431
  %433 = vmatmul.f32.gmra.mxu0 %v259
  %v434 = vpop.f32.mrf.mxu0
  %v435 = vadd.f32 0.0, %v434
  %436 = vmatmul.f32.gmra.mxu0 %v260
  %v437 = vpop.f32.mrf.mxu0
  %v438 = vadd.f32 0.0, %v437
  %439 = vmatmul.f32.gmra.mxu0 %v261
  %v440 = vpop.f32.mrf.mxu0
  %v441 = vadd.f32 0.0, %v440
  %442 = vmatmul.f32.gmra.mxu0 %v262
  %v443 = vpop.f32.mrf.mxu0
  %v444 = vadd.f32 0.0, %v443
  %445 = vmatmul.f32.gmra.mxu0 %v263
  %v446 = vpop.f32.mrf.mxu0
  %v447 = vadd.f32 0.0, %v446
  %448 = vmatmul.f32.gmra.mxu0 %v264
  %v449 = vpop.f32.mrf.mxu0
  %v450 = vadd.f32 0.0, %v449
  %451 = vmatmul.f32.gmra.mxu0 %v265
  %v452 = vpop.f32.mrf.mxu0
  %v453 = vadd.f32 0.0, %v452
  %454 = vmatmul.f32.gmra.mxu0 %v266
  %v455 = vpop.f32.mrf.mxu0
  %v456 = vadd.f32 0.0, %v455
  %457 = vmatmul.f32.gmra.mxu0 %v267
  %v458 = vpop.f32.mrf.mxu0
  %v459 = vadd.f32 0.0, %v458
  %460 = vmatmul.f32.gmra.mxu0 %v268
  %v461 = vpop.f32.mrf.mxu0
  %v462 = vadd.f32 0.0, %v461
  %463 = vmatmul.f32.gmra.mxu0 %v269
  %v464 = vpop.f32.mrf.mxu0
  %v465 = vadd.f32 0.0, %v464
  %466 = vmatmul.f32.gmra.mxu0 %v270
  %v467 = vpop.f32.mrf.mxu0
  %v468 = vadd.f32 0.0, %v467
  %469 = vmatmul.f32.gmra.mxu0 %v271
  %v470 = vpop.f32.mrf.mxu0
  %v471 = vadd.f32 0.0, %v470
  %472 = vmatmul.f32.gmra.mxu0 %v272
  %v473 = vpop.f32.mrf.mxu0
  %v474 = vadd.f32 0.0, %v473
  %475 = vmatmul.f32.gmra.mxu0 %v273
  %v476 = vpop.f32.mrf.mxu0
  %v477 = vadd.f32 0.0, %v476
  %478 = vmatmul.f32.gmra.mxu0 %v274
  %v479 = vpop.f32.mrf.mxu0
  %v480 = vadd.f32 0.0, %v479
  %481 = vmatmul.f32.gmra.mxu0 %v275
  %v482 = vpop.f32.mrf.mxu0
  %v483 = vadd.f32 0.0, %v482
  %484 = vmatmul.f32.gmra.mxu0 %v276
  %v485 = vpop.f32.mrf.mxu0
  %v486 = vadd.f32 0.0, %v485
  %487 = vmatmul.f32.gmra.mxu0 %v277
  %v488 = vpop.f32.mrf.mxu0
  %v489 = vadd.f32 0.0, %v488
  %490 = vmatmul.f32.gmra.mxu0 %v278
  %v491 = vpop.f32.mrf.mxu0
  %v492 = vadd.f32 0.0, %v491
  %493 = vmatmul.f32.gmra.mxu0 %v279
  %v494 = vpop.f32.mrf.mxu0
  %v495 = vadd.f32 0.0, %v494
  %496 = vmatmul.f32.gmra.mxu0 %v280
  %v497 = vpop.f32.mrf.mxu0
  %v498 = vadd.f32 0.0, %v497
  %499 = vmatmul.f32.gmra.mxu0 %v281
  %v500 = vpop.f32.mrf.mxu0
  %v501 = vadd.f32 0.0, %v500
  %502 = vmatmul.f32.gmra.mxu0 %v282
  %v503 = vpop.f32.mrf.mxu0
  %v504 = vadd.f32 0.0, %v503
  %505 = vmatmul.f32.gmra.mxu0 %v283
  %v506 = vpop.f32.mrf.mxu0
  %v507 = vadd.f32 0.0, %v506
  %508 = vdwg.mxu0
  %v509 = vadd.f32 %v156, %v318
  %v510 = vadd.f32 %v157, %v321
  %v511 = vadd.f32 %v158, %v324
  %v512 = vadd.f32 %v159, %v327
  %v513 = vadd.f32 %v160, %v330
  %v514 = vadd.f32 %v161, %v333
  %v515 = vadd.f32 %v162, %v336
  %v516 = vadd.f32 %v163, %v339
  %v517 = vadd.f32 %v164, %v342
  %v518 = vadd.f32 %v165, %v345
  %v519 = vadd.f32 %v166, %v348
  %v520 = vadd.f32 %v167, %v351
  %v521 = vadd.f32 %v168, %v354
  %v522 = vadd.f32 %v169, %v357
  %v523 = vadd.f32 %v170, %v360
  %v524 = vadd.f32 %v171, %v363
  %v525 = vadd.f32 %v172, %v366
  %v526 = vadd.f32 %v173, %v369
  %v527 = vadd.f32 %v174, %v372
  %v528 = vadd.f32 %v175, %v375
  %v529 = vadd.f32 %v176, %v378
  %v530 = vadd.f32 %v177, %v381
  %v531 = vadd.f32 %v178, %v384
  %v532 = vadd.f32 %v179, %v387
  %v533 = vadd.f32 %v180, %v390
  %v534 = vadd.f32 %v181, %v393
  %v535 = vadd.f32 %v182, %v396
  %v536 = vadd.f32 %v183, %v399
  %v537 = vadd.f32 %v184, %v402
  %v538 = vadd.f32 %v185, %v405
  %v539 = vadd.f32 %v186, %v408
  %v540 = vadd.f32 %v187, %v411
  %v541 = vadd.f32 %v188, %v414
  %v542 = vadd.f32 %v189, %v417
  %v543 = vadd.f32 %v190, %v420
  %v544 = vadd.f32 %v191, %v423
  %v545 = vadd.f32 %v192, %v426
  %v546 = vadd.f32 %v193, %v429
  %v547 = vadd.f32 %v194, %v432
  %v548 = vadd.f32 %v195, %v435
  %v549 = vadd.f32 %v196, %v438
  %v550 = vadd.f32 %v197, %v441
  %v551 = vadd.f32 %v198, %v444
  %v552 = vadd.f32 %v199, %v447
  %v553 = vadd.f32 %v200, %v450
  %v554 = vadd.f32 %v201, %v453
  %v555 = vadd.f32 %v202, %v456
  %v556 = vadd.f32 %v203, %v459
  %v557 = vadd.f32 %v204, %v462
  %v558 = vadd.f32 %v205, %v465
  %v559 = vadd.f32 %v206, %v468
  %v560 = vadd.f32 %v207, %v471
  %v561 = vadd.f32 %v208, %v474
  %v562 = vadd.f32 %v209, %v477
  %v563 = vadd.f32 %v210, %v480
  %v564 = vadd.f32 %v211, %v483
  %v565 = vadd.f32 %v212, %v486
  %v566 = vadd.f32 %v213, %v489
  %v567 = vadd.f32 %v214, %v492
  %v568 = vadd.f32 %v215, %v495
  %v569 = vadd.f32 %v216, %v498
  %v570 = vadd.f32 %v217, %v501
  %v571 = vadd.f32 %v218, %v504
  %v572 = vadd.f32 %v219, %v507
  %v573 = vmax.f32 %v509, 0.0
  %v574 = vmax.f32 %v510, 0.0
  %v575 = vmax.f32 %v511, 0.0
  %v576 = vmax.f32 %v512, 0.0
  %v577 = vmax.f32 %v513, 0.0
  %v578 = vmax.f32 %v514, 0.0
  %v579 = vmax.f32 %v515, 0.0
  %v580 = vmax.f32 %v516, 0.0
  %v581 = vmax.f32 %v517, 0.0
  %v582 = vmax.f32 %v518, 0.0
  %v583 = vmax.f32 %v519, 0.0
  %v584 = vmax.f32 %v520, 0.0
  %v585 = vmax.f32 %v521, 0.0
  %v586 = vmax.f32 %v522, 0.0
  %v587 = vmax.f32 %v523, 0.0
  %v588 = vmax.f32 %v524, 0.0
  %v589 = vmax.f32 %v525, 0.0
  %v590 = vmax.f32 %v526, 0.0
  %v591 = vmax.f32 %v527, 0.0
  %v592 = vmax.f32 %v528, 0.0
  %v593 = vmax.f32 %v529, 0.0
  %v594 = vmax.f32 %v530, 0.0
  %v595 = vmax.f32 %v531, 0.0
  %v596 = vmax.f32 %v532, 0.0
  %v597 = vmax.f32 %v533, 0.0
  %v598 = vmax.f32 %v534, 0.0
  %v599 = vmax.f32 %v535, 0.0
  %v600 = vmax.f32 %v536, 0.0
  %v601 = vmax.f32 %v537, 0.0
  %v602 = vmax.f32 %v538, 0.0
  %v603 = vmax.f32 %v539, 0.0
  %v604 = vmax.f32 %v540, 0.0
  %v605 = vmax.f32 %v541, 0.0
  %v606 = vmax.f32 %v542, 0.0
  %v607 = vmax.f32 %v543, 0.0
  %v608 = vmax.f32 %v544, 0.0
  %v609 = vmax.f32 %v545, 0.0
  %v610 = vmax.f32 %v546, 0.0
  %v611 = vmax.f32 %v547, 0.0
  %v612 = vmax.f32 %v548, 0.0
  %v613 = vmax.f32 %v549, 0.0
  %v614 = vmax.f32 %v550, 0.0
  %v615 = vmax.f32 %v551, 0.0
  %v616 = vmax.f32 %v552, 0.0
  %v617 = vmax.f32 %v553, 0.0
  %v618 = vmax.f32 %v554, 0.0
  %v619 = vmax.f32 %v555, 0.0
  %v620 = vmax.f32 %v556, 0.0
  %v621 = vmax.f32 %v557, 0.0
  %v622 = vmax.f32 %v558, 0.0
  %v623 = vmax.f32 %v559, 0.0
  %v624 = vmax.f32 %v560, 0.0
  %v625 = vmax.f32 %v561, 0.0
  %v626 = vmax.f32 %v562, 0.0
  %v627 = vmax.f32 %v563, 0.0
  %v628 = vmax.f32 %v564, 0.0
  %v629 = vmax.f32 %v565, 0.0
  %v630 = vmax.f32 %v566, 0.0
  %v631 = vmax.f32 %v567, 0.0
  %v632 = vmax.f32 %v568, 0.0
  %v633 = vmax.f32 %v569, 0.0
  %v634 = vmax.f32 %v570, 0.0
  %v635 = vmax.f32 %v571, 0.0
  %v636 = vmax.f32 %v572, 0.0
  %637 = vst [vmem:[%s5] sm:$0xff] %v573
  %638 = vst [vmem:[%s5 + $0x8] sm:$0xff] %v574
  %639 = vst [vmem:[%s5 + $0x10] sm:$0xff] %v575
  %640 = vst [vmem:[%s5 + $0x18] sm:$0xff] %v576
  %641 = vst [vmem:[%s5 + $0x20] sm:$0xff] %v577
  %642 = vst [vmem:[%s5 + $0x28] sm:$0xff] %v578
  %643 = vst [vmem:[%s5 + $0x30] sm:$0xff] %v579
  %644 = vst [vmem:[%s5 + $0x38] sm:$0xff] %v580
  %645 = vst [vmem:[%s5 + $0x40] sm:$0xff] %v581
  %646 = vst [vmem:[%s5 + $0x48] sm:$0xff] %v582
  %647 = vst [vmem:[%s5 + $0x50] sm:$0xff] %v583
  %648 = vst [vmem:[%s5 + $0x58] sm:$0xff] %v584
  %649 = vst [vmem:[%s5 + $0x60] sm:$0xff] %v585
  %650 = vst [vmem:[%s5 + $0x68] sm:$0xff] %v586
  %651 = vst [vmem:[%s5 + $0x70] sm:$0xff] %v587
  %652 = vst [vmem:[%s5 + $0x78] sm:$0xff] %v588
  %653 = vst [vmem:[%s5 + $0x80] sm:$0xff] %v589
  %654 = vst [vmem:[%s5 + $0x88] sm:$0xff] %v590
  %655 = vst [vmem:[%s5 + $0x90] sm:$0xff] %v591
  %656 = vst [vmem:[%s5 + $0x98] sm:$0xff] %v592
  %657 = vst [vmem:[%s5 + $0xa0] sm:$0xff] %v593
  %658 = vst [vmem:[%s5 + $0xa8] sm:$0xff] %v594
  %659 = vst [vmem:[%s5 + $0xb0] sm:$0xff] %v595
  %660 = vst [vmem:[%s5 + $0xb8] sm:$0xff] %v596
  %661 = vst [vmem:[%s5 + $0xc0] sm:$0xff] %v597
  %662 = vst [vmem:[%s5 + $0xc8] sm:$0xff] %v598
  %663 = vst [vmem:[%s5 + $0xd0] sm:$0xff] %v599
  %664 = vst [vmem:[%s5 + $0xd8] sm:$0xff] %v600
  %665 = vst [vmem:[%s5 + $0xe0] sm:$0xff] %v601
  %666 = vst [vmem:[%s5 + $0xe8] sm:$0xff] %v602
  %667 = vst [vmem:[%s5 + $0xf0] sm:$0xff] %v603
  %668 = vst [vmem:[%s5 + $0xf8] sm:$0xff] %v604
  %669 = vst [vmem:[%s5 + $0x100] sm:$0xff] %v605
  %670 = vst [vmem:[%s5 + $0x108] sm:$0xff] %v606
  %671 = vst [vmem:[%s5 + $0x110] sm:$0xff] %v607
  %672 = vst [vmem:[%s5 + $0x118] sm:$0xff] %v608
  %673 = vst [vmem:[%s5 + $0x120] sm:$0xff] %v609
  %674 = vst [vmem:[%s5 + $0x128] sm:$0xff] %v610
  %675 = vst [vmem:[%s5 + $0x130] sm:$0xff] %v611
  %676 = vst [vmem:[%s5 + $0x138] sm:$0xff] %v612
  %677 = vst [vmem:[%s5 + $0x140] sm:$0xff] %v613
  %678 = vst [vmem:[%s5 + $0x148] sm:$0xff] %v614
  %679 = vst [vmem:[%s5 + $0x150] sm:$0xff] %v615
  %680 = vst [vmem:[%s5 + $0x158] sm:$0xff] %v616
  %681 = vst [vmem:[%s5 + $0x160] sm:$0xff] %v617
  %682 = vst [vmem:[%s5 + $0x168] sm:$0xff] %v618
  %683 = vst [vmem:[%s5 + $0x170] sm:$0xff] %v619
  %684 = vst [vmem:[%s5 + $0x178] sm:$0xff] %v620
  %685 = vst [vmem:[%s5 + $0x180] sm:$0xff] %v621
  %686 = vst [vmem:[%s5 + $0x188] sm:$0xff] %v622
  %687 = vst [vmem:[%s5 + $0x190] sm:$0xff] %v623
  %688 = vst [vmem:[%s5 + $0x198] sm:$0xff] %v624
  %689 = vst [vmem:[%s5 + $0x1a0] sm:$0xff] %v625
  %690 = vst [vmem:[%s5 + $0x1a8] sm:$0xff] %v626
  %691 = vst [vmem:[%s5 + $0x1b0] sm:$0xff] %v627
  %692 = vst [vmem:[%s5 + $0x1b8] sm:$0xff] %v628
  %693 = vst [vmem:[%s5 + $0x1c0] sm:$0xff] %v629
  %694 = vst [vmem:[%s5 + $0x1c8] sm:$0xff] %v630
  %695 = vst [vmem:[%s5 + $0x1d0] sm:$0xff] %v631
  %696 = vst [vmem:[%s5 + $0x1d8] sm:$0xff] %v632
  %697 = vst [vmem:[%s5 + $0x1e0] sm:$0xff] %v633
  %698 = vst [vmem:[%s5 + $0x1e8] sm:$0xff] %v634
  %699 = vst [vmem:[%s5 + $0x1f0] sm:$0xff] %v635
  %700 = vst [vmem:[%s5 + $0x1f8] sm:$0xff] %v636
  // Predicated region
  $region22: #{basic_block_forward.7} parent=0 // pred_check
    _
  $region23: #{basic_block_forward.7} parent=0 // pred_check_branch
    %702 = sbr.rel (0) target = $region25
  $region24: #{basic_block_forward.7} parent=0 // pred_region
    _
  $region25: #{basic_block_forward.7} parent=0 // pred_fallthru
    _
  // Predicated region
  $region26: #{basic_block_forward.7} parent=0 // pred_check
    _
  $region27: #{basic_block_forward.7} parent=0 // pred_check_branch
    %704 = sbr.rel (0) target = $region29
  $region28: #{basic_block_forward.7} parent=0 // pred_region
    _
  $region29: #{basic_block_forward.7} parent=0 // pred_fallthru
    _

</llo_original>
